<compile_context>
chip_gen: v6e
topology: v6e:2x2x1
jax: 0.10.0
libtpu: 0.0.40
codegen_flags: <defaults>
</compile_context>

<pallas_src>
import functools

import jax
import jax.numpy as jnp
from jax.experimental import pallas as pl
from jax.experimental.pallas import tpu as pltpu


# ----------------------------------------------------------------------------
# small helpers
# ----------------------------------------------------------------------------
def _round_up(n, m):
    return ((n + m - 1) // m) * m


def _pad2(a, rows, cols):
    r, c = a.shape
    return jnp.pad(a, ((0, rows - r), (0, cols - c)))


def _choose_time_chunk(T, Bp, F, Hg, vmem_budget_bytes=8 << 20, cap=32):
    """Time steps per grid chunk: multiple of 8 in [8, cap], sized so that the
    double-buffered x/out chunks plus the live gi slab fit a VMEM budget, and
    never (much) larger than the padded sequence length."""
    bytes_per_step = Bp * 4 * (2 * F + 5 * Hg)  # 2x x-block, 2x out-block, gi slab
    tb = vmem_budget_bytes // max(bytes_per_step, 1)
    tb = min(cap, tb, _round_up(T, 8))
    return int(max(8, (tb // 8) * 8))


# ----------------------------------------------------------------------------
# Recurrent GRU chunk: fused input projection + fully-unrolled scan over TB steps.
# Layout is time-major inside the kernels: x block (TB, Bp, F), out block (TB, Bp, Hg).
# ----------------------------------------------------------------------------
def _gru_chunk(x_ref, wih_ref, whh_ref, bgi_ref, bhn_ref, out_ref, h_ref,
               *, TB, Hg, T_real):
    chunk = pl.program_id(1)

    # Reset the carried hidden state at the first time-chunk of each batch tile.
    @pl.when(chunk == 0)
    def _():
        h_ref[...] = jnp.zeros_like(h_ref)

    Bp = x_ref.shape[1]
    F = x_ref.shape[2]

    # Fused input projection for the whole chunk: ONE (TB*Bp, F) @ (F, 3Hg) bf16
    # MXU matmul with f32 accumulation.  Row layout is time-major: rows
    # [tt*Bp, (tt+1)*Bp) belong to time step tt (Bp % 8 == 0 keeps this a
    # tile-preserving reshape).
    x2d = x_ref[...].reshape(TB * Bp, F).astype(jnp.bfloat16)
    gi = (jnp.dot(x2d, wih_ref[...], preferred_element_type=jnp.float32)
          + bgi_ref[...])                                   # (TB*Bp, 3Hg) f32

    w_hh = whh_ref[...]                                     # (Hg, 3Hg) bf16, hoisted
    b_hn = jnp.broadcast_to(bhn_ref[...], (Bp, Hg))         # hoisted broadcast
    h = h_ref[...]                                          # (Bp, Hg) f32
    needs_mask = (T_real % TB) != 0                         # static

    for tt in range(TB):                                    # fully unrolled scan
        gi_t = gi[tt * Bp:(tt + 1) * Bp, :]                 # static, tile-aligned slice
        gh = jnp.dot(h.astype(jnp.bfloat16), w_hh,
                     preferred_element_type=jnp.float32)    # (Bp, 3Hg)
        # Gate slices are lane-tile aligned because Hg % 128 == 0.
        r = jax.nn.sigmoid(gi_t[:, 0:Hg] + gh[:, 0:Hg])
        z = jax.nn.sigmoid(gi_t[:, Hg:2 * Hg] + gh[:, Hg:2 * Hg])
        n = jnp.tanh(gi_t[:, 2 * Hg:] + r * (gh[:, 2 * Hg:] + b_hn))
        h_new = (1.0 - z) * n + z * h
        if needs_mask:  # hold h on tail-padded time steps so last_hidden is exact
            h_new = jnp.where(chunk * TB + tt < T_real, h_new, h)
        h = h_new
        out_ref[tt] = h                                     # dense (Bp, Hg) store
    h_ref[...] = h


def _gru_mid_kernel(x_ref, wih_ref, whh_ref, bgi_ref, bhn_ref, out_ref, h_ref,
                    *, TB, Hg, T_real):
    _gru_chunk(x_ref, wih_ref, whh_ref, bgi_ref, bhn_ref, out_ref, h_ref,
               TB=TB, Hg=Hg, T_real=T_real)


def _gru_last_kernel(x_ref, wih_ref, whh_ref, bgi_ref, bhn_ref, wfc_ref, bfc_ref,
                     out_ref, logits_ref, lasth_ref, h_ref, *, TB, Hg, T_real):
    _gru_chunk(x_ref, wih_ref, whh_ref, bgi_ref, bhn_ref, out_ref, h_ref,
               TB=TB, Hg=Hg, T_real=T_real)

    # Fused fc2 head: materialize logits/last_hidden only on the final chunk of
    # this batch tile (their output block index is constant along the time axis).
    @pl.when(pl.program_id(1) == pl.num_programs(1) - 1)
    def _():
        h = h_ref[...]
        lasth_ref[...] = h
        logits_ref[...] = (
            jnp.dot(h.astype(jnp.bfloat16), wfc_ref[...],
                    preferred_element_type=jnp.float32)
            + bfc_ref[...])


# ----------------------------------------------------------------------------
# pallas_call builders
# ----------------------------------------------------------------------------
def gru_layer_mid(x, w_ih, w_hh, b_gi, b_hn, *, TB, T_real, n_btiles):
    """Intermediate GRU layer. x: (T_pad, Bp, F) -> hidden states (T_pad, Bp, Hg)."""
    T_pad, Bp, F = x.shape
    G = w_ih.shape[1]
    Hg = G // 3
    BTp = Bp // n_btiles
    return pl.pallas_call(
        functools.partial(_gru_mid_kernel, TB=TB, Hg=Hg, T_real=T_real),
        out_shape=jax.ShapeDtypeStruct((T_pad, Bp, Hg), jnp.float32),
        grid_spec=pltpu.PrefetchScalarGridSpec(
            num_scalar_prefetch=0,
            grid=(n_btiles, T_pad // TB),
            in_specs=[
                pl.BlockSpec((TB, BTp, F), lambda b, c: (c, b, 0)),   # x chunk
                pl.BlockSpec((F, G), lambda b, c: (0, 0)),            # W_ih (bf16)
                pl.BlockSpec((Hg, G), lambda b, c: (0, 0)),           # W_hh (bf16)
                pl.BlockSpec((1, G), lambda b, c: (0, 0)),            # merged gi bias
                pl.BlockSpec((1, Hg), lambda b, c: (0, 0)),           # b_hh_n
            ],
            out_specs=pl.BlockSpec((TB, BTp, Hg), lambda b, c: (c, b, 0)),
            scratch_shapes=[pltpu.VMEM((BTp, Hg), jnp.float32)],      # carried h
        ),
        compiler_params=pltpu.CompilerParams(
            dimension_semantics=("parallel", "arbitrary")),           # batch ||, time seq
    )(x, w_ih, w_hh, b_gi, b_hn)


def gru_layer_last(x, w_ih, w_hh, b_gi, b_hn, w_fc, b_fc, *, TB, T_real, n_btiles):
    """Last GRU layer with fused fc2 head.

    Returns (hidden states (T_pad, Bp, Hg), logits (Bp, Og), last_hidden (Bp, Hg)).
    """
    T_pad, Bp, F = x.shape
    G = w_ih.shape[1]
    Hg = G // 3
    Og = w_fc.shape[1]
    BTp = Bp // n_btiles
    out_shapes = (
        jax.ShapeDtypeStruct((T_pad, Bp, Hg), jnp.float32),
        jax.ShapeDtypeStruct((Bp, Og), jnp.float32),
        jax.ShapeDtypeStruct((Bp, Hg), jnp.float32),
    )
    return pl.pallas_call(
        functools.partial(_gru_last_kernel, TB=TB, Hg=Hg, T_real=T_real),
        out_shape=out_shapes,
        grid_spec=pltpu.PrefetchScalarGridSpec(
            num_scalar_prefetch=0,
            grid=(n_btiles, T_pad // TB),
            in_specs=[
                pl.BlockSpec((TB, BTp, F), lambda b, c: (c, b, 0)),   # x chunk
                pl.BlockSpec((F, G), lambda b, c: (0, 0)),            # W_ih (bf16)
                pl.BlockSpec((Hg, G), lambda b, c: (0, 0)),           # W_hh (bf16)
                pl.BlockSpec((1, G), lambda b, c: (0, 0)),            # merged gi bias
                pl.BlockSpec((1, Hg), lambda b, c: (0, 0)),           # b_hh_n
                pl.BlockSpec((Hg, Og), lambda b, c: (0, 0)),          # fc2 W (bf16)
                pl.BlockSpec((1, Og), lambda b, c: (0, 0)),           # fc2 b
            ],
            out_specs=(
                pl.BlockSpec((TB, BTp, Hg), lambda b, c: (c, b, 0)),  # all hidden states
                pl.BlockSpec((BTp, Og), lambda b, c: (b, 0)),         # logits (last chunk)
                pl.BlockSpec((BTp, Hg), lambda b, c: (b, 0)),         # last_hidden
            ),
            scratch_shapes=[pltpu.VMEM((BTp, Hg), jnp.float32)],      # carried h
        ),
        compiler_params=pltpu.CompilerParams(
            dimension_semantics=("parallel", "arbitrary")),
    )(x, w_ih, w_hh, b_gi, b_hn, w_fc, b_fc)


# ----------------------------------------------------------------------------
# Parameter init (PyTorch-style per-gate layout) and kernel-layout fusion
# ----------------------------------------------------------------------------
def init_params(key, input_size, hidden_dim, num_layers, output_size):
    """Per-gate params in PyTorch gate order (r, z, n)."""
    params = {"gru": [], "fc2": None}
    k = 1.0 / jnp.sqrt(hidden_dim)
    for layer in range(num_layers):
        f_in = input_size if layer == 0 else hidden_dim
        key, k1, k2, k3, k4 = jax.random.split(key, 5)
        w_ih = jax.random.uniform(k1, (3, f_in, hidden_dim), jnp.float32, -k, k)
        w_hh = jax.random.uniform(k2, (3, hidden_dim, hidden_dim), jnp.float32, -k, k)
        b_ih = jax.random.uniform(k3, (3, 1, hidden_dim), jnp.float32, -k, k)
        b_hh = jax.random.uniform(k4, (3, 1, hidden_dim), jnp.float32, -k, k)
        params["gru"].append((w_ih, w_hh, b_ih, b_hh))
    key, k5, k6 = jax.random.split(key, 3)
    w_fc = jax.random.uniform(k5, (hidden_dim, output_size), jnp.float32, -k, k)
    b_fc = jax.random.uniform(k6, (1, output_size), jnp.float32, -k, k)
    params["fc2"] = (w_fc, b_fc)
    return params


def fuse_params(params, hidden_dim, output_size):
    """Gate-concatenated, lane-padded (Hg = round_up(H,128)), bf16 kernel layout.

    Zero padding keeps the padded hidden columns identically zero through the
    recurrence, so results are exact after slicing back to H / O.
    """
    Hg = _round_up(hidden_dim, 128)
    Og = _round_up(output_size, 128)
    layers = []
    for li, (w_ih, w_hh, b_ih, b_hh) in enumerate(params["gru"]):
        f_real = w_ih.shape[1]
        f_pad = f_real if li == 0 else Hg  # deeper layers consume padded hidden states
        w_ih_cat = jnp.concatenate(
            [_pad2(w_ih[g], f_pad, Hg) for g in range(3)], axis=-1
        ).astype(jnp.bfloat16)                                          # (f_pad, 3Hg)
        w_hh_cat = jnp.concatenate(
            [_pad2(w_hh[g], Hg, Hg) for g in range(3)], axis=-1
        ).astype(jnp.bfloat16)                                          # (Hg, 3Hg)
        # b_hh_r / b_hh_z merge into the gi bias; b_hh_n stays separate because
        # PyTorch applies it inside r * (h @ W_hn + b_hn).
        b_gi = jnp.concatenate(
            [_pad2(b_ih[0] + b_hh[0], 1, Hg),
             _pad2(b_ih[1] + b_hh[1], 1, Hg),
             _pad2(b_ih[2], 1, Hg)], axis=-1)                           # (1, 3Hg) f32
        b_hn = _pad2(b_hh[2], 1, Hg)                                    # (1, Hg)  f32
        layers.append((w_ih_cat, w_hh_cat, b_gi, b_hn))
    w_fc, b_fc = params["fc2"]
    w_fc_p = _pad2(w_fc, Hg, Og).astype(jnp.bfloat16)
    b_fc_p = _pad2(b_fc, 1, Og)
    return {"layers": layers, "fc2": (w_fc_p, b_fc_p)}


# ----------------------------------------------------------------------------
# Forward pass matching SingleEncoderModelAudio.forward (eval semantics)
# ----------------------------------------------------------------------------
def forward(fparams, x, lengths, *, hidden_dim, output_size):
    del lengths  # only used for batch_size in the PyTorch forward
    x = x.astype(jnp.float32)
    B, T, F_in = x.shape
    layers = fparams["layers"]
    w_fc, b_fc = fparams["fc2"]
    Hg = layers[-1][1].shape[0]  # padded hidden width

    # Pad batch to a sublane multiple and time to a chunk multiple.
    Bp = _round_up(B, 8)
    TB = _choose_time_chunk(T, Bp, max(F_in, Hg), Hg)
    T_pad = _round_up(T, TB)
    if (Bp != B) or (T_pad != T):
        x = jnp.pad(x, ((0, Bp - B), (0, T_pad - T), (0, 0)))
    xt = jnp.transpose(x, (1, 0, 2))  # single ingest transpose -> (T_pad, Bp, F)

    # v7x: shard independent sequences across the 2 TensorCores when possible.
    n_btiles = 2 if (Bp % 16 == 0 and Bp >= 16) else 1

    out_tm = logits_p = lasth_p = None
    for li, (w_ih, w_hh, b_gi, b_hn) in enumerate(layers):
        if li + 1 < len(layers):
            xt = gru_layer_mid(xt, w_ih, w_hh, b_gi, b_hn,
                               TB=TB, T_real=T, n_btiles=n_btiles)
        else:
            out_tm, logits_p, lasth_p = gru_layer_last(
                xt, w_ih, w_hh, b_gi, b_hn, w_fc, b_fc,
                TB=TB, T_real=T, n_btiles=n_btiles)

    # Strip the batch/time/lane padding introduced for TPU tiling.
    output = jnp.transpose(out_tm, (1, 0, 2))[:B, :T, :hidden_dim]  # (B, T, H)
    logits = logits_p[:B, :output_size]                             # (B, O)
    last_hidden = lasth_p[:B, :hidden_dim]                          # (B, H)
    return output, logits, last_hidden


# ----------------------------------------------------------------------------
# Pure-JAX reference (per-gate f32 math, matches PyTorch nn.GRU eval semantics)
# ----------------------------------------------------------------------------
def forward_ref(params, x, lengths):
    del lengths
    x = x.astype(jnp.float32)
    xt = jnp.transpose(x, (1, 0, 2))
    for (w_ih, w_hh, b_ih, b_hh) in params["gru"]:
        B = xt.shape[1]
        H = w_hh.shape[-1]

        def step(h, x_t):
            gi = [x_t @ w_ih[g] + b_ih[g] for g in range(3)]
            gh = [h @ w_hh[g] + b_hh[g] for g in range(3)]
            r = jax.nn.sigmoid(gi[0] + gh[0])
            z = jax.nn.sigmoid(gi[1] + gh[1])
            n = jnp.tanh(gi[2] + r * gh[2])
            h_new = (1.0 - z) * n + z * h
            return h_new, h_new

        h0 = jnp.zeros((B, H), jnp.float32)
        _, ys = jax.lax.scan(step, h0, xt)
        xt = ys
    output = jnp.transpose(xt, (1, 0, 2))
    last_hidden = xt[-1]
    w_fc, b_fc = params["fc2"]
    logits = last_hidden @ w_fc + b_fc
    return output, logits, last_hidden


if __name__ == "__main__":
    # Small config consistent with the module's constructor.
    input_size, hidden_dim, num_layers, output_size = 16, 32, 2, 4
    B, T = 2, 8

    key = jax.random.PRNGKey(0)
    key, pkey, xkey = jax.random.split(key, 3)
    params = init_params(pkey, input_size, hidden_dim, num_layers, output_size)
    fparams = fuse_params(params, hidden_dim, output_size)

    x = jax.random.normal(xkey, (B, T, input_size), jnp.float32)  # batch_first
    lengths = jnp.full((B,), T, jnp.int32)

    fwd = jax.jit(functools.partial(forward, hidden_dim=hidden_dim,
                                    output_size=output_size))
    output, logits, last_hidden = fwd(fparams, x, lengths)
    jax.block_until_ready((output, logits, last_hidden))

    # Correctness vs pure-JAX f32 reference.  Tolerances are loosened because the
    # kernel runs the matmuls on the bf16 MXU path (f32 accumulation).
    out_r, log_r, lh_r = forward_ref(params, x, lengths)
    assert output.shape == (B, T, hidden_dim)
    assert logits.shape == (B, output_size)
    assert last_hidden.shape == (B, hidden_dim)
    assert jnp.allclose(output, out_r, atol=5e-2, rtol=5e-2)
    assert jnp.allclose(logits, log_r, atol=5e-2, rtol=5e-2)
    assert jnp.allclose(last_hidden, lh_r, atol=5e-2, rtol=5e-2)
    # Internal consistency (precision-independent): hidden[-1] == output[:, -1].
    assert jnp.allclose(last_hidden, output[:, -1, :], atol=1e-6)

    print("KERNEL_OK")
</pallas_src>

<mosaic_0001>
module attributes {stable_mosaic.version = 11 : i64} {
  func.func @_gru_last_kernel(%arg0: i32, %arg1: i32, %arg2: memref<8x8x128xf32, #tpu.memory_space<vmem>>, %arg3: memref<128x384xbf16, #tpu.memory_space<vmem>>, %arg4: memref<128x384xbf16, #tpu.memory_space<vmem>>, %arg5: memref<1x384xf32, #tpu.memory_space<vmem>>, %arg6: memref<1x128xf32, #tpu.memory_space<vmem>>, %arg7: memref<128x128xbf16, #tpu.memory_space<vmem>>, %arg8: memref<1x128xf32, #tpu.memory_space<vmem>>, %arg9: memref<8x8x128xf32, #tpu.memory_space<vmem>>, %arg10: memref<8x128xf32, #tpu.memory_space<vmem>>, %arg11: memref<8x128xf32, #tpu.memory_space<vmem>>, %arg12: memref<8x128xf32, #tpu.memory_space<vmem>>) attributes {dimension_semantics = [#tpu.dimension_semantics<parallel>, #tpu.dimension_semantics<arbitrary>], iteration_bounds = array<i64: 1, 1>, scalar_prefetch = 0 : i64, scratch_operands = 1 : i64, tpu.core_type = #tpu.core_type<tc>, window_params = [{transform_indices = @transform_0, window_bounds = array<i64: 8, 8, 128>}, {pipeline_mode = #tpu.pipeline_mode<synchronous>, transform_indices = @transform_1, window_bounds = array<i64: 128, 384>}, {pipeline_mode = #tpu.pipeline_mode<synchronous>, transform_indices = @transform_2, window_bounds = array<i64: 128, 384>}, {pipeline_mode = #tpu.pipeline_mode<synchronous>, transform_indices = @transform_3, window_bounds = array<i64: 1, 384>}, {pipeline_mode = #tpu.pipeline_mode<synchronous>, transform_indices = @transform_4, window_bounds = array<i64: 1, 128>}, {pipeline_mode = #tpu.pipeline_mode<synchronous>, transform_indices = @transform_5, window_bounds = array<i64: 128, 128>}, {pipeline_mode = #tpu.pipeline_mode<synchronous>, transform_indices = @transform_6, window_bounds = array<i64: 1, 128>}, {transform_indices = @transform_7, window_bounds = array<i64: 8, 8, 128>}, {transform_indices = @transform_8, window_bounds = array<i64: 8, 128>}, {transform_indices = @transform_9, window_bounds = array<i64: 8, 128>}]} {
    %c0_i32 = arith.constant 0 : i32
    %0 = arith.cmpi eq, %arg1, %c0_i32 : i32
    %1 = arith.extui %0 : i1 to i32
    %c0_i32_0 = arith.constant 0 : i32
    %2 = arith.cmpi ne, %1, %c0_i32_0 : i32
    scf.if %2 {
      %cst_66 = arith.constant 0.000000e+00 : f32
      %284 = vector.broadcast %cst_66 : f32 to vector<8x128xf32>
      %c0_67 = arith.constant 0 : index
      %c0_68 = arith.constant 0 : index
      %285 = vector.load %arg12[%c0_67, %c0_68] : memref<8x128xf32, #tpu.memory_space<vmem>>, vector<8x128xf32>
      tpu.vector_store %arg12[%c0_67, %c0_68], %284 {strides = array<i32>} : memref<8x128xf32, #tpu.memory_space<vmem>>, vector<8x128xf32>,
    } else {
    }
    %c0 = arith.constant 0 : index
    %c0_1 = arith.constant 0 : index
    %c0_2 = arith.constant 0 : index
    %3 = vector.load %arg2[%c0, %c0_1, %c0_2] : memref<8x8x128xf32, #tpu.memory_space<vmem>>, vector<8x8x128xf32>
    %4 = vector.shape_cast %3 : vector<8x8x128xf32> to vector<64x128xf32>
    %5 = arith.truncf %4 : vector<64x128xf32> to vector<64x128xbf16>
    %c0_3 = arith.constant 0 : index
    %c0_4 = arith.constant 0 : index
    %6 = vector.load %arg3[%c0_3, %c0_4] : memref<128x384xbf16, #tpu.memory_space<vmem>>, vector<128x384xbf16>
    %cst = arith.constant dense<0.000000e+00> : vector<64x384xf32>
    %7 = tpu.matmul %5, %6, %cst {dimension_numbers = #tpu.dot_dimension_numbers<[1], [0], [0], [1], [0, 0, 1, 1], [], []>} : vector<64x128xbf16>, vector<128x384xbf16>, vector<64x384xf32> -> vector<64x384xf32>
    %c0_5 = arith.constant 0 : index
    %c0_6 = arith.constant 0 : index
    %8 = vector.load %arg5[%c0_5, %c0_6] : memref<1x384xf32, #tpu.memory_space<vmem>>, vector<1x384xf32>
    %9 = vector.broadcast %8 : vector<1x384xf32> to vector<64x384xf32>
    %10 = arith.addf %7, %9 : vector<64x384xf32>
    %c0_7 = arith.constant 0 : index
    %c0_8 = arith.constant 0 : index
    %11 = vector.load %arg4[%c0_7, %c0_8] : memref<128x384xbf16, #tpu.memory_space<vmem>>, vector<128x384xbf16>
    %c0_9 = arith.constant 0 : index
    %c0_10 = arith.constant 0 : index
    %12 = vector.load %arg6[%c0_9, %c0_10] : memref<1x128xf32, #tpu.memory_space<vmem>>, vector<1x128xf32>
    %13 = vector.shape_cast %12 : vector<1x128xf32> to vector<1x128xf32>
    %14 = vector.broadcast %13 : vector<1x128xf32> to vector<8x128xf32>
    %c0_11 = arith.constant 0 : index
    %c0_12 = arith.constant 0 : index
    %15 = vector.load %arg12[%c0_11, %c0_12] : memref<8x128xf32, #tpu.memory_space<vmem>>, vector<8x128xf32>
    %16 = vector.extract_strided_slice %10 {offsets = [0, 0], sizes = [8, 384], strides = [1, 1]} : vector<64x384xf32> to vector<8x384xf32>
    %17 = arith.truncf %15 : vector<8x128xf32> to vector<8x128xbf16>
    %cst_13 = arith.constant dense<0.000000e+00> : vector<8x384xf32>
    %18 = tpu.matmul %17, %11, %cst_13 {dimension_numbers = #tpu.dot_dimension_numbers<[1], [0], [0], [1], [0, 0, 1, 1], [], []>} : vector<8x128xbf16>, vector<128x384xbf16>, vector<8x384xf32> -> vector<8x384xf32>
    %19 = vector.extract_strided_slice %16 {offsets = [0, 0], sizes = [8, 128], strides = [1, 1]} : vector<8x384xf32> to vector<8x128xf32>
    %20 = vector.extract_strided_slice %18 {offsets = [0, 0], sizes = [8, 128], strides = [1, 1]} : vector<8x384xf32> to vector<8x128xf32>
    %21 = arith.addf %19, %20 : vector<8x128xf32>
    %22 = arith.negf %21 : vector<8x128xf32>
    %23 = math.exp %22 : vector<8x128xf32>
    %cst_14 = arith.constant 1.000000e+00 : f32
    %24 = vector.broadcast %cst_14 : f32 to vector<8x128xf32>
    %25 = arith.addf %24, %23 : vector<8x128xf32>
    %26 = arith.divf %24, %25 : vector<8x128xf32>
    %27 = vector.extract_strided_slice %16 {offsets = [0, 128], sizes = [8, 128], strides = [1, 1]} : vector<8x384xf32> to vector<8x128xf32>
    %28 = vector.extract_strided_slice %18 {offsets = [0, 128], sizes = [8, 128], strides = [1, 1]} : vector<8x384xf32> to vector<8x128xf32>
    %29 = arith.addf %27, %28 : vector<8x128xf32>
    %30 = arith.negf %29 : vector<8x128xf32>
    %31 = math.exp %30 : vector<8x128xf32>
    %cst_15 = arith.constant 1.000000e+00 : f32
    %32 = vector.broadcast %cst_15 : f32 to vector<8x128xf32>
    %33 = arith.addf %32, %31 : vector<8x128xf32>
    %34 = arith.divf %32, %33 : vector<8x128xf32>
    %35 = vector.extract_strided_slice %16 {offsets = [0, 256], sizes = [8, 128], strides = [1, 1]} : vector<8x384xf32> to vector<8x128xf32>
    %36 = vector.extract_strided_slice %18 {offsets = [0, 256], sizes = [8, 128], strides = [1, 1]} : vector<8x384xf32> to vector<8x128xf32>
    %37 = arith.addf %36, %14 : vector<8x128xf32>
    %38 = arith.mulf %26, %37 : vector<8x128xf32>
    %39 = arith.addf %35, %38 : vector<8x128xf32>
    %40 = math.tanh %39 : vector<8x128xf32>
    %cst_16 = arith.constant 1.000000e+00 : f32
    %41 = vector.broadcast %cst_16 : f32 to vector<8x128xf32>
    %42 = arith.subf %41, %34 : vector<8x128xf32>
    %43 = arith.mulf %42, %40 : vector<8x128xf32>
    %44 = arith.mulf %34, %15 : vector<8x128xf32>
    %45 = arith.addf %43, %44 : vector<8x128xf32>
    %c0_17 = arith.constant 0 : index
    %c0_18 = arith.constant 0 : index
    %c0_19 = arith.constant 0 : index
    %46 = vector.load %arg9[%c0_17, %c0_18, %c0_19] : memref<8x8x128xf32, #tpu.memory_space<vmem>>, vector<1x8x128xf32>
    %47 = vector.shape_cast %46 : vector<1x8x128xf32> to vector<8x128xf32>
    %48 = vector.shape_cast %45 : vector<8x128xf32> to vector<1x8x128xf32>
    tpu.vector_store %arg9[%c0_17, %c0_18, %c0_19], %48 {strides = array<i32>} : memref<8x8x128xf32, #tpu.memory_space<vmem>>, vector<1x8x128xf32>,
    %49 = vector.extract_strided_slice %10 {offsets = [8, 0], sizes = [8, 384], strides = [1, 1]} : vector<64x384xf32> to vector<8x384xf32>
    %50 = arith.truncf %45 : vector<8x128xf32> to vector<8x128xbf16>
    %cst_20 = arith.constant dense<0.000000e+00> : vector<8x384xf32>
    %51 = tpu.matmul %50, %11, %cst_20 {dimension_numbers = #tpu.dot_dimension_numbers<[1], [0], [0], [1], [0, 0, 1, 1], [], []>} : vector<8x128xbf16>, vector<128x384xbf16>, vector<8x384xf32> -> vector<8x384xf32>
    %52 = vector.extract_strided_slice %49 {offsets = [0, 0], sizes = [8, 128], strides = [1, 1]} : vector<8x384xf32> to vector<8x128xf32>
    %53 = vector.extract_strided_slice %51 {offsets = [0, 0], sizes = [8, 128], strides = [1, 1]} : vector<8x384xf32> to vector<8x128xf32>
    %54 = arith.addf %52, %53 : vector<8x128xf32>
    %55 = arith.negf %54 : vector<8x128xf32>
    %56 = math.exp %55 : vector<8x128xf32>
    %cst_21 = arith.constant 1.000000e+00 : f32
    %57 = vector.broadcast %cst_21 : f32 to vector<8x128xf32>
    %58 = arith.addf %57, %56 : vector<8x128xf32>
    %59 = arith.divf %57, %58 : vector<8x128xf32>
    %60 = vector.extract_strided_slice %49 {offsets = [0, 128], sizes = [8, 128], strides = [1, 1]} : vector<8x384xf32> to vector<8x128xf32>
    %61 = vector.extract_strided_slice %51 {offsets = [0, 128], sizes = [8, 128], strides = [1, 1]} : vector<8x384xf32> to vector<8x128xf32>
    %62 = arith.addf %60, %61 : vector<8x128xf32>
    %63 = arith.negf %62 : vector<8x128xf32>
    %64 = math.exp %63 : vector<8x128xf32>
    %cst_22 = arith.constant 1.000000e+00 : f32
    %65 = vector.broadcast %cst_22 : f32 to vector<8x128xf32>
    %66 = arith.addf %65, %64 : vector<8x128xf32>
    %67 = arith.divf %65, %66 : vector<8x128xf32>
    %68 = vector.extract_strided_slice %49 {offsets = [0, 256], sizes = [8, 128], strides = [1, 1]} : vector<8x384xf32> to vector<8x128xf32>
    %69 = vector.extract_strided_slice %51 {offsets = [0, 256], sizes = [8, 128], strides = [1, 1]} : vector<8x384xf32> to vector<8x128xf32>
    %70 = arith.addf %69, %14 : vector<8x128xf32>
    %71 = arith.mulf %59, %70 : vector<8x128xf32>
    %72 = arith.addf %68, %71 : vector<8x128xf32>
    %73 = math.tanh %72 : vector<8x128xf32>
    %cst_23 = arith.constant 1.000000e+00 : f32
    %74 = vector.broadcast %cst_23 : f32 to vector<8x128xf32>
    %75 = arith.subf %74, %67 : vector<8x128xf32>
    %76 = arith.mulf %75, %73 : vector<8x128xf32>
    %77 = arith.mulf %67, %45 : vector<8x128xf32>
    %78 = arith.addf %76, %77 : vector<8x128xf32>
    %c1 = arith.constant 1 : index
    %c0_24 = arith.constant 0 : index
    %c0_25 = arith.constant 0 : index
    %79 = vector.load %arg9[%c1, %c0_24, %c0_25] : memref<8x8x128xf32, #tpu.memory_space<vmem>>, vector<1x8x128xf32>
    %80 = vector.shape_cast %79 : vector<1x8x128xf32> to vector<8x128xf32>
    %81 = vector.shape_cast %78 : vector<8x128xf32> to vector<1x8x128xf32>
    tpu.vector_store %arg9[%c1, %c0_24, %c0_25], %81 {strides = array<i32>} : memref<8x8x128xf32, #tpu.memory_space<vmem>>, vector<1x8x128xf32>,
    %82 = vector.extract_strided_slice %10 {offsets = [16, 0], sizes = [8, 384], strides = [1, 1]} : vector<64x384xf32> to vector<8x384xf32>
    %83 = arith.truncf %78 : vector<8x128xf32> to vector<8x128xbf16>
    %cst_26 = arith.constant dense<0.000000e+00> : vector<8x384xf32>
    %84 = tpu.matmul %83, %11, %cst_26 {dimension_numbers = #tpu.dot_dimension_numbers<[1], [0], [0], [1], [0, 0, 1, 1], [], []>} : vector<8x128xbf16>, vector<128x384xbf16>, vector<8x384xf32> -> vector<8x384xf32>
    %85 = vector.extract_strided_slice %82 {offsets = [0, 0], sizes = [8, 128], strides = [1, 1]} : vector<8x384xf32> to vector<8x128xf32>
    %86 = vector.extract_strided_slice %84 {offsets = [0, 0], sizes = [8, 128], strides = [1, 1]} : vector<8x384xf32> to vector<8x128xf32>
    %87 = arith.addf %85, %86 : vector<8x128xf32>
    %88 = arith.negf %87 : vector<8x128xf32>
    %89 = math.exp %88 : vector<8x128xf32>
    %cst_27 = arith.constant 1.000000e+00 : f32
    %90 = vector.broadcast %cst_27 : f32 to vector<8x128xf32>
    %91 = arith.addf %90, %89 : vector<8x128xf32>
    %92 = arith.divf %90, %91 : vector<8x128xf32>
    %93 = vector.extract_strided_slice %82 {offsets = [0, 128], sizes = [8, 128], strides = [1, 1]} : vector<8x384xf32> to vector<8x128xf32>
    %94 = vector.extract_strided_slice %84 {offsets = [0, 128], sizes = [8, 128], strides = [1, 1]} : vector<8x384xf32> to vector<8x128xf32>
    %95 = arith.addf %93, %94 : vector<8x128xf32>
    %96 = arith.negf %95 : vector<8x128xf32>
    %97 = math.exp %96 : vector<8x128xf32>
    %cst_28 = arith.constant 1.000000e+00 : f32
    %98 = vector.broadcast %cst_28 : f32 to vector<8x128xf32>
    %99 = arith.addf %98, %97 : vector<8x128xf32>
    %100 = arith.divf %98, %99 : vector<8x128xf32>
    %101 = vector.extract_strided_slice %82 {offsets = [0, 256], sizes = [8, 128], strides = [1, 1]} : vector<8x384xf32> to vector<8x128xf32>
    %102 = vector.extract_strided_slice %84 {offsets = [0, 256], sizes = [8, 128], strides = [1, 1]} : vector<8x384xf32> to vector<8x128xf32>
    %103 = arith.addf %102, %14 : vector<8x128xf32>
    %104 = arith.mulf %92, %103 : vector<8x128xf32>
    %105 = arith.addf %101, %104 : vector<8x128xf32>
    %106 = math.tanh %105 : vector<8x128xf32>
    %cst_29 = arith.constant 1.000000e+00 : f32
    %107 = vector.broadcast %cst_29 : f32 to vector<8x128xf32>
    %108 = arith.subf %107, %100 : vector<8x128xf32>
    %109 = arith.mulf %108, %106 : vector<8x128xf32>
    %110 = arith.mulf %100, %78 : vector<8x128xf32>
    %111 = arith.addf %109, %110 : vector<8x128xf32>
    %c2 = arith.constant 2 : index
    %c0_30 = arith.constant 0 : index
    %c0_31 = arith.constant 0 : index
    %112 = vector.load %arg9[%c2, %c0_30, %c0_31] : memref<8x8x128xf32, #tpu.memory_space<vmem>>, vector<1x8x128xf32>
    %113 = vector.shape_cast %112 : vector<1x8x128xf32> to vector<8x128xf32>
    %114 = vector.shape_cast %111 : vector<8x128xf32> to vector<1x8x128xf32>
    tpu.vector_store %arg9[%c2, %c0_30, %c0_31], %114 {strides = array<i32>} : memref<8x8x128xf32, #tpu.memory_space<vmem>>, vector<1x8x128xf32>,
    %115 = vector.extract_strided_slice %10 {offsets = [24, 0], sizes = [8, 384], strides = [1, 1]} : vector<64x384xf32> to vector<8x384xf32>
    %116 = arith.truncf %111 : vector<8x128xf32> to vector<8x128xbf16>
    %cst_32 = arith.constant dense<0.000000e+00> : vector<8x384xf32>
    %117 = tpu.matmul %116, %11, %cst_32 {dimension_numbers = #tpu.dot_dimension_numbers<[1], [0], [0], [1], [0, 0, 1, 1], [], []>} : vector<8x128xbf16>, vector<128x384xbf16>, vector<8x384xf32> -> vector<8x384xf32>
    %118 = vector.extract_strided_slice %115 {offsets = [0, 0], sizes = [8, 128], strides = [1, 1]} : vector<8x384xf32> to vector<8x128xf32>
    %119 = vector.extract_strided_slice %117 {offsets = [0, 0], sizes = [8, 128], strides = [1, 1]} : vector<8x384xf32> to vector<8x128xf32>
    %120 = arith.addf %118, %119 : vector<8x128xf32>
    %121 = arith.negf %120 : vector<8x128xf32>
    %122 = math.exp %121 : vector<8x128xf32>
    %cst_33 = arith.constant 1.000000e+00 : f32
    %123 = vector.broadcast %cst_33 : f32 to vector<8x128xf32>
    %124 = arith.addf %123, %122 : vector<8x128xf32>
    %125 = arith.divf %123, %124 : vector<8x128xf32>
    %126 = vector.extract_strided_slice %115 {offsets = [0, 128], sizes = [8, 128], strides = [1, 1]} : vector<8x384xf32> to vector<8x128xf32>
    %127 = vector.extract_strided_slice %117 {offsets = [0, 128], sizes = [8, 128], strides = [1, 1]} : vector<8x384xf32> to vector<8x128xf32>
    %128 = arith.addf %126, %127 : vector<8x128xf32>
    %129 = arith.negf %128 : vector<8x128xf32>
    %130 = math.exp %129 : vector<8x128xf32>
    %cst_34 = arith.constant 1.000000e+00 : f32
    %131 = vector.broadcast %cst_34 : f32 to vector<8x128xf32>
    %132 = arith.addf %131, %130 : vector<8x128xf32>
    %133 = arith.divf %131, %132 : vector<8x128xf32>
    %134 = vector.extract_strided_slice %115 {offsets = [0, 256], sizes = [8, 128], strides = [1, 1]} : vector<8x384xf32> to vector<8x128xf32>
    %135 = vector.extract_strided_slice %117 {offsets = [0, 256], sizes = [8, 128], strides = [1, 1]} : vector<8x384xf32> to vector<8x128xf32>
    %136 = arith.addf %135, %14 : vector<8x128xf32>
    %137 = arith.mulf %125, %136 : vector<8x128xf32>
    %138 = arith.addf %134, %137 : vector<8x128xf32>
    %139 = math.tanh %138 : vector<8x128xf32>
    %cst_35 = arith.constant 1.000000e+00 : f32
    %140 = vector.broadcast %cst_35 : f32 to vector<8x128xf32>
    %141 = arith.subf %140, %133 : vector<8x128xf32>
    %142 = arith.mulf %141, %139 : vector<8x128xf32>
    %143 = arith.mulf %133, %111 : vector<8x128xf32>
    %144 = arith.addf %142, %143 : vector<8x128xf32>
    %c3 = arith.constant 3 : index
    %c0_36 = arith.constant 0 : index
    %c0_37 = arith.constant 0 : index
    %145 = vector.load %arg9[%c3, %c0_36, %c0_37] : memref<8x8x128xf32, #tpu.memory_space<vmem>>, vector<1x8x128xf32>
    %146 = vector.shape_cast %145 : vector<1x8x128xf32> to vector<8x128xf32>
    %147 = vector.shape_cast %144 : vector<8x128xf32> to vector<1x8x128xf32>
    tpu.vector_store %arg9[%c3, %c0_36, %c0_37], %147 {strides = array<i32>} : memref<8x8x128xf32, #tpu.memory_space<vmem>>, vector<1x8x128xf32>,
    %148 = vector.extract_strided_slice %10 {offsets = [32, 0], sizes = [8, 384], strides = [1, 1]} : vector<64x384xf32> to vector<8x384xf32>
    %149 = arith.truncf %144 : vector<8x128xf32> to vector<8x128xbf16>
    %cst_38 = arith.constant dense<0.000000e+00> : vector<8x384xf32>
    %150 = tpu.matmul %149, %11, %cst_38 {dimension_numbers = #tpu.dot_dimension_numbers<[1], [0], [0], [1], [0, 0, 1, 1], [], []>} : vector<8x128xbf16>, vector<128x384xbf16>, vector<8x384xf32> -> vector<8x384xf32>
    %151 = vector.extract_strided_slice %148 {offsets = [0, 0], sizes = [8, 128], strides = [1, 1]} : vector<8x384xf32> to vector<8x128xf32>
    %152 = vector.extract_strided_slice %150 {offsets = [0, 0], sizes = [8, 128], strides = [1, 1]} : vector<8x384xf32> to vector<8x128xf32>
    %153 = arith.addf %151, %152 : vector<8x128xf32>
    %154 = arith.negf %153 : vector<8x128xf32>
    %155 = math.exp %154 : vector<8x128xf32>
    %cst_39 = arith.constant 1.000000e+00 : f32
    %156 = vector.broadcast %cst_39 : f32 to vector<8x128xf32>
    %157 = arith.addf %156, %155 : vector<8x128xf32>
    %158 = arith.divf %156, %157 : vector<8x128xf32>
    %159 = vector.extract_strided_slice %148 {offsets = [0, 128], sizes = [8, 128], strides = [1, 1]} : vector<8x384xf32> to vector<8x128xf32>
    %160 = vector.extract_strided_slice %150 {offsets = [0, 128], sizes = [8, 128], strides = [1, 1]} : vector<8x384xf32> to vector<8x128xf32>
    %161 = arith.addf %159, %160 : vector<8x128xf32>
    %162 = arith.negf %161 : vector<8x128xf32>
    %163 = math.exp %162 : vector<8x128xf32>
    %cst_40 = arith.constant 1.000000e+00 : f32
    %164 = vector.broadcast %cst_40 : f32 to vector<8x128xf32>
    %165 = arith.addf %164, %163 : vector<8x128xf32>
    %166 = arith.divf %164, %165 : vector<8x128xf32>
    %167 = vector.extract_strided_slice %148 {offsets = [0, 256], sizes = [8, 128], strides = [1, 1]} : vector<8x384xf32> to vector<8x128xf32>
    %168 = vector.extract_strided_slice %150 {offsets = [0, 256], sizes = [8, 128], strides = [1, 1]} : vector<8x384xf32> to vector<8x128xf32>
    %169 = arith.addf %168, %14 : vector<8x128xf32>
    %170 = arith.mulf %158, %169 : vector<8x128xf32>
    %171 = arith.addf %167, %170 : vector<8x128xf32>
    %172 = math.tanh %171 : vector<8x128xf32>
    %cst_41 = arith.constant 1.000000e+00 : f32
    %173 = vector.broadcast %cst_41 : f32 to vector<8x128xf32>
    %174 = arith.subf %173, %166 : vector<8x128xf32>
    %175 = arith.mulf %174, %172 : vector<8x128xf32>
    %176 = arith.mulf %166, %144 : vector<8x128xf32>
    %177 = arith.addf %175, %176 : vector<8x128xf32>
    %c4 = arith.constant 4 : index
    %c0_42 = arith.constant 0 : index
    %c0_43 = arith.constant 0 : index
    %178 = vector.load %arg9[%c4, %c0_42, %c0_43] : memref<8x8x128xf32, #tpu.memory_space<vmem>>, vector<1x8x128xf32>
    %179 = vector.shape_cast %178 : vector<1x8x128xf32> to vector<8x128xf32>
    %180 = vector.shape_cast %177 : vector<8x128xf32> to vector<1x8x128xf32>
    tpu.vector_store %arg9[%c4, %c0_42, %c0_43], %180 {strides = array<i32>} : memref<8x8x128xf32, #tpu.memory_space<vmem>>, vector<1x8x128xf32>,
    %181 = vector.extract_strided_slice %10 {offsets = [40, 0], sizes = [8, 384], strides = [1, 1]} : vector<64x384xf32> to vector<8x384xf32>
    %182 = arith.truncf %177 : vector<8x128xf32> to vector<8x128xbf16>
    %cst_44 = arith.constant dense<0.000000e+00> : vector<8x384xf32>
    %183 = tpu.matmul %182, %11, %cst_44 {dimension_numbers = #tpu.dot_dimension_numbers<[1], [0], [0], [1], [0, 0, 1, 1], [], []>} : vector<8x128xbf16>, vector<128x384xbf16>, vector<8x384xf32> -> vector<8x384xf32>
    %184 = vector.extract_strided_slice %181 {offsets = [0, 0], sizes = [8, 128], strides = [1, 1]} : vector<8x384xf32> to vector<8x128xf32>
    %185 = vector.extract_strided_slice %183 {offsets = [0, 0], sizes = [8, 128], strides = [1, 1]} : vector<8x384xf32> to vector<8x128xf32>
    %186 = arith.addf %184, %185 : vector<8x128xf32>
    %187 = arith.negf %186 : vector<8x128xf32>
    %188 = math.exp %187 : vector<8x128xf32>
    %cst_45 = arith.constant 1.000000e+00 : f32
    %189 = vector.broadcast %cst_45 : f32 to vector<8x128xf32>
    %190 = arith.addf %189, %188 : vector<8x128xf32>
    %191 = arith.divf %189, %190 : vector<8x128xf32>
    %192 = vector.extract_strided_slice %181 {offsets = [0, 128], sizes = [8, 128], strides = [1, 1]} : vector<8x384xf32> to vector<8x128xf32>
    %193 = vector.extract_strided_slice %183 {offsets = [0, 128], sizes = [8, 128], strides = [1, 1]} : vector<8x384xf32> to vector<8x128xf32>
    %194 = arith.addf %192, %193 : vector<8x128xf32>
    %195 = arith.negf %194 : vector<8x128xf32>
    %196 = math.exp %195 : vector<8x128xf32>
    %cst_46 = arith.constant 1.000000e+00 : f32
    %197 = vector.broadcast %cst_46 : f32 to vector<8x128xf32>
    %198 = arith.addf %197, %196 : vector<8x128xf32>
    %199 = arith.divf %197, %198 : vector<8x128xf32>
    %200 = vector.extract_strided_slice %181 {offsets = [0, 256], sizes = [8, 128], strides = [1, 1]} : vector<8x384xf32> to vector<8x128xf32>
    %201 = vector.extract_strided_slice %183 {offsets = [0, 256], sizes = [8, 128], strides = [1, 1]} : vector<8x384xf32> to vector<8x128xf32>
    %202 = arith.addf %201, %14 : vector<8x128xf32>
    %203 = arith.mulf %191, %202 : vector<8x128xf32>
    %204 = arith.addf %200, %203 : vector<8x128xf32>
    %205 = math.tanh %204 : vector<8x128xf32>
    %cst_47 = arith.constant 1.000000e+00 : f32
    %206 = vector.broadcast %cst_47 : f32 to vector<8x128xf32>
    %207 = arith.subf %206, %199 : vector<8x128xf32>
    %208 = arith.mulf %207, %205 : vector<8x128xf32>
    %209 = arith.mulf %199, %177 : vector<8x128xf32>
    %210 = arith.addf %208, %209 : vector<8x128xf32>
    %c5 = arith.constant 5 : index
    %c0_48 = arith.constant 0 : index
    %c0_49 = arith.constant 0 : index
    %211 = vector.load %arg9[%c5, %c0_48, %c0_49] : memref<8x8x128xf32, #tpu.memory_space<vmem>>, vector<1x8x128xf32>
    %212 = vector.shape_cast %211 : vector<1x8x128xf32> to vector<8x128xf32>
    %213 = vector.shape_cast %210 : vector<8x128xf32> to vector<1x8x128xf32>
    tpu.vector_store %arg9[%c5, %c0_48, %c0_49], %213 {strides = array<i32>} : memref<8x8x128xf32, #tpu.memory_space<vmem>>, vector<1x8x128xf32>,
    %214 = vector.extract_strided_slice %10 {offsets = [48, 0], sizes = [8, 384], strides = [1, 1]} : vector<64x384xf32> to vector<8x384xf32>
    %215 = arith.truncf %210 : vector<8x128xf32> to vector<8x128xbf16>
    %cst_50 = arith.constant dense<0.000000e+00> : vector<8x384xf32>
    %216 = tpu.matmul %215, %11, %cst_50 {dimension_numbers = #tpu.dot_dimension_numbers<[1], [0], [0], [1], [0, 0, 1, 1], [], []>} : vector<8x128xbf16>, vector<128x384xbf16>, vector<8x384xf32> -> vector<8x384xf32>
    %217 = vector.extract_strided_slice %214 {offsets = [0, 0], sizes = [8, 128], strides = [1, 1]} : vector<8x384xf32> to vector<8x128xf32>
    %218 = vector.extract_strided_slice %216 {offsets = [0, 0], sizes = [8, 128], strides = [1, 1]} : vector<8x384xf32> to vector<8x128xf32>
    %219 = arith.addf %217, %218 : vector<8x128xf32>
    %220 = arith.negf %219 : vector<8x128xf32>
    %221 = math.exp %220 : vector<8x128xf32>
    %cst_51 = arith.constant 1.000000e+00 : f32
    %222 = vector.broadcast %cst_51 : f32 to vector<8x128xf32>
    %223 = arith.addf %222, %221 : vector<8x128xf32>
    %224 = arith.divf %222, %223 : vector<8x128xf32>
    %225 = vector.extract_strided_slice %214 {offsets = [0, 128], sizes = [8, 128], strides = [1, 1]} : vector<8x384xf32> to vector<8x128xf32>
    %226 = vector.extract_strided_slice %216 {offsets = [0, 128], sizes = [8, 128], strides = [1, 1]} : vector<8x384xf32> to vector<8x128xf32>
    %227 = arith.addf %225, %226 : vector<8x128xf32>
    %228 = arith.negf %227 : vector<8x128xf32>
    %229 = math.exp %228 : vector<8x128xf32>
    %cst_52 = arith.constant 1.000000e+00 : f32
    %230 = vector.broadcast %cst_52 : f32 to vector<8x128xf32>
    %231 = arith.addf %230, %229 : vector<8x128xf32>
    %232 = arith.divf %230, %231 : vector<8x128xf32>
    %233 = vector.extract_strided_slice %214 {offsets = [0, 256], sizes = [8, 128], strides = [1, 1]} : vector<8x384xf32> to vector<8x128xf32>
    %234 = vector.extract_strided_slice %216 {offsets = [0, 256], sizes = [8, 128], strides = [1, 1]} : vector<8x384xf32> to vector<8x128xf32>
    %235 = arith.addf %234, %14 : vector<8x128xf32>
    %236 = arith.mulf %224, %235 : vector<8x128xf32>
    %237 = arith.addf %233, %236 : vector<8x128xf32>
    %238 = math.tanh %237 : vector<8x128xf32>
    %cst_53 = arith.constant 1.000000e+00 : f32
    %239 = vector.broadcast %cst_53 : f32 to vector<8x128xf32>
    %240 = arith.subf %239, %232 : vector<8x128xf32>
    %241 = arith.mulf %240, %238 : vector<8x128xf32>
    %242 = arith.mulf %232, %210 : vector<8x128xf32>
    %243 = arith.addf %241, %242 : vector<8x128xf32>
    %c6 = arith.constant 6 : index
    %c0_54 = arith.constant 0 : index
    %c0_55 = arith.constant 0 : index
    %244 = vector.load %arg9[%c6, %c0_54, %c0_55] : memref<8x8x128xf32, #tpu.memory_space<vmem>>, vector<1x8x128xf32>
    %245 = vector.shape_cast %244 : vector<1x8x128xf32> to vector<8x128xf32>
    %246 = vector.shape_cast %243 : vector<8x128xf32> to vector<1x8x128xf32>
    tpu.vector_store %arg9[%c6, %c0_54, %c0_55], %246 {strides = array<i32>} : memref<8x8x128xf32, #tpu.memory_space<vmem>>, vector<1x8x128xf32>,
    %247 = vector.extract_strided_slice %10 {offsets = [56, 0], sizes = [8, 384], strides = [1, 1]} : vector<64x384xf32> to vector<8x384xf32>
    %248 = arith.truncf %243 : vector<8x128xf32> to vector<8x128xbf16>
    %cst_56 = arith.constant dense<0.000000e+00> : vector<8x384xf32>
    %249 = tpu.matmul %248, %11, %cst_56 {dimension_numbers = #tpu.dot_dimension_numbers<[1], [0], [0], [1], [0, 0, 1, 1], [], []>} : vector<8x128xbf16>, vector<128x384xbf16>, vector<8x384xf32> -> vector<8x384xf32>
    %250 = vector.extract_strided_slice %247 {offsets = [0, 0], sizes = [8, 128], strides = [1, 1]} : vector<8x384xf32> to vector<8x128xf32>
    %251 = vector.extract_strided_slice %249 {offsets = [0, 0], sizes = [8, 128], strides = [1, 1]} : vector<8x384xf32> to vector<8x128xf32>
    %252 = arith.addf %250, %251 : vector<8x128xf32>
    %253 = arith.negf %252 : vector<8x128xf32>
    %254 = math.exp %253 : vector<8x128xf32>
    %cst_57 = arith.constant 1.000000e+00 : f32
    %255 = vector.broadcast %cst_57 : f32 to vector<8x128xf32>
    %256 = arith.addf %255, %254 : vector<8x128xf32>
    %257 = arith.divf %255, %256 : vector<8x128xf32>
    %258 = vector.extract_strided_slice %247 {offsets = [0, 128], sizes = [8, 128], strides = [1, 1]} : vector<8x384xf32> to vector<8x128xf32>
    %259 = vector.extract_strided_slice %249 {offsets = [0, 128], sizes = [8, 128], strides = [1, 1]} : vector<8x384xf32> to vector<8x128xf32>
    %260 = arith.addf %258, %259 : vector<8x128xf32>
    %261 = arith.negf %260 : vector<8x128xf32>
    %262 = math.exp %261 : vector<8x128xf32>
    %cst_58 = arith.constant 1.000000e+00 : f32
    %263 = vector.broadcast %cst_58 : f32 to vector<8x128xf32>
    %264 = arith.addf %263, %262 : vector<8x128xf32>
    %265 = arith.divf %263, %264 : vector<8x128xf32>
    %266 = vector.extract_strided_slice %247 {offsets = [0, 256], sizes = [8, 128], strides = [1, 1]} : vector<8x384xf32> to vector<8x128xf32>
    %267 = vector.extract_strided_slice %249 {offsets = [0, 256], sizes = [8, 128], strides = [1, 1]} : vector<8x384xf32> to vector<8x128xf32>
    %268 = arith.addf %267, %14 : vector<8x128xf32>
    %269 = arith.mulf %257, %268 : vector<8x128xf32>
    %270 = arith.addf %266, %269 : vector<8x128xf32>
    %271 = math.tanh %270 : vector<8x128xf32>
    %cst_59 = arith.constant 1.000000e+00 : f32
    %272 = vector.broadcast %cst_59 : f32 to vector<8x128xf32>
    %273 = arith.subf %272, %265 : vector<8x128xf32>
    %274 = arith.mulf %273, %271 : vector<8x128xf32>
    %275 = arith.mulf %265, %243 : vector<8x128xf32>
    %276 = arith.addf %274, %275 : vector<8x128xf32>
    %c7 = arith.constant 7 : index
    %c0_60 = arith.constant 0 : index
    %c0_61 = arith.constant 0 : index
    %277 = vector.load %arg9[%c7, %c0_60, %c0_61] : memref<8x8x128xf32, #tpu.memory_space<vmem>>, vector<1x8x128xf32>
    %278 = vector.shape_cast %277 : vector<1x8x128xf32> to vector<8x128xf32>
    %279 = vector.shape_cast %276 : vector<8x128xf32> to vector<1x8x128xf32>
    tpu.vector_store %arg9[%c7, %c0_60, %c0_61], %279 {strides = array<i32>} : memref<8x8x128xf32, #tpu.memory_space<vmem>>, vector<1x8x128xf32>,
    %c0_62 = arith.constant 0 : index
    %c0_63 = arith.constant 0 : index
    %280 = vector.load %arg12[%c0_62, %c0_63] : memref<8x128xf32, #tpu.memory_space<vmem>>, vector<8x128xf32>
    tpu.vector_store %arg12[%c0_62, %c0_63], %276 {strides = array<i32>} : memref<8x128xf32, #tpu.memory_space<vmem>>, vector<8x128xf32>,
    %c0_i32_64 = arith.constant 0 : i32
    %281 = arith.cmpi eq, %arg1, %c0_i32_64 : i32
    %282 = arith.extui %281 : i1 to i32
    %c0_i32_65 = arith.constant 0 : i32
    %283 = arith.cmpi ne, %282, %c0_i32_65 : i32
    scf.if %283 {
      %c0_66 = arith.constant 0 : index
      %c0_67 = arith.constant 0 : index
      %284 = vector.load %arg12[%c0_66, %c0_67] : memref<8x128xf32, #tpu.memory_space<vmem>>, vector<8x128xf32>
      %c0_68 = arith.constant 0 : index
      %c0_69 = arith.constant 0 : index
      %285 = vector.load %arg11[%c0_68, %c0_69] : memref<8x128xf32, #tpu.memory_space<vmem>>, vector<8x128xf32>
      tpu.vector_store %arg11[%c0_68, %c0_69], %284 {strides = array<i32>} : memref<8x128xf32, #tpu.memory_space<vmem>>, vector<8x128xf32>,
      %286 = arith.truncf %284 : vector<8x128xf32> to vector<8x128xbf16>
      %c0_70 = arith.constant 0 : index
      %c0_71 = arith.constant 0 : index
      %287 = vector.load %arg7[%c0_70, %c0_71] : memref<128x128xbf16, #tpu.memory_space<vmem>>, vector<128x128xbf16>
      %cst_72 = arith.constant dense<0.000000e+00> : vector<8x128xf32>
      %288 = tpu.matmul %286, %287, %cst_72 {dimension_numbers = #tpu.dot_dimension_numbers<[1], [0], [0], [1], [0, 0, 1, 1], [], []>} : vector<8x128xbf16>, vector<128x128xbf16>, vector<8x128xf32> -> vector<8x128xf32>
      %c0_73 = arith.constant 0 : index
      %c0_74 = arith.constant 0 : index
      %289 = vector.load %arg8[%c0_73, %c0_74] : memref<1x128xf32, #tpu.memory_space<vmem>>, vector<1x128xf32>
      %290 = vector.broadcast %289 : vector<1x128xf32> to vector<8x128xf32>
      %291 = arith.addf %288, %290 : vector<8x128xf32>
      %c0_75 = arith.constant 0 : index
      %c0_76 = arith.constant 0 : index
      %292 = vector.load %arg10[%c0_75, %c0_76] : memref<8x128xf32, #tpu.memory_space<vmem>>, vector<8x128xf32>
      tpu.vector_store %arg10[%c0_75, %c0_76], %291 {strides = array<i32>} : memref<8x128xf32, #tpu.memory_space<vmem>>, vector<8x128xf32>,
    } else {
    }
    return
  }
  func.func @transform_0(%arg0: i32, %arg1: i32) -> (i32, i32, i32) {
    %c0_i32 = arith.constant 0 : i32
    %c0_i32_0 = arith.constant 0 : i32
    return %arg1, %arg0, %c0_i32 : i32, i32, i32
  }
  func.func @transform_1(%arg0: i32, %arg1: i32) -> (i32, i32) {
    %c0_i32 = arith.constant 0 : i32
    %c0_i32_0 = arith.constant 0 : i32
    %c0_i32_1 = arith.constant 0 : i32
    return %c0_i32, %c0_i32_0 : i32, i32
  }
  func.func @transform_2(%arg0: i32, %arg1: i32) -> (i32, i32) {
    %c0_i32 = arith.constant 0 : i32
    %c0_i32_0 = arith.constant 0 : i32
    %c0_i32_1 = arith.constant 0 : i32
    return %c0_i32, %c0_i32_0 : i32, i32
  }
  func.func @transform_3(%arg0: i32, %arg1: i32) -> (i32, i32) {
    %c0_i32 = arith.constant 0 : i32
    %c0_i32_0 = arith.constant 0 : i32
    %c0_i32_1 = arith.constant 0 : i32
    return %c0_i32, %c0_i32_0 : i32, i32
  }
  func.func @transform_4(%arg0: i32, %arg1: i32) -> (i32, i32) {
    %c0_i32 = arith.constant 0 : i32
    %c0_i32_0 = arith.constant 0 : i32
    %c0_i32_1 = arith.constant 0 : i32
    return %c0_i32, %c0_i32_0 : i32, i32
  }
  func.func @transform_5(%arg0: i32, %arg1: i32) -> (i32, i32) {
    %c0_i32 = arith.constant 0 : i32
    %c0_i32_0 = arith.constant 0 : i32
    %c0_i32_1 = arith.constant 0 : i32
    return %c0_i32, %c0_i32_0 : i32, i32
  }
  func.func @transform_6(%arg0: i32, %arg1: i32) -> (i32, i32) {
    %c0_i32 = arith.constant 0 : i32
    %c0_i32_0 = arith.constant 0 : i32
    %c0_i32_1 = arith.constant 0 : i32
    return %c0_i32, %c0_i32_0 : i32, i32
  }
  func.func @transform_7(%arg0: i32, %arg1: i32) -> (i32, i32, i32) {
    %c0_i32 = arith.constant 0 : i32
    %c0_i32_0 = arith.constant 0 : i32
    return %arg1, %arg0, %c0_i32 : i32, i32, i32
  }
  func.func @transform_8(%arg0: i32, %arg1: i32) -> (i32, i32) {
    %c0_i32 = arith.constant 0 : i32
    %c0_i32_0 = arith.constant 0 : i32
    return %arg0, %c0_i32 : i32, i32
  }
  func.func @transform_9(%arg0: i32, %arg1: i32) -> (i32, i32) {
    %c0_i32 = arith.constant 0 : i32
    %c0_i32_0 = arith.constant 0 : i32
    return %arg0, %c0_i32 : i32, i32
  }
}

module attributes {stable_mosaic.version = 11 : i64} {
  func.func @_gru_mid_kernel(%arg0: i32, %arg1: i32, %arg2: memref<8x8x16xf32, #tpu.memory_space<vmem>>, %arg3: memref<16x384xbf16, #tpu.memory_space<vmem>>, %arg4: memref<128x384xbf16, #tpu.memory_space<vmem>>, %arg5: memref<1x384xf32, #tpu.memory_space<vmem>>, %arg6: memref<1x128xf32, #tpu.memory_space<vmem>>, %arg7: memref<8x8x128xf32, #tpu.memory_space<vmem>>, %arg8: memref<8x128xf32, #tpu.memory_space<vmem>>) attributes {dimension_semantics = [#tpu.dimension_semantics<parallel>, #tpu.dimension_semantics<arbitrary>], iteration_bounds = array<i64: 1, 1>, scalar_prefetch = 0 : i64, scratch_operands = 1 : i64, tpu.core_type = #tpu.core_type<tc>, window_params = [{transform_indices = @transform_0, window_bounds = array<i64: 8, 8, 16>}, {pipeline_mode = #tpu.pipeline_mode<synchronous>, transform_indices = @transform_1, window_bounds = array<i64: 16, 384>}, {pipeline_mode = #tpu.pipeline_mode<synchronous>, transform_indices = @transform_2, window_bounds = array<i64: 128, 384>}, {pipeline_mode = #tpu.pipeline_mode<synchronous>, transform_indices = @transform_3, window_bounds = array<i64: 1, 384>}, {pipeline_mode = #tpu.pipeline_mode<synchronous>, transform_indices = @transform_4, window_bounds = array<i64: 1, 128>}, {transform_indices = @transform_5, window_bounds = array<i64: 8, 8, 128>}]} {
    %c0_i32 = arith.constant 0 : i32
    %0 = arith.cmpi eq, %arg1, %c0_i32 : i32
    %1 = arith.extui %0 : i1 to i32
    %c0_i32_0 = arith.constant 0 : i32
    %2 = arith.cmpi ne, %1, %c0_i32_0 : i32
    scf.if %2 {
      %cst_64 = arith.constant 0.000000e+00 : f32
      %281 = vector.broadcast %cst_64 : f32 to vector<8x128xf32>
      %c0_65 = arith.constant 0 : index
      %c0_66 = arith.constant 0 : index
      %282 = vector.load %arg8[%c0_65, %c0_66] : memref<8x128xf32, #tpu.memory_space<vmem>>, vector<8x128xf32>
      tpu.vector_store %arg8[%c0_65, %c0_66], %281 {strides = array<i32>} : memref<8x128xf32, #tpu.memory_space<vmem>>, vector<8x128xf32>,
    } else {
    }
    %c0 = arith.constant 0 : index
    %c0_1 = arith.constant 0 : index
    %c0_2 = arith.constant 0 : index
    %3 = vector.load %arg2[%c0, %c0_1, %c0_2] : memref<8x8x16xf32, #tpu.memory_space<vmem>>, vector<8x8x16xf32>
    %4 = vector.shape_cast %3 : vector<8x8x16xf32> to vector<64x16xf32>
    %5 = arith.truncf %4 : vector<64x16xf32> to vector<64x16xbf16>
    %c0_3 = arith.constant 0 : index
    %c0_4 = arith.constant 0 : index
    %6 = vector.load %arg3[%c0_3, %c0_4] : memref<16x384xbf16, #tpu.memory_space<vmem>>, vector<16x384xbf16>
    %cst = arith.constant dense<0.000000e+00> : vector<64x384xf32>
    %7 = tpu.matmul %5, %6, %cst {dimension_numbers = #tpu.dot_dimension_numbers<[1], [0], [0], [1], [0, 0, 1, 1], [], []>} : vector<64x16xbf16>, vector<16x384xbf16>, vector<64x384xf32> -> vector<64x384xf32>
    %c0_5 = arith.constant 0 : index
    %c0_6 = arith.constant 0 : index
    %8 = vector.load %arg5[%c0_5, %c0_6] : memref<1x384xf32, #tpu.memory_space<vmem>>, vector<1x384xf32>
    %9 = vector.broadcast %8 : vector<1x384xf32> to vector<64x384xf32>
    %10 = arith.addf %7, %9 : vector<64x384xf32>
    %c0_7 = arith.constant 0 : index
    %c0_8 = arith.constant 0 : index
    %11 = vector.load %arg4[%c0_7, %c0_8] : memref<128x384xbf16, #tpu.memory_space<vmem>>, vector<128x384xbf16>
    %c0_9 = arith.constant 0 : index
    %c0_10 = arith.constant 0 : index
    %12 = vector.load %arg6[%c0_9, %c0_10] : memref<1x128xf32, #tpu.memory_space<vmem>>, vector<1x128xf32>
    %13 = vector.shape_cast %12 : vector<1x128xf32> to vector<1x128xf32>
    %14 = vector.broadcast %13 : vector<1x128xf32> to vector<8x128xf32>
    %c0_11 = arith.constant 0 : index
    %c0_12 = arith.constant 0 : index
    %15 = vector.load %arg8[%c0_11, %c0_12] : memref<8x128xf32, #tpu.memory_space<vmem>>, vector<8x128xf32>
    %16 = vector.extract_strided_slice %10 {offsets = [0, 0], sizes = [8, 384], strides = [1, 1]} : vector<64x384xf32> to vector<8x384xf32>
    %17 = arith.truncf %15 : vector<8x128xf32> to vector<8x128xbf16>
    %cst_13 = arith.constant dense<0.000000e+00> : vector<8x384xf32>
    %18 = tpu.matmul %17, %11, %cst_13 {dimension_numbers = #tpu.dot_dimension_numbers<[1], [0], [0], [1], [0, 0, 1, 1], [], []>} : vector<8x128xbf16>, vector<128x384xbf16>, vector<8x384xf32> -> vector<8x384xf32>
    %19 = vector.extract_strided_slice %16 {offsets = [0, 0], sizes = [8, 128], strides = [1, 1]} : vector<8x384xf32> to vector<8x128xf32>
    %20 = vector.extract_strided_slice %18 {offsets = [0, 0], sizes = [8, 128], strides = [1, 1]} : vector<8x384xf32> to vector<8x128xf32>
    %21 = arith.addf %19, %20 : vector<8x128xf32>
    %22 = arith.negf %21 : vector<8x128xf32>
    %23 = math.exp %22 : vector<8x128xf32>
    %cst_14 = arith.constant 1.000000e+00 : f32
    %24 = vector.broadcast %cst_14 : f32 to vector<8x128xf32>
    %25 = arith.addf %24, %23 : vector<8x128xf32>
    %26 = arith.divf %24, %25 : vector<8x128xf32>
    %27 = vector.extract_strided_slice %16 {offsets = [0, 128], sizes = [8, 128], strides = [1, 1]} : vector<8x384xf32> to vector<8x128xf32>
    %28 = vector.extract_strided_slice %18 {offsets = [0, 128], sizes = [8, 128], strides = [1, 1]} : vector<8x384xf32> to vector<8x128xf32>
    %29 = arith.addf %27, %28 : vector<8x128xf32>
    %30 = arith.negf %29 : vector<8x128xf32>
    %31 = math.exp %30 : vector<8x128xf32>
    %cst_15 = arith.constant 1.000000e+00 : f32
    %32 = vector.broadcast %cst_15 : f32 to vector<8x128xf32>
    %33 = arith.addf %32, %31 : vector<8x128xf32>
    %34 = arith.divf %32, %33 : vector<8x128xf32>
    %35 = vector.extract_strided_slice %16 {offsets = [0, 256], sizes = [8, 128], strides = [1, 1]} : vector<8x384xf32> to vector<8x128xf32>
    %36 = vector.extract_strided_slice %18 {offsets = [0, 256], sizes = [8, 128], strides = [1, 1]} : vector<8x384xf32> to vector<8x128xf32>
    %37 = arith.addf %36, %14 : vector<8x128xf32>
    %38 = arith.mulf %26, %37 : vector<8x128xf32>
    %39 = arith.addf %35, %38 : vector<8x128xf32>
    %40 = math.tanh %39 : vector<8x128xf32>
    %cst_16 = arith.constant 1.000000e+00 : f32
    %41 = vector.broadcast %cst_16 : f32 to vector<8x128xf32>
    %42 = arith.subf %41, %34 : vector<8x128xf32>
    %43 = arith.mulf %42, %40 : vector<8x128xf32>
    %44 = arith.mulf %34, %15 : vector<8x128xf32>
    %45 = arith.addf %43, %44 : vector<8x128xf32>
    %c0_17 = arith.constant 0 : index
    %c0_18 = arith.constant 0 : index
    %c0_19 = arith.constant 0 : index
    %46 = vector.load %arg7[%c0_17, %c0_18, %c0_19] : memref<8x8x128xf32, #tpu.memory_space<vmem>>, vector<1x8x128xf32>
    %47 = vector.shape_cast %46 : vector<1x8x128xf32> to vector<8x128xf32>
    %48 = vector.shape_cast %45 : vector<8x128xf32> to vector<1x8x128xf32>
    tpu.vector_store %arg7[%c0_17, %c0_18, %c0_19], %48 {strides = array<i32>} : memref<8x8x128xf32, #tpu.memory_space<vmem>>, vector<1x8x128xf32>,
    %49 = vector.extract_strided_slice %10 {offsets = [8, 0], sizes = [8, 384], strides = [1, 1]} : vector<64x384xf32> to vector<8x384xf32>
    %50 = arith.truncf %45 : vector<8x128xf32> to vector<8x128xbf16>
    %cst_20 = arith.constant dense<0.000000e+00> : vector<8x384xf32>
    %51 = tpu.matmul %50, %11, %cst_20 {dimension_numbers = #tpu.dot_dimension_numbers<[1], [0], [0], [1], [0, 0, 1, 1], [], []>} : vector<8x128xbf16>, vector<128x384xbf16>, vector<8x384xf32> -> vector<8x384xf32>
    %52 = vector.extract_strided_slice %49 {offsets = [0, 0], sizes = [8, 128], strides = [1, 1]} : vector<8x384xf32> to vector<8x128xf32>
    %53 = vector.extract_strided_slice %51 {offsets = [0, 0], sizes = [8, 128], strides = [1, 1]} : vector<8x384xf32> to vector<8x128xf32>
    %54 = arith.addf %52, %53 : vector<8x128xf32>
    %55 = arith.negf %54 : vector<8x128xf32>
    %56 = math.exp %55 : vector<8x128xf32>
    %cst_21 = arith.constant 1.000000e+00 : f32
    %57 = vector.broadcast %cst_21 : f32 to vector<8x128xf32>
    %58 = arith.addf %57, %56 : vector<8x128xf32>
    %59 = arith.divf %57, %58 : vector<8x128xf32>
    %60 = vector.extract_strided_slice %49 {offsets = [0, 128], sizes = [8, 128], strides = [1, 1]} : vector<8x384xf32> to vector<8x128xf32>
    %61 = vector.extract_strided_slice %51 {offsets = [0, 128], sizes = [8, 128], strides = [1, 1]} : vector<8x384xf32> to vector<8x128xf32>
    %62 = arith.addf %60, %61 : vector<8x128xf32>
    %63 = arith.negf %62 : vector<8x128xf32>
    %64 = math.exp %63 : vector<8x128xf32>
    %cst_22 = arith.constant 1.000000e+00 : f32
    %65 = vector.broadcast %cst_22 : f32 to vector<8x128xf32>
    %66 = arith.addf %65, %64 : vector<8x128xf32>
    %67 = arith.divf %65, %66 : vector<8x128xf32>
    %68 = vector.extract_strided_slice %49 {offsets = [0, 256], sizes = [8, 128], strides = [1, 1]} : vector<8x384xf32> to vector<8x128xf32>
    %69 = vector.extract_strided_slice %51 {offsets = [0, 256], sizes = [8, 128], strides = [1, 1]} : vector<8x384xf32> to vector<8x128xf32>
    %70 = arith.addf %69, %14 : vector<8x128xf32>
    %71 = arith.mulf %59, %70 : vector<8x128xf32>
    %72 = arith.addf %68, %71 : vector<8x128xf32>
    %73 = math.tanh %72 : vector<8x128xf32>
    %cst_23 = arith.constant 1.000000e+00 : f32
    %74 = vector.broadcast %cst_23 : f32 to vector<8x128xf32>
    %75 = arith.subf %74, %67 : vector<8x128xf32>
    %76 = arith.mulf %75, %73 : vector<8x128xf32>
    %77 = arith.mulf %67, %45 : vector<8x128xf32>
    %78 = arith.addf %76, %77 : vector<8x128xf32>
    %c1 = arith.constant 1 : index
    %c0_24 = arith.constant 0 : index
    %c0_25 = arith.constant 0 : index
    %79 = vector.load %arg7[%c1, %c0_24, %c0_25] : memref<8x8x128xf32, #tpu.memory_space<vmem>>, vector<1x8x128xf32>
    %80 = vector.shape_cast %79 : vector<1x8x128xf32> to vector<8x128xf32>
    %81 = vector.shape_cast %78 : vector<8x128xf32> to vector<1x8x128xf32>
    tpu.vector_store %arg7[%c1, %c0_24, %c0_25], %81 {strides = array<i32>} : memref<8x8x128xf32, #tpu.memory_space<vmem>>, vector<1x8x128xf32>,
    %82 = vector.extract_strided_slice %10 {offsets = [16, 0], sizes = [8, 384], strides = [1, 1]} : vector<64x384xf32> to vector<8x384xf32>
    %83 = arith.truncf %78 : vector<8x128xf32> to vector<8x128xbf16>
    %cst_26 = arith.constant dense<0.000000e+00> : vector<8x384xf32>
    %84 = tpu.matmul %83, %11, %cst_26 {dimension_numbers = #tpu.dot_dimension_numbers<[1], [0], [0], [1], [0, 0, 1, 1], [], []>} : vector<8x128xbf16>, vector<128x384xbf16>, vector<8x384xf32> -> vector<8x384xf32>
    %85 = vector.extract_strided_slice %82 {offsets = [0, 0], sizes = [8, 128], strides = [1, 1]} : vector<8x384xf32> to vector<8x128xf32>
    %86 = vector.extract_strided_slice %84 {offsets = [0, 0], sizes = [8, 128], strides = [1, 1]} : vector<8x384xf32> to vector<8x128xf32>
    %87 = arith.addf %85, %86 : vector<8x128xf32>
    %88 = arith.negf %87 : vector<8x128xf32>
    %89 = math.exp %88 : vector<8x128xf32>
    %cst_27 = arith.constant 1.000000e+00 : f32
    %90 = vector.broadcast %cst_27 : f32 to vector<8x128xf32>
    %91 = arith.addf %90, %89 : vector<8x128xf32>
    %92 = arith.divf %90, %91 : vector<8x128xf32>
    %93 = vector.extract_strided_slice %82 {offsets = [0, 128], sizes = [8, 128], strides = [1, 1]} : vector<8x384xf32> to vector<8x128xf32>
    %94 = vector.extract_strided_slice %84 {offsets = [0, 128], sizes = [8, 128], strides = [1, 1]} : vector<8x384xf32> to vector<8x128xf32>
    %95 = arith.addf %93, %94 : vector<8x128xf32>
    %96 = arith.negf %95 : vector<8x128xf32>
    %97 = math.exp %96 : vector<8x128xf32>
    %cst_28 = arith.constant 1.000000e+00 : f32
    %98 = vector.broadcast %cst_28 : f32 to vector<8x128xf32>
    %99 = arith.addf %98, %97 : vector<8x128xf32>
    %100 = arith.divf %98, %99 : vector<8x128xf32>
    %101 = vector.extract_strided_slice %82 {offsets = [0, 256], sizes = [8, 128], strides = [1, 1]} : vector<8x384xf32> to vector<8x128xf32>
    %102 = vector.extract_strided_slice %84 {offsets = [0, 256], sizes = [8, 128], strides = [1, 1]} : vector<8x384xf32> to vector<8x128xf32>
    %103 = arith.addf %102, %14 : vector<8x128xf32>
    %104 = arith.mulf %92, %103 : vector<8x128xf32>
    %105 = arith.addf %101, %104 : vector<8x128xf32>
    %106 = math.tanh %105 : vector<8x128xf32>
    %cst_29 = arith.constant 1.000000e+00 : f32
    %107 = vector.broadcast %cst_29 : f32 to vector<8x128xf32>
    %108 = arith.subf %107, %100 : vector<8x128xf32>
    %109 = arith.mulf %108, %106 : vector<8x128xf32>
    %110 = arith.mulf %100, %78 : vector<8x128xf32>
    %111 = arith.addf %109, %110 : vector<8x128xf32>
    %c2 = arith.constant 2 : index
    %c0_30 = arith.constant 0 : index
    %c0_31 = arith.constant 0 : index
    %112 = vector.load %arg7[%c2, %c0_30, %c0_31] : memref<8x8x128xf32, #tpu.memory_space<vmem>>, vector<1x8x128xf32>
    %113 = vector.shape_cast %112 : vector<1x8x128xf32> to vector<8x128xf32>
    %114 = vector.shape_cast %111 : vector<8x128xf32> to vector<1x8x128xf32>
    tpu.vector_store %arg7[%c2, %c0_30, %c0_31], %114 {strides = array<i32>} : memref<8x8x128xf32, #tpu.memory_space<vmem>>, vector<1x8x128xf32>,
    %115 = vector.extract_strided_slice %10 {offsets = [24, 0], sizes = [8, 384], strides = [1, 1]} : vector<64x384xf32> to vector<8x384xf32>
    %116 = arith.truncf %111 : vector<8x128xf32> to vector<8x128xbf16>
    %cst_32 = arith.constant dense<0.000000e+00> : vector<8x384xf32>
    %117 = tpu.matmul %116, %11, %cst_32 {dimension_numbers = #tpu.dot_dimension_numbers<[1], [0], [0], [1], [0, 0, 1, 1], [], []>} : vector<8x128xbf16>, vector<128x384xbf16>, vector<8x384xf32> -> vector<8x384xf32>
    %118 = vector.extract_strided_slice %115 {offsets = [0, 0], sizes = [8, 128], strides = [1, 1]} : vector<8x384xf32> to vector<8x128xf32>
    %119 = vector.extract_strided_slice %117 {offsets = [0, 0], sizes = [8, 128], strides = [1, 1]} : vector<8x384xf32> to vector<8x128xf32>
    %120 = arith.addf %118, %119 : vector<8x128xf32>
    %121 = arith.negf %120 : vector<8x128xf32>
    %122 = math.exp %121 : vector<8x128xf32>
    %cst_33 = arith.constant 1.000000e+00 : f32
    %123 = vector.broadcast %cst_33 : f32 to vector<8x128xf32>
    %124 = arith.addf %123, %122 : vector<8x128xf32>
    %125 = arith.divf %123, %124 : vector<8x128xf32>
    %126 = vector.extract_strided_slice %115 {offsets = [0, 128], sizes = [8, 128], strides = [1, 1]} : vector<8x384xf32> to vector<8x128xf32>
    %127 = vector.extract_strided_slice %117 {offsets = [0, 128], sizes = [8, 128], strides = [1, 1]} : vector<8x384xf32> to vector<8x128xf32>
    %128 = arith.addf %126, %127 : vector<8x128xf32>
    %129 = arith.negf %128 : vector<8x128xf32>
    %130 = math.exp %129 : vector<8x128xf32>
    %cst_34 = arith.constant 1.000000e+00 : f32
    %131 = vector.broadcast %cst_34 : f32 to vector<8x128xf32>
    %132 = arith.addf %131, %130 : vector<8x128xf32>
    %133 = arith.divf %131, %132 : vector<8x128xf32>
    %134 = vector.extract_strided_slice %115 {offsets = [0, 256], sizes = [8, 128], strides = [1, 1]} : vector<8x384xf32> to vector<8x128xf32>
    %135 = vector.extract_strided_slice %117 {offsets = [0, 256], sizes = [8, 128], strides = [1, 1]} : vector<8x384xf32> to vector<8x128xf32>
    %136 = arith.addf %135, %14 : vector<8x128xf32>
    %137 = arith.mulf %125, %136 : vector<8x128xf32>
    %138 = arith.addf %134, %137 : vector<8x128xf32>
    %139 = math.tanh %138 : vector<8x128xf32>
    %cst_35 = arith.constant 1.000000e+00 : f32
    %140 = vector.broadcast %cst_35 : f32 to vector<8x128xf32>
    %141 = arith.subf %140, %133 : vector<8x128xf32>
    %142 = arith.mulf %141, %139 : vector<8x128xf32>
    %143 = arith.mulf %133, %111 : vector<8x128xf32>
    %144 = arith.addf %142, %143 : vector<8x128xf32>
    %c3 = arith.constant 3 : index
    %c0_36 = arith.constant 0 : index
    %c0_37 = arith.constant 0 : index
    %145 = vector.load %arg7[%c3, %c0_36, %c0_37] : memref<8x8x128xf32, #tpu.memory_space<vmem>>, vector<1x8x128xf32>
    %146 = vector.shape_cast %145 : vector<1x8x128xf32> to vector<8x128xf32>
    %147 = vector.shape_cast %144 : vector<8x128xf32> to vector<1x8x128xf32>
    tpu.vector_store %arg7[%c3, %c0_36, %c0_37], %147 {strides = array<i32>} : memref<8x8x128xf32, #tpu.memory_space<vmem>>, vector<1x8x128xf32>,
    %148 = vector.extract_strided_slice %10 {offsets = [32, 0], sizes = [8, 384], strides = [1, 1]} : vector<64x384xf32> to vector<8x384xf32>
    %149 = arith.truncf %144 : vector<8x128xf32> to vector<8x128xbf16>
    %cst_38 = arith.constant dense<0.000000e+00> : vector<8x384xf32>
    %150 = tpu.matmul %149, %11, %cst_38 {dimension_numbers = #tpu.dot_dimension_numbers<[1], [0], [0], [1], [0, 0, 1, 1], [], []>} : vector<8x128xbf16>, vector<128x384xbf16>, vector<8x384xf32> -> vector<8x384xf32>
    %151 = vector.extract_strided_slice %148 {offsets = [0, 0], sizes = [8, 128], strides = [1, 1]} : vector<8x384xf32> to vector<8x128xf32>
    %152 = vector.extract_strided_slice %150 {offsets = [0, 0], sizes = [8, 128], strides = [1, 1]} : vector<8x384xf32> to vector<8x128xf32>
    %153 = arith.addf %151, %152 : vector<8x128xf32>
    %154 = arith.negf %153 : vector<8x128xf32>
    %155 = math.exp %154 : vector<8x128xf32>
    %cst_39 = arith.constant 1.000000e+00 : f32
    %156 = vector.broadcast %cst_39 : f32 to vector<8x128xf32>
    %157 = arith.addf %156, %155 : vector<8x128xf32>
    %158 = arith.divf %156, %157 : vector<8x128xf32>
    %159 = vector.extract_strided_slice %148 {offsets = [0, 128], sizes = [8, 128], strides = [1, 1]} : vector<8x384xf32> to vector<8x128xf32>
    %160 = vector.extract_strided_slice %150 {offsets = [0, 128], sizes = [8, 128], strides = [1, 1]} : vector<8x384xf32> to vector<8x128xf32>
    %161 = arith.addf %159, %160 : vector<8x128xf32>
    %162 = arith.negf %161 : vector<8x128xf32>
    %163 = math.exp %162 : vector<8x128xf32>
    %cst_40 = arith.constant 1.000000e+00 : f32
    %164 = vector.broadcast %cst_40 : f32 to vector<8x128xf32>
    %165 = arith.addf %164, %163 : vector<8x128xf32>
    %166 = arith.divf %164, %165 : vector<8x128xf32>
    %167 = vector.extract_strided_slice %148 {offsets = [0, 256], sizes = [8, 128], strides = [1, 1]} : vector<8x384xf32> to vector<8x128xf32>
    %168 = vector.extract_strided_slice %150 {offsets = [0, 256], sizes = [8, 128], strides = [1, 1]} : vector<8x384xf32> to vector<8x128xf32>
    %169 = arith.addf %168, %14 : vector<8x128xf32>
    %170 = arith.mulf %158, %169 : vector<8x128xf32>
    %171 = arith.addf %167, %170 : vector<8x128xf32>
    %172 = math.tanh %171 : vector<8x128xf32>
    %cst_41 = arith.constant 1.000000e+00 : f32
    %173 = vector.broadcast %cst_41 : f32 to vector<8x128xf32>
    %174 = arith.subf %173, %166 : vector<8x128xf32>
    %175 = arith.mulf %174, %172 : vector<8x128xf32>
    %176 = arith.mulf %166, %144 : vector<8x128xf32>
    %177 = arith.addf %175, %176 : vector<8x128xf32>
    %c4 = arith.constant 4 : index
    %c0_42 = arith.constant 0 : index
    %c0_43 = arith.constant 0 : index
    %178 = vector.load %arg7[%c4, %c0_42, %c0_43] : memref<8x8x128xf32, #tpu.memory_space<vmem>>, vector<1x8x128xf32>
    %179 = vector.shape_cast %178 : vector<1x8x128xf32> to vector<8x128xf32>
    %180 = vector.shape_cast %177 : vector<8x128xf32> to vector<1x8x128xf32>
    tpu.vector_store %arg7[%c4, %c0_42, %c0_43], %180 {strides = array<i32>} : memref<8x8x128xf32, #tpu.memory_space<vmem>>, vector<1x8x128xf32>,
    %181 = vector.extract_strided_slice %10 {offsets = [40, 0], sizes = [8, 384], strides = [1, 1]} : vector<64x384xf32> to vector<8x384xf32>
    %182 = arith.truncf %177 : vector<8x128xf32> to vector<8x128xbf16>
    %cst_44 = arith.constant dense<0.000000e+00> : vector<8x384xf32>
    %183 = tpu.matmul %182, %11, %cst_44 {dimension_numbers = #tpu.dot_dimension_numbers<[1], [0], [0], [1], [0, 0, 1, 1], [], []>} : vector<8x128xbf16>, vector<128x384xbf16>, vector<8x384xf32> -> vector<8x384xf32>
    %184 = vector.extract_strided_slice %181 {offsets = [0, 0], sizes = [8, 128], strides = [1, 1]} : vector<8x384xf32> to vector<8x128xf32>
    %185 = vector.extract_strided_slice %183 {offsets = [0, 0], sizes = [8, 128], strides = [1, 1]} : vector<8x384xf32> to vector<8x128xf32>
    %186 = arith.addf %184, %185 : vector<8x128xf32>
    %187 = arith.negf %186 : vector<8x128xf32>
    %188 = math.exp %187 : vector<8x128xf32>
    %cst_45 = arith.constant 1.000000e+00 : f32
    %189 = vector.broadcast %cst_45 : f32 to vector<8x128xf32>
    %190 = arith.addf %189, %188 : vector<8x128xf32>
    %191 = arith.divf %189, %190 : vector<8x128xf32>
    %192 = vector.extract_strided_slice %181 {offsets = [0, 128], sizes = [8, 128], strides = [1, 1]} : vector<8x384xf32> to vector<8x128xf32>
    %193 = vector.extract_strided_slice %183 {offsets = [0, 128], sizes = [8, 128], strides = [1, 1]} : vector<8x384xf32> to vector<8x128xf32>
    %194 = arith.addf %192, %193 : vector<8x128xf32>
    %195 = arith.negf %194 : vector<8x128xf32>
    %196 = math.exp %195 : vector<8x128xf32>
    %cst_46 = arith.constant 1.000000e+00 : f32
    %197 = vector.broadcast %cst_46 : f32 to vector<8x128xf32>
    %198 = arith.addf %197, %196 : vector<8x128xf32>
    %199 = arith.divf %197, %198 : vector<8x128xf32>
    %200 = vector.extract_strided_slice %181 {offsets = [0, 256], sizes = [8, 128], strides = [1, 1]} : vector<8x384xf32> to vector<8x128xf32>
    %201 = vector.extract_strided_slice %183 {offsets = [0, 256], sizes = [8, 128], strides = [1, 1]} : vector<8x384xf32> to vector<8x128xf32>
    %202 = arith.addf %201, %14 : vector<8x128xf32>
    %203 = arith.mulf %191, %202 : vector<8x128xf32>
    %204 = arith.addf %200, %203 : vector<8x128xf32>
    %205 = math.tanh %204 : vector<8x128xf32>
    %cst_47 = arith.constant 1.000000e+00 : f32
    %206 = vector.broadcast %cst_47 : f32 to vector<8x128xf32>
    %207 = arith.subf %206, %199 : vector<8x128xf32>
    %208 = arith.mulf %207, %205 : vector<8x128xf32>
    %209 = arith.mulf %199, %177 : vector<8x128xf32>
    %210 = arith.addf %208, %209 : vector<8x128xf32>
    %c5 = arith.constant 5 : index
    %c0_48 = arith.constant 0 : index
    %c0_49 = arith.constant 0 : index
    %211 = vector.load %arg7[%c5, %c0_48, %c0_49] : memref<8x8x128xf32, #tpu.memory_space<vmem>>, vector<1x8x128xf32>
    %212 = vector.shape_cast %211 : vector<1x8x128xf32> to vector<8x128xf32>
    %213 = vector.shape_cast %210 : vector<8x128xf32> to vector<1x8x128xf32>
    tpu.vector_store %arg7[%c5, %c0_48, %c0_49], %213 {strides = array<i32>} : memref<8x8x128xf32, #tpu.memory_space<vmem>>, vector<1x8x128xf32>,
    %214 = vector.extract_strided_slice %10 {offsets = [48, 0], sizes = [8, 384], strides = [1, 1]} : vector<64x384xf32> to vector<8x384xf32>
    %215 = arith.truncf %210 : vector<8x128xf32> to vector<8x128xbf16>
    %cst_50 = arith.constant dense<0.000000e+00> : vector<8x384xf32>
    %216 = tpu.matmul %215, %11, %cst_50 {dimension_numbers = #tpu.dot_dimension_numbers<[1], [0], [0], [1], [0, 0, 1, 1], [], []>} : vector<8x128xbf16>, vector<128x384xbf16>, vector<8x384xf32> -> vector<8x384xf32>
    %217 = vector.extract_strided_slice %214 {offsets = [0, 0], sizes = [8, 128], strides = [1, 1]} : vector<8x384xf32> to vector<8x128xf32>
    %218 = vector.extract_strided_slice %216 {offsets = [0, 0], sizes = [8, 128], strides = [1, 1]} : vector<8x384xf32> to vector<8x128xf32>
    %219 = arith.addf %217, %218 : vector<8x128xf32>
    %220 = arith.negf %219 : vector<8x128xf32>
    %221 = math.exp %220 : vector<8x128xf32>
    %cst_51 = arith.constant 1.000000e+00 : f32
    %222 = vector.broadcast %cst_51 : f32 to vector<8x128xf32>
    %223 = arith.addf %222, %221 : vector<8x128xf32>
    %224 = arith.divf %222, %223 : vector<8x128xf32>
    %225 = vector.extract_strided_slice %214 {offsets = [0, 128], sizes = [8, 128], strides = [1, 1]} : vector<8x384xf32> to vector<8x128xf32>
    %226 = vector.extract_strided_slice %216 {offsets = [0, 128], sizes = [8, 128], strides = [1, 1]} : vector<8x384xf32> to vector<8x128xf32>
    %227 = arith.addf %225, %226 : vector<8x128xf32>
    %228 = arith.negf %227 : vector<8x128xf32>
    %229 = math.exp %228 : vector<8x128xf32>
    %cst_52 = arith.constant 1.000000e+00 : f32
    %230 = vector.broadcast %cst_52 : f32 to vector<8x128xf32>
    %231 = arith.addf %230, %229 : vector<8x128xf32>
    %232 = arith.divf %230, %231 : vector<8x128xf32>
    %233 = vector.extract_strided_slice %214 {offsets = [0, 256], sizes = [8, 128], strides = [1, 1]} : vector<8x384xf32> to vector<8x128xf32>
    %234 = vector.extract_strided_slice %216 {offsets = [0, 256], sizes = [8, 128], strides = [1, 1]} : vector<8x384xf32> to vector<8x128xf32>
    %235 = arith.addf %234, %14 : vector<8x128xf32>
    %236 = arith.mulf %224, %235 : vector<8x128xf32>
    %237 = arith.addf %233, %236 : vector<8x128xf32>
    %238 = math.tanh %237 : vector<8x128xf32>
    %cst_53 = arith.constant 1.000000e+00 : f32
    %239 = vector.broadcast %cst_53 : f32 to vector<8x128xf32>
    %240 = arith.subf %239, %232 : vector<8x128xf32>
    %241 = arith.mulf %240, %238 : vector<8x128xf32>
    %242 = arith.mulf %232, %210 : vector<8x128xf32>
    %243 = arith.addf %241, %242 : vector<8x128xf32>
    %c6 = arith.constant 6 : index
    %c0_54 = arith.constant 0 : index
    %c0_55 = arith.constant 0 : index
    %244 = vector.load %arg7[%c6, %c0_54, %c0_55] : memref<8x8x128xf32, #tpu.memory_space<vmem>>, vector<1x8x128xf32>
    %245 = vector.shape_cast %244 : vector<1x8x128xf32> to vector<8x128xf32>
    %246 = vector.shape_cast %243 : vector<8x128xf32> to vector<1x8x128xf32>
    tpu.vector_store %arg7[%c6, %c0_54, %c0_55], %246 {strides = array<i32>} : memref<8x8x128xf32, #tpu.memory_space<vmem>>, vector<1x8x128xf32>,
    %247 = vector.extract_strided_slice %10 {offsets = [56, 0], sizes = [8, 384], strides = [1, 1]} : vector<64x384xf32> to vector<8x384xf32>
    %248 = arith.truncf %243 : vector<8x128xf32> to vector<8x128xbf16>
    %cst_56 = arith.constant dense<0.000000e+00> : vector<8x384xf32>
    %249 = tpu.matmul %248, %11, %cst_56 {dimension_numbers = #tpu.dot_dimension_numbers<[1], [0], [0], [1], [0, 0, 1, 1], [], []>} : vector<8x128xbf16>, vector<128x384xbf16>, vector<8x384xf32> -> vector<8x384xf32>
    %250 = vector.extract_strided_slice %247 {offsets = [0, 0], sizes = [8, 128], strides = [1, 1]} : vector<8x384xf32> to vector<8x128xf32>
    %251 = vector.extract_strided_slice %249 {offsets = [0, 0], sizes = [8, 128], strides = [1, 1]} : vector<8x384xf32> to vector<8x128xf32>
    %252 = arith.addf %250, %251 : vector<8x128xf32>
    %253 = arith.negf %252 : vector<8x128xf32>
    %254 = math.exp %253 : vector<8x128xf32>
    %cst_57 = arith.constant 1.000000e+00 : f32
    %255 = vector.broadcast %cst_57 : f32 to vector<8x128xf32>
    %256 = arith.addf %255, %254 : vector<8x128xf32>
    %257 = arith.divf %255, %256 : vector<8x128xf32>
    %258 = vector.extract_strided_slice %247 {offsets = [0, 128], sizes = [8, 128], strides = [1, 1]} : vector<8x384xf32> to vector<8x128xf32>
    %259 = vector.extract_strided_slice %249 {offsets = [0, 128], sizes = [8, 128], strides = [1, 1]} : vector<8x384xf32> to vector<8x128xf32>
    %260 = arith.addf %258, %259 : vector<8x128xf32>
    %261 = arith.negf %260 : vector<8x128xf32>
    %262 = math.exp %261 : vector<8x128xf32>
    %cst_58 = arith.constant 1.000000e+00 : f32
    %263 = vector.broadcast %cst_58 : f32 to vector<8x128xf32>
    %264 = arith.addf %263, %262 : vector<8x128xf32>
    %265 = arith.divf %263, %264 : vector<8x128xf32>
    %266 = vector.extract_strided_slice %247 {offsets = [0, 256], sizes = [8, 128], strides = [1, 1]} : vector<8x384xf32> to vector<8x128xf32>
    %267 = vector.extract_strided_slice %249 {offsets = [0, 256], sizes = [8, 128], strides = [1, 1]} : vector<8x384xf32> to vector<8x128xf32>
    %268 = arith.addf %267, %14 : vector<8x128xf32>
    %269 = arith.mulf %257, %268 : vector<8x128xf32>
    %270 = arith.addf %266, %269 : vector<8x128xf32>
    %271 = math.tanh %270 : vector<8x128xf32>
    %cst_59 = arith.constant 1.000000e+00 : f32
    %272 = vector.broadcast %cst_59 : f32 to vector<8x128xf32>
    %273 = arith.subf %272, %265 : vector<8x128xf32>
    %274 = arith.mulf %273, %271 : vector<8x128xf32>
    %275 = arith.mulf %265, %243 : vector<8x128xf32>
    %276 = arith.addf %274, %275 : vector<8x128xf32>
    %c7 = arith.constant 7 : index
    %c0_60 = arith.constant 0 : index
    %c0_61 = arith.constant 0 : index
    %277 = vector.load %arg7[%c7, %c0_60, %c0_61] : memref<8x8x128xf32, #tpu.memory_space<vmem>>, vector<1x8x128xf32>
    %278 = vector.shape_cast %277 : vector<1x8x128xf32> to vector<8x128xf32>
    %279 = vector.shape_cast %276 : vector<8x128xf32> to vector<1x8x128xf32>
    tpu.vector_store %arg7[%c7, %c0_60, %c0_61], %279 {strides = array<i32>} : memref<8x8x128xf32, #tpu.memory_space<vmem>>, vector<1x8x128xf32>,
    %c0_62 = arith.constant 0 : index
    %c0_63 = arith.constant 0 : index
    %280 = vector.load %arg8[%c0_62, %c0_63] : memref<8x128xf32, #tpu.memory_space<vmem>>, vector<8x128xf32>
    tpu.vector_store %arg8[%c0_62, %c0_63], %276 {strides = array<i32>} : memref<8x128xf32, #tpu.memory_space<vmem>>, vector<8x128xf32>,
    return
  }
  func.func @transform_0(%arg0: i32, %arg1: i32) -> (i32, i32, i32) {
    %c0_i32 = arith.constant 0 : i32
    %c0_i32_0 = arith.constant 0 : i32
    return %arg1, %arg0, %c0_i32 : i32, i32, i32
  }
  func.func @transform_1(%arg0: i32, %arg1: i32) -> (i32, i32) {
    %c0_i32 = arith.constant 0 : i32
    %c0_i32_0 = arith.constant 0 : i32
    %c0_i32_1 = arith.constant 0 : i32
    return %c0_i32, %c0_i32_0 : i32, i32
  }
  func.func @transform_2(%arg0: i32, %arg1: i32) -> (i32, i32) {
    %c0_i32 = arith.constant 0 : i32
    %c0_i32_0 = arith.constant 0 : i32
    %c0_i32_1 = arith.constant 0 : i32
    return %c0_i32, %c0_i32_0 : i32, i32
  }
  func.func @transform_3(%arg0: i32, %arg1: i32) -> (i32, i32) {
    %c0_i32 = arith.constant 0 : i32
    %c0_i32_0 = arith.constant 0 : i32
    %c0_i32_1 = arith.constant 0 : i32
    return %c0_i32, %c0_i32_0 : i32, i32
  }
  func.func @transform_4(%arg0: i32, %arg1: i32) -> (i32, i32) {
    %c0_i32 = arith.constant 0 : i32
    %c0_i32_0 = arith.constant 0 : i32
    %c0_i32_1 = arith.constant 0 : i32
    return %c0_i32, %c0_i32_0 : i32, i32
  }
  func.func @transform_5(%arg0: i32, %arg1: i32) -> (i32, i32, i32) {
    %c0_i32 = arith.constant 0 : i32
    %c0_i32_0 = arith.constant 0 : i32
    return %arg1, %arg0, %c0_i32 : i32, i32, i32
  }
}

</mosaic_0001>

<llo_original>
// kernel: forward.3
$region0: #{forward.3}
  #allocation0 [shape = 'u32[]', space=smem, size = 0x4, offset = 0x4, fixed_abs, tag = 'smem constant byte address 0x4 - core index']
  #allocation1 [shape = 'u32[144,128]{1,0:T(1,128)}', space=vmem, size = 0x12000, scoped, tag = 'internal scratch']
  #allocation2 [shape = 'f32[8,128]{1,0:T(8,128)}', space=vmem, size = 0x1000, scoped, tag = 'scratch operand']
  %s0 = inlined_call_operand.vmem [shape: f32[8,8,128], index: 0, kind: input, shape index: {}]
  %s1 = inlined_call_operand.vmem [shape: bf16[128,384], index: 1, kind: input, shape index: {}]
  %s2 = inlined_call_operand.vmem [shape: bf16[128,384], index: 2, kind: input, shape index: {}]
  %s3 = inlined_call_operand.vmem [shape: f32[1,384], index: 3, kind: input, shape index: {}]
  %s4 = inlined_call_operand.vmem [shape: f32[1,128], index: 4, kind: input, shape index: {}]
  %s5 = inlined_call_operand.vmem [shape: bf16[128,128], index: 5, kind: input, shape index: {}]
  %s6 = inlined_call_operand.vmem [shape: f32[1,128], index: 6, kind: input, shape index: {}]
  %s7 = inlined_call_operand.vmem [shape: f32[8,8,128], index: 7, kind: output, shape index: {0}]
  %s8 = inlined_call_operand.vmem [shape: f32[8,128], index: 8, kind: output, shape index: {1}]
  %s9 = inlined_call_operand.vmem [shape: f32[8,128], index: 9, kind: output, shape index: {2}]
  %10 = xla_tuple %s7, %s8, %s9
  %s11 = sld [smem:[#allocation0]]
  $region62: #{forward.3} parent=0
    _
  %s13 = ssub.s32 1, %s11
  %s14 = scalar_select 0, %s13, %s11
  // Predicated region
  $region2: #{forward.3} parent=0 // pred_check
    _
  $region3: #{forward.3} parent=0 // pred_check_branch
    %16 = sbr.rel (0) target = $region5
  $region4: #{forward.3} parent=0 // pred_region
    _
  $region5: #{forward.3} parent=0 // pred_fallthru
    _
  // Predicated region
  $region6: #{forward.3} parent=0 // pred_check
    _
  $region7: #{forward.3} parent=0 // pred_check_branch
    %18 = sbr.rel (0) target = $region9
  $region8: #{forward.3} parent=0 // pred_region
    _
  $region9: #{forward.3} parent=0 // pred_fallthru
    _
  // Predicated region
  $region10: #{forward.3} parent=0 // pred_check
    _
  $region11: #{forward.3} parent=0 // pred_check_branch
    %20 = sbr.rel (0) target = $region13
  $region12: #{forward.3} parent=0 // pred_region
    _
  $region13: #{forward.3} parent=0 // pred_fallthru
    _
  // Predicated region
  $region14: #{forward.3} parent=0 // pred_check
    _
  $region15: #{forward.3} parent=0 // pred_check_branch
    %22 = sbr.rel (0) target = $region17
  $region16: #{forward.3} parent=0 // pred_region
    _
  $region17: #{forward.3} parent=0 // pred_fallthru
    _
  // Predicated region
  $region18: #{forward.3} parent=0 // pred_check
    _
  $region19: #{forward.3} parent=0 // pred_check_branch
    %24 = sbr.rel (0) target = $region21
  $region20: #{forward.3} parent=0 // pred_region
    _
  $region21: #{forward.3} parent=0 // pred_fallthru
    _
  // Predicated region
  $region22: #{forward.3} parent=0 // pred_check
    _
  $region23: #{forward.3} parent=0 // pred_check_branch
    %26 = sbr.rel (0) target = $region25
  $region24: #{forward.3} parent=0 // pred_region
    _
  $region25: #{forward.3} parent=0 // pred_fallthru
    _
  // Predicated region
  $region26: #{forward.3} parent=0 // pred_check
    _
  $region27: #{forward.3} parent=0 // pred_check_branch
    %28 = sbr.rel (0) target = $region29
  $region28: #{forward.3} parent=0 // pred_region
    _
  $region29: #{forward.3} parent=0 // pred_fallthru
    _
  %p30 = scmp.eq.s32.totalorder 0, 0
  // Predicated region
  $region30: #{forward.3} parent=0 // pred_check
    %p31 = pneg %p30
  $region31: #{forward.3} parent=0 // pred_check_branch
    %33 = sbr.rel (%p31) target = $region33
  $region32: #{forward.3} parent=0 // pred_region
    %34 = vst [vmem:[#allocation2] sm:$0xff] 0.0
  $region33: #{forward.3} parent=0 // pred_fallthru
    _
  %v35 = vld [vmem:[%s0] sm:$0xff]
  %v36 = vld [vmem:[%s0 + $0x8] sm:$0xff]
  %v37 = vld [vmem:[%s0 + $0x10] sm:$0xff]
  %v38 = vld [vmem:[%s0 + $0x18] sm:$0xff]
  %v39 = vld [vmem:[%s0 + $0x20] sm:$0xff]
  %v40 = vld [vmem:[%s0 + $0x28] sm:$0xff]
  %v41 = vld [vmem:[%s0 + $0x30] sm:$0xff]
  %v42 = vld [vmem:[%s0 + $0x38] sm:$0xff]
  %v43 = vpack.c.bf16 %v36, %v35
  %v44 = vpack.c.bf16 %v38, %v37
  %v45 = vpack.c.bf16 %v40, %v39
  %v46 = vpack.c.bf16 %v42, %v41
  %v47 = vld [vmem:[%s1] sm:$0xff]
  %v48 = vld [vmem:[%s1 + $0x8] sm:$0xf]
  %v49 = vld [vmem:[%s1 + $0xc] sm:$0xff]
  %v50 = vld [vmem:[%s1 + $0x14] sm:$0xf]
  %v51 = vld [vmem:[%s1 + $0x18] sm:$0xff]
  %v52 = vld [vmem:[%s1 + $0x20] sm:$0xf]
  %v53 = vld [vmem:[%s1 + $0x24] sm:$0xff]
  %v54 = vld [vmem:[%s1 + $0x2c] sm:$0xf]
  %v55 = vld [vmem:[%s1 + $0x30] sm:$0xff]
  %v56 = vld [vmem:[%s1 + $0x38] sm:$0xf]
  %v57 = vld [vmem:[%s1 + $0x3c] sm:$0xff]
  %v58 = vld [vmem:[%s1 + $0x44] sm:$0xf]
  %v59 = vld [vmem:[%s1 + $0x48] sm:$0xff]
  %v60 = vld [vmem:[%s1 + $0x50] sm:$0xf]
  %v61 = vld [vmem:[%s1 + $0x54] sm:$0xff]
  %v62 = vld [vmem:[%s1 + $0x5c] sm:$0xf]
  %v63 = vld [vmem:[%s1 + $0x60] sm:$0xff]
  %v64 = vld [vmem:[%s1 + $0x68] sm:$0xf]
  %v65 = vld [vmem:[%s1 + $0x6c] sm:$0xff]
  %v66 = vld [vmem:[%s1 + $0x74] sm:$0xf]
  %v67 = vld [vmem:[%s1 + $0x78] sm:$0xff]
  %v68 = vld [vmem:[%s1 + $0x80] sm:$0xf]
  %v69 = vld [vmem:[%s1 + $0x84] sm:$0xff]
  %v70 = vld [vmem:[%s1 + $0x8c] sm:$0xf]
  %v71 = vld [vmem:[%s1 + $0x90] sm:$0xff]
  %v72 = vld [vmem:[%s1 + $0x98] sm:$0xf]
  %v73 = vld [vmem:[%s1 + $0x9c] sm:$0xff]
  %v74 = vld [vmem:[%s1 + $0xa4] sm:$0xf]
  %v75 = vld [vmem:[%s1 + $0xa8] sm:$0xff]
  %v76 = vld [vmem:[%s1 + $0xb0] sm:$0xf]
  %v77 = vld [vmem:[%s1 + $0xb4] sm:$0xff]
  %v78 = vld [vmem:[%s1 + $0xbc] sm:$0xf]
  %v79 = vld [vmem:[%s3] sm:$0x7]
  %v81 = vlaneseq
  %v82 = vshrl.u32 %v81, 7
  %v83 = vsub.s32 0, %v82
  %v84 = vrot.slane %v79, %v83
  %v85 = vlaneseq
  %v86 = vshrl.u32 %v85, 7
  %v87 = vsub.s32 1, %v86
  %v88 = vrot.slane %v79, %v87
  %v89 = vlaneseq
  %v90 = vshrl.u32 %v89, 7
  %v91 = vsub.s32 2, %v90
  %v92 = vrot.slane %v79, %v91
  %v128 = vunpack.c.l.b16 %v47
  %v129 = vunpack.c.h.b16 %v47
  %v130 = vunpack.c.l.b16 %v48
  %v131 = vunpack.c.l.b16 %v49
  %v132 = vunpack.c.h.b16 %v49
  %v133 = vunpack.c.l.b16 %v50
  %v134 = vunpack.c.l.b16 %v51
  %v135 = vunpack.c.h.b16 %v51
  %v136 = vunpack.c.l.b16 %v52
  %v137 = vunpack.c.l.b16 %v53
  %v138 = vunpack.c.h.b16 %v53
  %v139 = vunpack.c.l.b16 %v54
  %v140 = vunpack.c.l.b16 %v55
  %v141 = vunpack.c.h.b16 %v55
  %v142 = vunpack.c.l.b16 %v56
  %v143 = vunpack.c.l.b16 %v57
  %v144 = vunpack.c.h.b16 %v57
  %v145 = vunpack.c.l.b16 %v58
  %v146 = vunpack.c.l.b16 %v59
  %v147 = vunpack.c.h.b16 %v59
  %v148 = vunpack.c.l.b16 %v60
  %v149 = vunpack.c.l.b16 %v61
  %v150 = vunpack.c.h.b16 %v61
  %v151 = vunpack.c.l.b16 %v62
  %v152 = vunpack.c.l.b16 %v63
  %v153 = vunpack.c.h.b16 %v63
  %v154 = vunpack.c.l.b16 %v64
  %v155 = vunpack.c.l.b16 %v65
  %v156 = vunpack.c.h.b16 %v65
  %v157 = vunpack.c.l.b16 %v66
  %v158 = vunpack.c.l.b16 %v67
  %v159 = vunpack.c.h.b16 %v67
  %v160 = vunpack.c.l.b16 %v68
  %v161 = vunpack.c.l.b16 %v69
  %v162 = vunpack.c.h.b16 %v69
  %v163 = vunpack.c.l.b16 %v70
  %v164 = vunpack.c.l.b16 %v71
  %v165 = vunpack.c.h.b16 %v71
  %v166 = vunpack.c.l.b16 %v72
  %v167 = vunpack.c.l.b16 %v73
  %v168 = vunpack.c.h.b16 %v73
  %v169 = vunpack.c.l.b16 %v74
  %v170 = vunpack.c.l.b16 %v75
  %v171 = vunpack.c.h.b16 %v75
  %v172 = vunpack.c.l.b16 %v76
  %v173 = vunpack.c.l.b16 %v77
  %v174 = vunpack.c.h.b16 %v77
  %v175 = vunpack.c.l.b16 %v78
  %v176 = vpack.c.b16 %v131, %v128
  %v177 = vpack.c.b16 %v132, %v129
  %v178 = vpack.c.b16 %v133, %v130
  %v179 = vpack.c.b16 %v137, %v134
  %v180 = vpack.c.b16 %v138, %v135
  %v181 = vpack.c.b16 %v139, %v136
  %v182 = vpack.c.b16 %v143, %v140
  %v183 = vpack.c.b16 %v144, %v141
  %v184 = vpack.c.b16 %v145, %v142
  %v185 = vpack.c.b16 %v149, %v146
  %v186 = vpack.c.b16 %v150, %v147
  %v187 = vpack.c.b16 %v151, %v148
  %v188 = vpack.c.b16 %v155, %v152
  %v189 = vpack.c.b16 %v156, %v153
  %v190 = vpack.c.b16 %v157, %v154
  %v191 = vpack.c.b16 %v161, %v158
  %v192 = vpack.c.b16 %v162, %v159
  %v193 = vpack.c.b16 %v163, %v160
  %v194 = vpack.c.b16 %v167, %v164
  %v195 = vpack.c.b16 %v168, %v165
  %v196 = vpack.c.b16 %v169, %v166
  %v197 = vpack.c.b16 %v173, %v170
  %v198 = vpack.c.b16 %v174, %v171
  %v199 = vpack.c.b16 %v175, %v172
  %224 = vmatprep.subr.bf16.mxu0 %v198
  %225 = vmatpush1.bf16.msra.mxu0 %v197
  %226 = vmatprep.subr.bf16.mxu0 %v195
  %227 = vmatpush1.bf16.msra.mxu0 %v194
  %228 = vmatprep.subr.bf16.mxu0 %v192
  %229 = vmatpush1.bf16.msra.mxu0 %v191
  %230 = vmatprep.subr.bf16.mxu0 %v189
  %231 = vmatpush1.bf16.msra.mxu0 %v188
  %232 = vmatprep.subr.bf16.mxu0 %v186
  %233 = vmatpush1.bf16.msra.mxu0 %v185
  %234 = vmatprep.subr.bf16.mxu0 %v183
  %235 = vmatpush1.bf16.msra.mxu0 %v182
  %236 = vmatprep.subr.bf16.mxu0 %v180
  %237 = vmatpush1.bf16.msra.mxu0 %v179
  %238 = vmatprep.subr.bf16.mxu0 %v177
  %239 = vmatpush1.bf16.msra.mxu0 %v176
  %240 = vmatprep.subr.bf16.mxu0 0
  %241 = vmatpush2.bf16.msra.mxu0 0
  %242 = vmatprep.subr.bf16.mxu0 0
  %243 = vmatpush2.bf16.msra.mxu0 0
  %244 = vmatprep.subr.bf16.mxu0 0
  %245 = vmatpush2.bf16.msra.mxu0 0
  %246 = vmatprep.subr.bf16.mxu0 0
  %247 = vmatpush2.bf16.msra.mxu0 0
  %248 = vmatprep.subr.bf16.mxu0 0
  %249 = vmatpush2.bf16.msra.mxu0 0
  %250 = vmatprep.subr.bf16.mxu0 0
  %251 = vmatpush2.bf16.msra.mxu0 0
  %252 = vmatprep.subr.bf16.mxu0 0
  %253 = vmatpush2.bf16.msra.mxu0 0
  %254 = vmatprep.subr.bf16.mxu0 0
  %255 = vmatpush2.bf16.msra.mxu0 0
  %256 = vmatprep.mubr.bf16.mxu0 0
  %257 = vmatmul.mubr.bf16.gmra.mxu0 %v43
  %v258 = vpop.f32.mrf.mxu0
  %v259 = vadd.f32 %v84, %v258
  %v260 = vpop.f32.mrf.mxu0
  %v261 = vadd.f32 %v88, %v260
  %v262 = vpop.f32.mrf.mxu0
  %v263 = vadd.f32 %v84, %v262
  %v264 = vpop.f32.mrf.mxu0
  %v265 = vadd.f32 %v88, %v264
  %266 = vmatprep.mubr.bf16.mxu0 0
  %267 = vmatmul.mubr.bf16.gmra.mxu0 %v44
  %v268 = vpop.f32.mrf.mxu0
  %v269 = vadd.f32 %v84, %v268
  %v270 = vpop.f32.mrf.mxu0
  %v271 = vadd.f32 %v88, %v270
  %v272 = vpop.f32.mrf.mxu0
  %v273 = vadd.f32 %v84, %v272
  %v274 = vpop.f32.mrf.mxu0
  %v275 = vadd.f32 %v88, %v274
  %276 = vmatprep.mubr.bf16.mxu0 0
  %277 = vmatmul.mubr.bf16.gmra.mxu0 %v45
  %v278 = vpop.f32.mrf.mxu0
  %v279 = vadd.f32 %v84, %v278
  %v280 = vpop.f32.mrf.mxu0
  %v281 = vadd.f32 %v88, %v280
  %v282 = vpop.f32.mrf.mxu0
  %v283 = vadd.f32 %v84, %v282
  %v284 = vpop.f32.mrf.mxu0
  %v285 = vadd.f32 %v88, %v284
  %286 = vmatprep.mubr.bf16.mxu0 0
  %287 = vmatmul.mubr.bf16.gmra.mxu0 %v46
  %v288 = vpop.f32.mrf.mxu0
  %v289 = vadd.f32 %v84, %v288
  %v290 = vpop.f32.mrf.mxu0
  %v291 = vadd.f32 %v88, %v290
  %v292 = vpop.f32.mrf.mxu0
  %v293 = vadd.f32 %v84, %v292
  %v294 = vpop.f32.mrf.mxu0
  %v295 = vadd.f32 %v88, %v294
  %296 = vdwg.mxu0
  %297 = vmatprep.subr.bf16.mxu0 0
  %298 = vmatpush1.bf16.msra.mxu0 %v199
  %299 = vmatprep.subr.bf16.mxu0 0
  %300 = vmatpush1.bf16.msra.mxu0 %v196
  %301 = vmatprep.subr.bf16.mxu0 0
  %302 = vmatpush1.bf16.msra.mxu0 %v193
  %303 = vmatprep.subr.bf16.mxu0 0
  %304 = vmatpush1.bf16.msra.mxu0 %v190
  %305 = vmatprep.subr.bf16.mxu0 0
  %306 = vmatpush1.bf16.msra.mxu0 %v187
  %307 = vmatprep.subr.bf16.mxu0 0
  %308 = vmatpush1.bf16.msra.mxu0 %v184
  %309 = vmatprep.subr.bf16.mxu0 0
  %310 = vmatpush1.bf16.msra.mxu0 %v181
  %311 = vmatprep.subr.bf16.mxu0 0
  %312 = vmatpush1.bf16.msra.mxu0 %v178
  %313 = vmatprep.subr.bf16.mxu0 0
  %314 = vmatpush2.bf16.msra.mxu0 0
  %315 = vmatprep.subr.bf16.mxu0 0
  %316 = vmatpush2.bf16.msra.mxu0 0
  %317 = vmatprep.subr.bf16.mxu0 0
  %318 = vmatpush2.bf16.msra.mxu0 0
  %319 = vmatprep.subr.bf16.mxu0 0
  %320 = vmatpush2.bf16.msra.mxu0 0
  %321 = vmatprep.subr.bf16.mxu0 0
  %322 = vmatpush2.bf16.msra.mxu0 0
  %323 = vmatprep.subr.bf16.mxu0 0
  %324 = vmatpush2.bf16.msra.mxu0 0
  %325 = vmatprep.subr.bf16.mxu0 0
  %326 = vmatpush2.bf16.msra.mxu0 0
  %327 = vmatprep.subr.bf16.mxu0 0
  %328 = vmatpush2.bf16.msra.mxu0 0
  %329 = vmatprep.mubr.bf16.mxu0 0
  %330 = vmatmul.mubr.bf16.gmra.mxu0 %v43
  %v331 = vpop.f32.mrf.mxu0
  %v332 = vadd.f32 %v92, %v331
  %v333 = vpop.f32.mrf.mxu0
  %v334 = vpop.f32.mrf.mxu0
  %v335 = vadd.f32 %v92, %v334
  %v336 = vpop.f32.mrf.mxu0
  %337 = vmatprep.mubr.bf16.mxu0 0
  %338 = vmatmul.mubr.bf16.gmra.mxu0 %v44
  %v339 = vpop.f32.mrf.mxu0
  %v340 = vadd.f32 %v92, %v339
  %v341 = vpop.f32.mrf.mxu0
  %v342 = vpop.f32.mrf.mxu0
  %v343 = vadd.f32 %v92, %v342
  %v344 = vpop.f32.mrf.mxu0
  %345 = vmatprep.mubr.bf16.mxu0 0
  %346 = vmatmul.mubr.bf16.gmra.mxu0 %v45
  %v347 = vpop.f32.mrf.mxu0
  %v348 = vadd.f32 %v92, %v347
  %v349 = vpop.f32.mrf.mxu0
  %v350 = vpop.f32.mrf.mxu0
  %v351 = vadd.f32 %v92, %v350
  %v352 = vpop.f32.mrf.mxu0
  %353 = vmatprep.mubr.bf16.mxu0 0
  %354 = vmatmul.mubr.bf16.gmra.mxu0 %v46
  %v355 = vpop.f32.mrf.mxu0
  %v356 = vadd.f32 %v92, %v355
  %v357 = vpop.f32.mrf.mxu0
  %v358 = vpop.f32.mrf.mxu0
  %v359 = vadd.f32 %v92, %v358
  %v360 = vpop.f32.mrf.mxu0
  %361 = vdwg.mxu0
  %v362 = vld [vmem:[%s2] sm:$0xff]
  %v363 = vld [vmem:[%s2 + $0x8] sm:$0xf]
  %v364 = vld [vmem:[%s2 + $0xc] sm:$0xff]
  %v365 = vld [vmem:[%s2 + $0x14] sm:$0xf]
  %v366 = vld [vmem:[%s2 + $0x18] sm:$0xff]
  %v367 = vld [vmem:[%s2 + $0x20] sm:$0xf]
  %v368 = vld [vmem:[%s2 + $0x24] sm:$0xff]
  %v369 = vld [vmem:[%s2 + $0x2c] sm:$0xf]
  %v370 = vld [vmem:[%s2 + $0x30] sm:$0xff]
  %v371 = vld [vmem:[%s2 + $0x38] sm:$0xf]
  %v372 = vld [vmem:[%s2 + $0x3c] sm:$0xff]
  %v373 = vld [vmem:[%s2 + $0x44] sm:$0xf]
  %v374 = vld [vmem:[%s2 + $0x48] sm:$0xff]
  %v375 = vld [vmem:[%s2 + $0x50] sm:$0xf]
  %v376 = vld [vmem:[%s2 + $0x54] sm:$0xff]
  %v377 = vld [vmem:[%s2 + $0x5c] sm:$0xf]
  %v378 = vld [vmem:[%s2 + $0x60] sm:$0xff]
  %v379 = vld [vmem:[%s2 + $0x68] sm:$0xf]
  %v380 = vld [vmem:[%s2 + $0x6c] sm:$0xff]
  %v381 = vld [vmem:[%s2 + $0x74] sm:$0xf]
  %v382 = vld [vmem:[%s2 + $0x78] sm:$0xff]
  %v383 = vld [vmem:[%s2 + $0x80] sm:$0xf]
  %v384 = vld [vmem:[%s2 + $0x84] sm:$0xff]
  %v385 = vld [vmem:[%s2 + $0x8c] sm:$0xf]
  %v386 = vld [vmem:[%s2 + $0x90] sm:$0xff]
  %v387 = vld [vmem:[%s2 + $0x98] sm:$0xf]
  %v388 = vld [vmem:[%s2 + $0x9c] sm:$0xff]
  %v389 = vld [vmem:[%s2 + $0xa4] sm:$0xf]
  %v390 = vld [vmem:[%s2 + $0xa8] sm:$0xff]
  %v391 = vld [vmem:[%s2 + $0xb0] sm:$0xf]
  %v392 = vld [vmem:[%s2 + $0xb4] sm:$0xff]
  %v393 = vld [vmem:[%s2 + $0xbc] sm:$0xf]
  %v394 = vld [vmem:[%s4] sm:$0x1]
  %v396 = vlaneseq
  %v397 = vshrl.u32 %v396, 7
  %v398 = vsub.s32 0, %v397
  %v399 = vrot.slane %v394, %v398
  %v401 = vld [vmem:[#allocation2] sm:$0xff]
  %v402 = vpack.c.bf16 %v401, %v401
  %v435 = vunpack.c.l.b16 %v362
  %v436 = vunpack.c.h.b16 %v362
  %v437 = vunpack.c.l.b16 %v363
  %v438 = vunpack.c.l.b16 %v364
  %v439 = vunpack.c.h.b16 %v364
  %v440 = vunpack.c.l.b16 %v365
  %v441 = vunpack.c.l.b16 %v366
  %v442 = vunpack.c.h.b16 %v366
  %v443 = vunpack.c.l.b16 %v367
  %v444 = vunpack.c.l.b16 %v368
  %v445 = vunpack.c.h.b16 %v368
  %v446 = vunpack.c.l.b16 %v369
  %v447 = vunpack.c.l.b16 %v370
  %v448 = vunpack.c.h.b16 %v370
  %v449 = vunpack.c.l.b16 %v371
  %v450 = vunpack.c.l.b16 %v372
  %v451 = vunpack.c.h.b16 %v372
  %v452 = vunpack.c.l.b16 %v373
  %v453 = vunpack.c.l.b16 %v374
  %v454 = vunpack.c.h.b16 %v374
  %v455 = vunpack.c.l.b16 %v375
  %v456 = vunpack.c.l.b16 %v376
  %v457 = vunpack.c.h.b16 %v376
  %v458 = vunpack.c.l.b16 %v377
  %v459 = vunpack.c.l.b16 %v378
  %v460 = vunpack.c.h.b16 %v378
  %v461 = vunpack.c.l.b16 %v379
  %v462 = vunpack.c.l.b16 %v380
  %v463 = vunpack.c.h.b16 %v380
  %v464 = vunpack.c.l.b16 %v381
  %v465 = vunpack.c.l.b16 %v382
  %v466 = vunpack.c.h.b16 %v382
  %v467 = vunpack.c.l.b16 %v383
  %v468 = vunpack.c.l.b16 %v384
  %v469 = vunpack.c.h.b16 %v384
  %v470 = vunpack.c.l.b16 %v385
  %v471 = vunpack.c.l.b16 %v386
  %v472 = vunpack.c.h.b16 %v386
  %v473 = vunpack.c.l.b16 %v387
  %v474 = vunpack.c.l.b16 %v388
  %v475 = vunpack.c.h.b16 %v388
  %v476 = vunpack.c.l.b16 %v389
  %v477 = vunpack.c.l.b16 %v390
  %v478 = vunpack.c.h.b16 %v390
  %v479 = vunpack.c.l.b16 %v391
  %v480 = vunpack.c.l.b16 %v392
  %v481 = vunpack.c.h.b16 %v392
  %v482 = vunpack.c.l.b16 %v393
  %v483 = vpack.c.b16 %v438, %v435
  %v484 = vpack.c.b16 %v439, %v436
  %v485 = vpack.c.b16 %v440, %v437
  %v486 = vpack.c.b16 %v444, %v441
  %v487 = vpack.c.b16 %v445, %v442
  %v488 = vpack.c.b16 %v446, %v443
  %v489 = vpack.c.b16 %v450, %v447
  %v490 = vpack.c.b16 %v451, %v448
  %v491 = vpack.c.b16 %v452, %v449
  %v492 = vpack.c.b16 %v456, %v453
  %v493 = vpack.c.b16 %v457, %v454
  %v494 = vpack.c.b16 %v458, %v455
  %v495 = vpack.c.b16 %v462, %v459
  %v496 = vpack.c.b16 %v463, %v460
  %v497 = vpack.c.b16 %v464, %v461
  %v498 = vpack.c.b16 %v468, %v465
  %v499 = vpack.c.b16 %v469, %v466
  %v500 = vpack.c.b16 %v470, %v467
  %v501 = vpack.c.b16 %v474, %v471
  %v502 = vpack.c.b16 %v475, %v472
  %v503 = vpack.c.b16 %v476, %v473
  %v504 = vpack.c.b16 %v480, %v477
  %v505 = vpack.c.b16 %v481, %v478
  %v506 = vpack.c.b16 %v482, %v479
  %531 = vmatprep.subr.bf16.mxu0 %v505
  %532 = vmatpush1.bf16.msra.mxu0 %v504
  %533 = vmatprep.subr.bf16.mxu0 %v502
  %534 = vmatpush1.bf16.msra.mxu0 %v501
  %535 = vmatprep.subr.bf16.mxu0 %v499
  %536 = vmatpush1.bf16.msra.mxu0 %v498
  %537 = vmatprep.subr.bf16.mxu0 %v496
  %538 = vmatpush1.bf16.msra.mxu0 %v495
  %539 = vmatprep.subr.bf16.mxu0 %v493
  %540 = vmatpush1.bf16.msra.mxu0 %v492
  %541 = vmatprep.subr.bf16.mxu0 %v490
  %542 = vmatpush1.bf16.msra.mxu0 %v489
  %543 = vmatprep.subr.bf16.mxu0 %v487
  %544 = vmatpush1.bf16.msra.mxu0 %v486
  %545 = vmatprep.subr.bf16.mxu0 %v484
  %546 = vmatpush1.bf16.msra.mxu0 %v483
  %547 = vmatprep.subr.bf16.mxu0 0
  %548 = vmatpush2.bf16.msra.mxu0 0
  %549 = vmatprep.subr.bf16.mxu0 0
  %550 = vmatpush2.bf16.msra.mxu0 0
  %551 = vmatprep.subr.bf16.mxu0 0
  %552 = vmatpush2.bf16.msra.mxu0 0
  %553 = vmatprep.subr.bf16.mxu0 0
  %554 = vmatpush2.bf16.msra.mxu0 0
  %555 = vmatprep.subr.bf16.mxu0 0
  %556 = vmatpush2.bf16.msra.mxu0 0
  %557 = vmatprep.subr.bf16.mxu0 0
  %558 = vmatpush2.bf16.msra.mxu0 0
  %559 = vmatprep.subr.bf16.mxu0 0
  %560 = vmatpush2.bf16.msra.mxu0 0
  %561 = vmatprep.subr.bf16.mxu0 0
  %562 = vmatpush2.bf16.msra.mxu0 0
  %563 = vmatprep.mubr.bf16.mxu0 0
  %564 = vmatmul.mubr.bf16.gmra.mxu0 %v402
  %v565 = vpop.f32.mrf.mxu0
  %v566 = vadd.f32 0.0, %v565
  %v567 = vpop.f32.mrf.mxu0
  %v568 = vadd.f32 0.0, %v567
  %v569 = vpop.f32.mrf.mxu0
  %v570 = vpop.f32.mrf.mxu0
  %571 = vdwg.mxu0
  %572 = vmatprep.subr.bf16.mxu0 0
  %573 = vmatpush1.bf16.msra.mxu0 %v506
  %574 = vmatprep.subr.bf16.mxu0 0
  %575 = vmatpush1.bf16.msra.mxu0 %v503
  %576 = vmatprep.subr.bf16.mxu0 0
  %577 = vmatpush1.bf16.msra.mxu0 %v500
  %578 = vmatprep.subr.bf16.mxu0 0
  %579 = vmatpush1.bf16.msra.mxu0 %v497
  %580 = vmatprep.subr.bf16.mxu0 0
  %581 = vmatpush1.bf16.msra.mxu0 %v494
  %582 = vmatprep.subr.bf16.mxu0 0
  %583 = vmatpush1.bf16.msra.mxu0 %v491
  %584 = vmatprep.subr.bf16.mxu0 0
  %585 = vmatpush1.bf16.msra.mxu0 %v488
  %586 = vmatprep.subr.bf16.mxu0 0
  %587 = vmatpush1.bf16.msra.mxu0 %v485
  %588 = vmatprep.subr.bf16.mxu0 0
  %589 = vmatpush2.bf16.msra.mxu0 0
  %590 = vmatprep.subr.bf16.mxu0 0
  %591 = vmatpush2.bf16.msra.mxu0 0
  %592 = vmatprep.subr.bf16.mxu0 0
  %593 = vmatpush2.bf16.msra.mxu0 0
  %594 = vmatprep.subr.bf16.mxu0 0
  %595 = vmatpush2.bf16.msra.mxu0 0
  %596 = vmatprep.subr.bf16.mxu0 0
  %597 = vmatpush2.bf16.msra.mxu0 0
  %598 = vmatprep.subr.bf16.mxu0 0
  %599 = vmatpush2.bf16.msra.mxu0 0
  %600 = vmatprep.subr.bf16.mxu0 0
  %601 = vmatpush2.bf16.msra.mxu0 0
  %602 = vmatprep.subr.bf16.mxu0 0
  %603 = vmatpush2.bf16.msra.mxu0 0
  %604 = vmatprep.mubr.bf16.mxu0 0
  %605 = vmatmul.mubr.bf16.gmra.mxu0 %v402
  %v606 = vpop.f32.mrf.mxu0
  %v607 = vadd.f32 0.0, %v606
  %v608 = vpop.f32.mrf.mxu0
  %v609 = vpop.f32.mrf.mxu0
  %v610 = vpop.f32.mrf.mxu0
  %611 = vdwg.mxu0
  %v612 = vadd.f32 %v259, %v566
  %v613 = vxor.u32 %v612, 2147483648
  %v614 = vmul.f32 %v613, 1.442695
  %v615 = vpow.pop %v614
  %v616 = vadd.f32 %v615, 1.0
  %v617 = vrcp.pop %v616
  %v618 = vmul.f32 1.0, %v617
  %v619 = vadd.f32 %v261, %v568
  %v620 = vxor.u32 %v619, 2147483648
  %v621 = vmul.f32 %v620, 1.442695
  %v622 = vpow.pop %v621
  %v623 = vadd.f32 %v622, 1.0
  %v624 = vrcp.pop %v623
  %v625 = vmul.f32 1.0, %v624
  %v626 = vadd.f32 %v607, %v399
  %v627 = vmul.f32 %v618, %v626
  %v628 = vadd.f32 %v332, %v627
  %v629 = vtanh.pop %v628
  %v630 = vsub.f32 1.0, %v625
  %v631 = vmul.f32 %v630, %v629
  %v632 = vmul.f32 %v625, %v401
  %v633 = vadd.f32 %v631, %v632
  %634 = vst [vmem:[%s7] sm:$0xff] %v633
  %v635 = vpack.c.bf16 %v633, %v633
  %636 = vmatprep.subr.bf16.mxu0 %v505
  %637 = vmatpush1.bf16.msra.mxu0 %v504
  %638 = vmatprep.subr.bf16.mxu0 %v502
  %639 = vmatpush1.bf16.msra.mxu0 %v501
  %640 = vmatprep.subr.bf16.mxu0 %v499
  %641 = vmatpush1.bf16.msra.mxu0 %v498
  %642 = vmatprep.subr.bf16.mxu0 %v496
  %643 = vmatpush1.bf16.msra.mxu0 %v495
  %644 = vmatprep.subr.bf16.mxu0 %v493
  %645 = vmatpush1.bf16.msra.mxu0 %v492
  %646 = vmatprep.subr.bf16.mxu0 %v490
  %647 = vmatpush1.bf16.msra.mxu0 %v489
  %648 = vmatprep.subr.bf16.mxu0 %v487
  %649 = vmatpush1.bf16.msra.mxu0 %v486
  %650 = vmatprep.subr.bf16.mxu0 %v484
  %651 = vmatpush1.bf16.msra.mxu0 %v483
  %652 = vmatprep.subr.bf16.mxu0 0
  %653 = vmatpush2.bf16.msra.mxu0 0
  %654 = vmatprep.subr.bf16.mxu0 0
  %655 = vmatpush2.bf16.msra.mxu0 0
  %656 = vmatprep.subr.bf16.mxu0 0
  %657 = vmatpush2.bf16.msra.mxu0 0
  %658 = vmatprep.subr.bf16.mxu0 0
  %659 = vmatpush2.bf16.msra.mxu0 0
  %660 = vmatprep.subr.bf16.mxu0 0
  %661 = vmatpush2.bf16.msra.mxu0 0
  %662 = vmatprep.subr.bf16.mxu0 0
  %663 = vmatpush2.bf16.msra.mxu0 0
  %664 = vmatprep.subr.bf16.mxu0 0
  %665 = vmatpush2.bf16.msra.mxu0 0
  %666 = vmatprep.subr.bf16.mxu0 0
  %667 = vmatpush2.bf16.msra.mxu0 0
  %668 = vmatprep.mubr.bf16.mxu0 0
  %669 = vmatmul.mubr.bf16.gmra.mxu0 %v635
  %v670 = vpop.f32.mrf.mxu0
  %v671 = vadd.f32 0.0, %v670
  %v672 = vpop.f32.mrf.mxu0
  %v673 = vadd.f32 0.0, %v672
  %v674 = vpop.f32.mrf.mxu0
  %v675 = vpop.f32.mrf.mxu0
  %676 = vdwg.mxu0
  %677 = vmatprep.subr.bf16.mxu0 0
  %678 = vmatpush1.bf16.msra.mxu0 %v506
  %679 = vmatprep.subr.bf16.mxu0 0
  %680 = vmatpush1.bf16.msra.mxu0 %v503
  %681 = vmatprep.subr.bf16.mxu0 0
  %682 = vmatpush1.bf16.msra.mxu0 %v500
  %683 = vmatprep.subr.bf16.mxu0 0
  %684 = vmatpush1.bf16.msra.mxu0 %v497
  %685 = vmatprep.subr.bf16.mxu0 0
  %686 = vmatpush1.bf16.msra.mxu0 %v494
  %687 = vmatprep.subr.bf16.mxu0 0
  %688 = vmatpush1.bf16.msra.mxu0 %v491
  %689 = vmatprep.subr.bf16.mxu0 0
  %690 = vmatpush1.bf16.msra.mxu0 %v488
  %691 = vmatprep.subr.bf16.mxu0 0
  %692 = vmatpush1.bf16.msra.mxu0 %v485
  %693 = vmatprep.subr.bf16.mxu0 0
  %694 = vmatpush2.bf16.msra.mxu0 0
  %695 = vmatprep.subr.bf16.mxu0 0
  %696 = vmatpush2.bf16.msra.mxu0 0
  %697 = vmatprep.subr.bf16.mxu0 0
  %698 = vmatpush2.bf16.msra.mxu0 0
  %699 = vmatprep.subr.bf16.mxu0 0
  %700 = vmatpush2.bf16.msra.mxu0 0
  %701 = vmatprep.subr.bf16.mxu0 0
  %702 = vmatpush2.bf16.msra.mxu0 0
  %703 = vmatprep.subr.bf16.mxu0 0
  %704 = vmatpush2.bf16.msra.mxu0 0
  %705 = vmatprep.subr.bf16.mxu0 0
  %706 = vmatpush2.bf16.msra.mxu0 0
  %707 = vmatprep.subr.bf16.mxu0 0
  %708 = vmatpush2.bf16.msra.mxu0 0
  %709 = vmatprep.mubr.bf16.mxu0 0
  %710 = vmatmul.mubr.bf16.gmra.mxu0 %v635
  %v711 = vpop.f32.mrf.mxu0
  %v712 = vadd.f32 0.0, %v711
  %v713 = vpop.f32.mrf.mxu0
  %v714 = vpop.f32.mrf.mxu0
  %v715 = vpop.f32.mrf.mxu0
  %716 = vdwg.mxu0
  %v717 = vadd.f32 %v263, %v671
  %v718 = vxor.u32 %v717, 2147483648
  %v719 = vmul.f32 %v718, 1.442695
  %v720 = vpow.pop %v719
  %v721 = vadd.f32 %v720, 1.0
  %v722 = vrcp.pop %v721
  %v723 = vmul.f32 1.0, %v722
  %v724 = vadd.f32 %v265, %v673
  %v725 = vxor.u32 %v724, 2147483648
  %v726 = vmul.f32 %v725, 1.442695
  %v727 = vpow.pop %v726
  %v728 = vadd.f32 %v727, 1.0
  %v729 = vrcp.pop %v728
  %v730 = vmul.f32 1.0, %v729
  %v731 = vadd.f32 %v712, %v399
  %v732 = vmul.f32 %v723, %v731
  %v733 = vadd.f32 %v335, %v732
  %v734 = vtanh.pop %v733
  %v735 = vsub.f32 1.0, %v730
  %v736 = vmul.f32 %v735, %v734
  %v737 = vmul.f32 %v730, %v633
  %v738 = vadd.f32 %v736, %v737
  %s739 = scalar_lea.vmem %s7, 8
  %740 = vst [vmem:[%s739] sm:$0xff] %v738
  %v741 = vpack.c.bf16 %v738, %v738
  %742 = vmatprep.subr.bf16.mxu0 %v505
  %743 = vmatpush1.bf16.msra.mxu0 %v504
  %744 = vmatprep.subr.bf16.mxu0 %v502
  %745 = vmatpush1.bf16.msra.mxu0 %v501
  %746 = vmatprep.subr.bf16.mxu0 %v499
  %747 = vmatpush1.bf16.msra.mxu0 %v498
  %748 = vmatprep.subr.bf16.mxu0 %v496
  %749 = vmatpush1.bf16.msra.mxu0 %v495
  %750 = vmatprep.subr.bf16.mxu0 %v493
  %751 = vmatpush1.bf16.msra.mxu0 %v492
  %752 = vmatprep.subr.bf16.mxu0 %v490
  %753 = vmatpush1.bf16.msra.mxu0 %v489
  %754 = vmatprep.subr.bf16.mxu0 %v487
  %755 = vmatpush1.bf16.msra.mxu0 %v486
  %756 = vmatprep.subr.bf16.mxu0 %v484
  %757 = vmatpush1.bf16.msra.mxu0 %v483
  %758 = vmatprep.subr.bf16.mxu0 0
  %759 = vmatpush2.bf16.msra.mxu0 0
  %760 = vmatprep.subr.bf16.mxu0 0
  %761 = vmatpush2.bf16.msra.mxu0 0
  %762 = vmatprep.subr.bf16.mxu0 0
  %763 = vmatpush2.bf16.msra.mxu0 0
  %764 = vmatprep.subr.bf16.mxu0 0
  %765 = vmatpush2.bf16.msra.mxu0 0
  %766 = vmatprep.subr.bf16.mxu0 0
  %767 = vmatpush2.bf16.msra.mxu0 0
  %768 = vmatprep.subr.bf16.mxu0 0
  %769 = vmatpush2.bf16.msra.mxu0 0
  %770 = vmatprep.subr.bf16.mxu0 0
  %771 = vmatpush2.bf16.msra.mxu0 0
  %772 = vmatprep.subr.bf16.mxu0 0
  %773 = vmatpush2.bf16.msra.mxu0 0
  %774 = vmatprep.mubr.bf16.mxu0 0
  %775 = vmatmul.mubr.bf16.gmra.mxu0 %v741
  %v776 = vpop.f32.mrf.mxu0
  %v777 = vadd.f32 0.0, %v776
  %v778 = vpop.f32.mrf.mxu0
  %v779 = vadd.f32 0.0, %v778
  %v780 = vpop.f32.mrf.mxu0
  %v781 = vpop.f32.mrf.mxu0
  %782 = vdwg.mxu0
  %783 = vmatprep.subr.bf16.mxu0 0
  %784 = vmatpush1.bf16.msra.mxu0 %v506
  %785 = vmatprep.subr.bf16.mxu0 0
  %786 = vmatpush1.bf16.msra.mxu0 %v503
  %787 = vmatprep.subr.bf16.mxu0 0
  %788 = vmatpush1.bf16.msra.mxu0 %v500
  %789 = vmatprep.subr.bf16.mxu0 0
  %790 = vmatpush1.bf16.msra.mxu0 %v497
  %791 = vmatprep.subr.bf16.mxu0 0
  %792 = vmatpush1.bf16.msra.mxu0 %v494
  %793 = vmatprep.subr.bf16.mxu0 0
  %794 = vmatpush1.bf16.msra.mxu0 %v491
  %795 = vmatprep.subr.bf16.mxu0 0
  %796 = vmatpush1.bf16.msra.mxu0 %v488
  %797 = vmatprep.subr.bf16.mxu0 0
  %798 = vmatpush1.bf16.msra.mxu0 %v485
  %799 = vmatprep.subr.bf16.mxu0 0
  %800 = vmatpush2.bf16.msra.mxu0 0
  %801 = vmatprep.subr.bf16.mxu0 0
  %802 = vmatpush2.bf16.msra.mxu0 0
  %803 = vmatprep.subr.bf16.mxu0 0
  %804 = vmatpush2.bf16.msra.mxu0 0
  %805 = vmatprep.subr.bf16.mxu0 0
  %806 = vmatpush2.bf16.msra.mxu0 0
  %807 = vmatprep.subr.bf16.mxu0 0
  %808 = vmatpush2.bf16.msra.mxu0 0
  %809 = vmatprep.subr.bf16.mxu0 0
  %810 = vmatpush2.bf16.msra.mxu0 0
  %811 = vmatprep.subr.bf16.mxu0 0
  %812 = vmatpush2.bf16.msra.mxu0 0
  %813 = vmatprep.subr.bf16.mxu0 0
  %814 = vmatpush2.bf16.msra.mxu0 0
  %815 = vmatprep.mubr.bf16.mxu0 0
  %816 = vmatmul.mubr.bf16.gmra.mxu0 %v741
  %v817 = vpop.f32.mrf.mxu0
  %v818 = vadd.f32 0.0, %v817
  %v819 = vpop.f32.mrf.mxu0
  %v820 = vpop.f32.mrf.mxu0
  %v821 = vpop.f32.mrf.mxu0
  %822 = vdwg.mxu0
  %v823 = vadd.f32 %v269, %v777
  %v824 = vxor.u32 %v823, 2147483648
  %v825 = vmul.f32 %v824, 1.442695
  %v826 = vpow.pop %v825
  %v827 = vadd.f32 %v826, 1.0
  %v828 = vrcp.pop %v827
  %v829 = vmul.f32 1.0, %v828
  %v830 = vadd.f32 %v271, %v779
  %v831 = vxor.u32 %v830, 2147483648
  %v832 = vmul.f32 %v831, 1.442695
  %v833 = vpow.pop %v832
  %v834 = vadd.f32 %v833, 1.0
  %v835 = vrcp.pop %v834
  %v836 = vmul.f32 1.0, %v835
  %v837 = vadd.f32 %v818, %v399
  %v838 = vmul.f32 %v829, %v837
  %v839 = vadd.f32 %v340, %v838
  %v840 = vtanh.pop %v839
  %v841 = vsub.f32 1.0, %v836
  %v842 = vmul.f32 %v841, %v840
  %v843 = vmul.f32 %v836, %v738
  %v844 = vadd.f32 %v842, %v843
  %s845 = scalar_lea.vmem %s7, 16
  %846 = vst [vmem:[%s845] sm:$0xff] %v844
  %v847 = vpack.c.bf16 %v844, %v844
  %848 = vmatprep.subr.bf16.mxu0 %v505
  %849 = vmatpush1.bf16.msra.mxu0 %v504
  %850 = vmatprep.subr.bf16.mxu0 %v502
  %851 = vmatpush1.bf16.msra.mxu0 %v501
  %852 = vmatprep.subr.bf16.mxu0 %v499
  %853 = vmatpush1.bf16.msra.mxu0 %v498
  %854 = vmatprep.subr.bf16.mxu0 %v496
  %855 = vmatpush1.bf16.msra.mxu0 %v495
  %856 = vmatprep.subr.bf16.mxu0 %v493
  %857 = vmatpush1.bf16.msra.mxu0 %v492
  %858 = vmatprep.subr.bf16.mxu0 %v490
  %859 = vmatpush1.bf16.msra.mxu0 %v489
  %860 = vmatprep.subr.bf16.mxu0 %v487
  %861 = vmatpush1.bf16.msra.mxu0 %v486
  %862 = vmatprep.subr.bf16.mxu0 %v484
  %863 = vmatpush1.bf16.msra.mxu0 %v483
  %864 = vmatprep.subr.bf16.mxu0 0
  %865 = vmatpush2.bf16.msra.mxu0 0
  %866 = vmatprep.subr.bf16.mxu0 0
  %867 = vmatpush2.bf16.msra.mxu0 0
  %868 = vmatprep.subr.bf16.mxu0 0
  %869 = vmatpush2.bf16.msra.mxu0 0
  %870 = vmatprep.subr.bf16.mxu0 0
  %871 = vmatpush2.bf16.msra.mxu0 0
  %872 = vmatprep.subr.bf16.mxu0 0
  %873 = vmatpush2.bf16.msra.mxu0 0
  %874 = vmatprep.subr.bf16.mxu0 0
  %875 = vmatpush2.bf16.msra.mxu0 0
  %876 = vmatprep.subr.bf16.mxu0 0
  %877 = vmatpush2.bf16.msra.mxu0 0
  %878 = vmatprep.subr.bf16.mxu0 0
  %879 = vmatpush2.bf16.msra.mxu0 0
  %880 = vmatprep.mubr.bf16.mxu0 0
  %881 = vmatmul.mubr.bf16.gmra.mxu0 %v847
  %v882 = vpop.f32.mrf.mxu0
  %v883 = vadd.f32 0.0, %v882
  %v884 = vpop.f32.mrf.mxu0
  %v885 = vadd.f32 0.0, %v884
  %v886 = vpop.f32.mrf.mxu0
  %v887 = vpop.f32.mrf.mxu0
  %888 = vdwg.mxu0
  %889 = vmatprep.subr.bf16.mxu0 0
  %890 = vmatpush1.bf16.msra.mxu0 %v506
  %891 = vmatprep.subr.bf16.mxu0 0
  %892 = vmatpush1.bf16.msra.mxu0 %v503
  %893 = vmatprep.subr.bf16.mxu0 0
  %894 = vmatpush1.bf16.msra.mxu0 %v500
  %895 = vmatprep.subr.bf16.mxu0 0
  %896 = vmatpush1.bf16.msra.mxu0 %v497
  %897 = vmatprep.subr.bf16.mxu0 0
  %898 = vmatpush1.bf16.msra.mxu0 %v494
  %899 = vmatprep.subr.bf16.mxu0 0
  %900 = vmatpush1.bf16.msra.mxu0 %v491
  %901 = vmatprep.subr.bf16.mxu0 0
  %902 = vmatpush1.bf16.msra.mxu0 %v488
  %903 = vmatprep.subr.bf16.mxu0 0
  %904 = vmatpush1.bf16.msra.mxu0 %v485
  %905 = vmatprep.subr.bf16.mxu0 0
  %906 = vmatpush2.bf16.msra.mxu0 0
  %907 = vmatprep.subr.bf16.mxu0 0
  %908 = vmatpush2.bf16.msra.mxu0 0
  %909 = vmatprep.subr.bf16.mxu0 0
  %910 = vmatpush2.bf16.msra.mxu0 0
  %911 = vmatprep.subr.bf16.mxu0 0
  %912 = vmatpush2.bf16.msra.mxu0 0
  %913 = vmatprep.subr.bf16.mxu0 0
  %914 = vmatpush2.bf16.msra.mxu0 0
  %915 = vmatprep.subr.bf16.mxu0 0
  %916 = vmatpush2.bf16.msra.mxu0 0
  %917 = vmatprep.subr.bf16.mxu0 0
  %918 = vmatpush2.bf16.msra.mxu0 0
  %919 = vmatprep.subr.bf16.mxu0 0
  %920 = vmatpush2.bf16.msra.mxu0 0
  %921 = vmatprep.mubr.bf16.mxu0 0
  %922 = vmatmul.mubr.bf16.gmra.mxu0 %v847
  %v923 = vpop.f32.mrf.mxu0
  %v924 = vadd.f32 0.0, %v923
  %v925 = vpop.f32.mrf.mxu0
  %v926 = vpop.f32.mrf.mxu0
  %v927 = vpop.f32.mrf.mxu0
  %928 = vdwg.mxu0
  %v929 = vadd.f32 %v273, %v883
  %v930 = vxor.u32 %v929, 2147483648
  %v931 = vmul.f32 %v930, 1.442695
  %v932 = vpow.pop %v931
  %v933 = vadd.f32 %v932, 1.0
  %v934 = vrcp.pop %v933
  %v935 = vmul.f32 1.0, %v934
  %v936 = vadd.f32 %v275, %v885
  %v937 = vxor.u32 %v936, 2147483648
  %v938 = vmul.f32 %v937, 1.442695
  %v939 = vpow.pop %v938
  %v940 = vadd.f32 %v939, 1.0
  %v941 = vrcp.pop %v940
  %v942 = vmul.f32 1.0, %v941
  %v943 = vadd.f32 %v924, %v399
  %v944 = vmul.f32 %v935, %v943
  %v945 = vadd.f32 %v343, %v944
  %v946 = vtanh.pop %v945
  %v947 = vsub.f32 1.0, %v942
  %v948 = vmul.f32 %v947, %v946
  %v949 = vmul.f32 %v942, %v844
  %v950 = vadd.f32 %v948, %v949
  %s951 = scalar_lea.vmem %s7, 24
  %952 = vst [vmem:[%s951] sm:$0xff] %v950
  %v953 = vpack.c.bf16 %v950, %v950
  %954 = vmatprep.subr.bf16.mxu0 %v505
  %955 = vmatpush1.bf16.msra.mxu0 %v504
  %956 = vmatprep.subr.bf16.mxu0 %v502
  %957 = vmatpush1.bf16.msra.mxu0 %v501
  %958 = vmatprep.subr.bf16.mxu0 %v499
  %959 = vmatpush1.bf16.msra.mxu0 %v498
  %960 = vmatprep.subr.bf16.mxu0 %v496
  %961 = vmatpush1.bf16.msra.mxu0 %v495
  %962 = vmatprep.subr.bf16.mxu0 %v493
  %963 = vmatpush1.bf16.msra.mxu0 %v492
  %964 = vmatprep.subr.bf16.mxu0 %v490
  %965 = vmatpush1.bf16.msra.mxu0 %v489
  %966 = vmatprep.subr.bf16.mxu0 %v487
  %967 = vmatpush1.bf16.msra.mxu0 %v486
  %968 = vmatprep.subr.bf16.mxu0 %v484
  %969 = vmatpush1.bf16.msra.mxu0 %v483
  %970 = vmatprep.subr.bf16.mxu0 0
  %971 = vmatpush2.bf16.msra.mxu0 0
  %972 = vmatprep.subr.bf16.mxu0 0
  %973 = vmatpush2.bf16.msra.mxu0 0
  %974 = vmatprep.subr.bf16.mxu0 0
  %975 = vmatpush2.bf16.msra.mxu0 0
  %976 = vmatprep.subr.bf16.mxu0 0
  %977 = vmatpush2.bf16.msra.mxu0 0
  %978 = vmatprep.subr.bf16.mxu0 0
  %979 = vmatpush2.bf16.msra.mxu0 0
  %980 = vmatprep.subr.bf16.mxu0 0
  %981 = vmatpush2.bf16.msra.mxu0 0
  %982 = vmatprep.subr.bf16.mxu0 0
  %983 = vmatpush2.bf16.msra.mxu0 0
  %984 = vmatprep.subr.bf16.mxu0 0
  %985 = vmatpush2.bf16.msra.mxu0 0
  %986 = vmatprep.mubr.bf16.mxu0 0
  %987 = vmatmul.mubr.bf16.gmra.mxu0 %v953
  %v988 = vpop.f32.mrf.mxu0
  %v989 = vadd.f32 0.0, %v988
  %v990 = vpop.f32.mrf.mxu0
  %v991 = vadd.f32 0.0, %v990
  %v992 = vpop.f32.mrf.mxu0
  %v993 = vpop.f32.mrf.mxu0
  %994 = vdwg.mxu0
  %995 = vmatprep.subr.bf16.mxu0 0
  %996 = vmatpush1.bf16.msra.mxu0 %v506
  %997 = vmatprep.subr.bf16.mxu0 0
  %998 = vmatpush1.bf16.msra.mxu0 %v503
  %999 = vmatprep.subr.bf16.mxu0 0
  %1000 = vmatpush1.bf16.msra.mxu0 %v500
  %1001 = vmatprep.subr.bf16.mxu0 0
  %1002 = vmatpush1.bf16.msra.mxu0 %v497
  %1003 = vmatprep.subr.bf16.mxu0 0
  %1004 = vmatpush1.bf16.msra.mxu0 %v494
  %1005 = vmatprep.subr.bf16.mxu0 0
  %1006 = vmatpush1.bf16.msra.mxu0 %v491
  %1007 = vmatprep.subr.bf16.mxu0 0
  %1008 = vmatpush1.bf16.msra.mxu0 %v488
  %1009 = vmatprep.subr.bf16.mxu0 0
  %1010 = vmatpush1.bf16.msra.mxu0 %v485
  %1011 = vmatprep.subr.bf16.mxu0 0
  %1012 = vmatpush2.bf16.msra.mxu0 0
  %1013 = vmatprep.subr.bf16.mxu0 0
  %1014 = vmatpush2.bf16.msra.mxu0 0
  %1015 = vmatprep.subr.bf16.mxu0 0
  %1016 = vmatpush2.bf16.msra.mxu0 0
  %1017 = vmatprep.subr.bf16.mxu0 0
  %1018 = vmatpush2.bf16.msra.mxu0 0
  %1019 = vmatprep.subr.bf16.mxu0 0
  %1020 = vmatpush2.bf16.msra.mxu0 0
  %1021 = vmatprep.subr.bf16.mxu0 0
  %1022 = vmatpush2.bf16.msra.mxu0 0
  %1023 = vmatprep.subr.bf16.mxu0 0
  %1024 = vmatpush2.bf16.msra.mxu0 0
  %1025 = vmatprep.subr.bf16.mxu0 0
  %1026 = vmatpush2.bf16.msra.mxu0 0
  %1027 = vmatprep.mubr.bf16.mxu0 0
  %1028 = vmatmul.mubr.bf16.gmra.mxu0 %v953
  %v1029 = vpop.f32.mrf.mxu0
  %v1030 = vadd.f32 0.0, %v1029
  %v1031 = vpop.f32.mrf.mxu0
  %v1032 = vpop.f32.mrf.mxu0
  %v1033 = vpop.f32.mrf.mxu0
  %1034 = vdwg.mxu0
  %v1035 = vadd.f32 %v279, %v989
  %v1036 = vxor.u32 %v1035, 2147483648
  %v1037 = vmul.f32 %v1036, 1.442695
  %v1038 = vpow.pop %v1037
  %v1039 = vadd.f32 %v1038, 1.0
  %v1040 = vrcp.pop %v1039
  %v1041 = vmul.f32 1.0, %v1040
  %v1042 = vadd.f32 %v281, %v991
  %v1043 = vxor.u32 %v1042, 2147483648
  %v1044 = vmul.f32 %v1043, 1.442695
  %v1045 = vpow.pop %v1044
  %v1046 = vadd.f32 %v1045, 1.0
  %v1047 = vrcp.pop %v1046
  %v1048 = vmul.f32 1.0, %v1047
  %v1049 = vadd.f32 %v1030, %v399
  %v1050 = vmul.f32 %v1041, %v1049
  %v1051 = vadd.f32 %v348, %v1050
  %v1052 = vtanh.pop %v1051
  %v1053 = vsub.f32 1.0, %v1048
  %v1054 = vmul.f32 %v1053, %v1052
  %v1055 = vmul.f32 %v1048, %v950
  %v1056 = vadd.f32 %v1054, %v1055
  %s1057 = scalar_lea.vmem %s7, 32
  %1058 = vst [vmem:[%s1057] sm:$0xff] %v1056
  %v1059 = vpack.c.bf16 %v1056, %v1056
  %1060 = vmatprep.subr.bf16.mxu0 %v505
  %1061 = vmatpush1.bf16.msra.mxu0 %v504
  %1062 = vmatprep.subr.bf16.mxu0 %v502
  %1063 = vmatpush1.bf16.msra.mxu0 %v501
  %1064 = vmatprep.subr.bf16.mxu0 %v499
  %1065 = vmatpush1.bf16.msra.mxu0 %v498
  %1066 = vmatprep.subr.bf16.mxu0 %v496
  %1067 = vmatpush1.bf16.msra.mxu0 %v495
  %1068 = vmatprep.subr.bf16.mxu0 %v493
  %1069 = vmatpush1.bf16.msra.mxu0 %v492
  %1070 = vmatprep.subr.bf16.mxu0 %v490
  %1071 = vmatpush1.bf16.msra.mxu0 %v489
  %1072 = vmatprep.subr.bf16.mxu0 %v487
  %1073 = vmatpush1.bf16.msra.mxu0 %v486
  %1074 = vmatprep.subr.bf16.mxu0 %v484
  %1075 = vmatpush1.bf16.msra.mxu0 %v483
  %1076 = vmatprep.subr.bf16.mxu0 0
  %1077 = vmatpush2.bf16.msra.mxu0 0
  %1078 = vmatprep.subr.bf16.mxu0 0
  %1079 = vmatpush2.bf16.msra.mxu0 0
  %1080 = vmatprep.subr.bf16.mxu0 0
  %1081 = vmatpush2.bf16.msra.mxu0 0
  %1082 = vmatprep.subr.bf16.mxu0 0
  %1083 = vmatpush2.bf16.msra.mxu0 0
  %1084 = vmatprep.subr.bf16.mxu0 0
  %1085 = vmatpush2.bf16.msra.mxu0 0
  %1086 = vmatprep.subr.bf16.mxu0 0
  %1087 = vmatpush2.bf16.msra.mxu0 0
  %1088 = vmatprep.subr.bf16.mxu0 0
  %1089 = vmatpush2.bf16.msra.mxu0 0
  %1090 = vmatprep.subr.bf16.mxu0 0
  %1091 = vmatpush2.bf16.msra.mxu0 0
  %1092 = vmatprep.mubr.bf16.mxu0 0
  %1093 = vmatmul.mubr.bf16.gmra.mxu0 %v1059
  %v1094 = vpop.f32.mrf.mxu0
  %v1095 = vadd.f32 0.0, %v1094
  %v1096 = vpop.f32.mrf.mxu0
  %v1097 = vadd.f32 0.0, %v1096
  %v1098 = vpop.f32.mrf.mxu0
  %v1099 = vpop.f32.mrf.mxu0
  %1100 = vdwg.mxu0
  %1101 = vmatprep.subr.bf16.mxu0 0
  %1102 = vmatpush1.bf16.msra.mxu0 %v506
  %1103 = vmatprep.subr.bf16.mxu0 0
  %1104 = vmatpush1.bf16.msra.mxu0 %v503
  %1105 = vmatprep.subr.bf16.mxu0 0
  %1106 = vmatpush1.bf16.msra.mxu0 %v500
  %1107 = vmatprep.subr.bf16.mxu0 0
  %1108 = vmatpush1.bf16.msra.mxu0 %v497
  %1109 = vmatprep.subr.bf16.mxu0 0
  %1110 = vmatpush1.bf16.msra.mxu0 %v494
  %1111 = vmatprep.subr.bf16.mxu0 0
  %1112 = vmatpush1.bf16.msra.mxu0 %v491
  %1113 = vmatprep.subr.bf16.mxu0 0
  %1114 = vmatpush1.bf16.msra.mxu0 %v488
  %1115 = vmatprep.subr.bf16.mxu0 0
  %1116 = vmatpush1.bf16.msra.mxu0 %v485
  %1117 = vmatprep.subr.bf16.mxu0 0
  %1118 = vmatpush2.bf16.msra.mxu0 0
  %1119 = vmatprep.subr.bf16.mxu0 0
  %1120 = vmatpush2.bf16.msra.mxu0 0
  %1121 = vmatprep.subr.bf16.mxu0 0
  %1122 = vmatpush2.bf16.msra.mxu0 0
  %1123 = vmatprep.subr.bf16.mxu0 0
  %1124 = vmatpush2.bf16.msra.mxu0 0
  %1125 = vmatprep.subr.bf16.mxu0 0
  %1126 = vmatpush2.bf16.msra.mxu0 0
  %1127 = vmatprep.subr.bf16.mxu0 0
  %1128 = vmatpush2.bf16.msra.mxu0 0
  %1129 = vmatprep.subr.bf16.mxu0 0
  %1130 = vmatpush2.bf16.msra.mxu0 0
  %1131 = vmatprep.subr.bf16.mxu0 0
  %1132 = vmatpush2.bf16.msra.mxu0 0
  %1133 = vmatprep.mubr.bf16.mxu0 0
  %1134 = vmatmul.mubr.bf16.gmra.mxu0 %v1059
  %v1135 = vpop.f32.mrf.mxu0
  %v1136 = vadd.f32 0.0, %v1135
  %v1137 = vpop.f32.mrf.mxu0
  %v1138 = vpop.f32.mrf.mxu0
  %v1139 = vpop.f32.mrf.mxu0
  %1140 = vdwg.mxu0
  %v1141 = vadd.f32 %v283, %v1095
  %v1142 = vxor.u32 %v1141, 2147483648
  %v1143 = vmul.f32 %v1142, 1.442695
  %v1144 = vpow.pop %v1143
  %v1145 = vadd.f32 %v1144, 1.0
  %v1146 = vrcp.pop %v1145
  %v1147 = vmul.f32 1.0, %v1146
  %v1148 = vadd.f32 %v285, %v1097
  %v1149 = vxor.u32 %v1148, 2147483648
  %v1150 = vmul.f32 %v1149, 1.442695
  %v1151 = vpow.pop %v1150
  %v1152 = vadd.f32 %v1151, 1.0
  %v1153 = vrcp.pop %v1152
  %v1154 = vmul.f32 1.0, %v1153
  %v1155 = vadd.f32 %v1136, %v399
  %v1156 = vmul.f32 %v1147, %v1155
  %v1157 = vadd.f32 %v351, %v1156
  %v1158 = vtanh.pop %v1157
  %v1159 = vsub.f32 1.0, %v1154
  %v1160 = vmul.f32 %v1159, %v1158
  %v1161 = vmul.f32 %v1154, %v1056
  %v1162 = vadd.f32 %v1160, %v1161
  %s1163 = scalar_lea.vmem %s7, 40
  %1164 = vst [vmem:[%s1163] sm:$0xff] %v1162
  %v1165 = vpack.c.bf16 %v1162, %v1162
  %1166 = vmatprep.subr.bf16.mxu0 %v505
  %1167 = vmatpush1.bf16.msra.mxu0 %v504
  %1168 = vmatprep.subr.bf16.mxu0 %v502
  %1169 = vmatpush1.bf16.msra.mxu0 %v501
  %1170 = vmatprep.subr.bf16.mxu0 %v499
  %1171 = vmatpush1.bf16.msra.mxu0 %v498
  %1172 = vmatprep.subr.bf16.mxu0 %v496
  %1173 = vmatpush1.bf16.msra.mxu0 %v495
  %1174 = vmatprep.subr.bf16.mxu0 %v493
  %1175 = vmatpush1.bf16.msra.mxu0 %v492
  %1176 = vmatprep.subr.bf16.mxu0 %v490
  %1177 = vmatpush1.bf16.msra.mxu0 %v489
  %1178 = vmatprep.subr.bf16.mxu0 %v487
  %1179 = vmatpush1.bf16.msra.mxu0 %v486
  %1180 = vmatprep.subr.bf16.mxu0 %v484
  %1181 = vmatpush1.bf16.msra.mxu0 %v483
  %1182 = vmatprep.subr.bf16.mxu0 0
  %1183 = vmatpush2.bf16.msra.mxu0 0
  %1184 = vmatprep.subr.bf16.mxu0 0
  %1185 = vmatpush2.bf16.msra.mxu0 0
  %1186 = vmatprep.subr.bf16.mxu0 0
  %1187 = vmatpush2.bf16.msra.mxu0 0
  %1188 = vmatprep.subr.bf16.mxu0 0
  %1189 = vmatpush2.bf16.msra.mxu0 0
  %1190 = vmatprep.subr.bf16.mxu0 0
  %1191 = vmatpush2.bf16.msra.mxu0 0
  %1192 = vmatprep.subr.bf16.mxu0 0
  %1193 = vmatpush2.bf16.msra.mxu0 0
  %1194 = vmatprep.subr.bf16.mxu0 0
  %1195 = vmatpush2.bf16.msra.mxu0 0
  %1196 = vmatprep.subr.bf16.mxu0 0
  %1197 = vmatpush2.bf16.msra.mxu0 0
  %1198 = vmatprep.mubr.bf16.mxu0 0
  %1199 = vmatmul.mubr.bf16.gmra.mxu0 %v1165
  %v1200 = vpop.f32.mrf.mxu0
  %v1201 = vadd.f32 0.0, %v1200
  %v1202 = vpop.f32.mrf.mxu0
  %v1203 = vadd.f32 0.0, %v1202
  %v1204 = vpop.f32.mrf.mxu0
  %v1205 = vpop.f32.mrf.mxu0
  %1206 = vdwg.mxu0
  %1207 = vmatprep.subr.bf16.mxu0 0
  %1208 = vmatpush1.bf16.msra.mxu0 %v506
  %1209 = vmatprep.subr.bf16.mxu0 0
  %1210 = vmatpush1.bf16.msra.mxu0 %v503
  %1211 = vmatprep.subr.bf16.mxu0 0
  %1212 = vmatpush1.bf16.msra.mxu0 %v500
  %1213 = vmatprep.subr.bf16.mxu0 0
  %1214 = vmatpush1.bf16.msra.mxu0 %v497
  %1215 = vmatprep.subr.bf16.mxu0 0
  %1216 = vmatpush1.bf16.msra.mxu0 %v494
  %1217 = vmatprep.subr.bf16.mxu0 0
  %1218 = vmatpush1.bf16.msra.mxu0 %v491
  %1219 = vmatprep.subr.bf16.mxu0 0
  %1220 = vmatpush1.bf16.msra.mxu0 %v488
  %1221 = vmatprep.subr.bf16.mxu0 0
  %1222 = vmatpush1.bf16.msra.mxu0 %v485
  %1223 = vmatprep.subr.bf16.mxu0 0
  %1224 = vmatpush2.bf16.msra.mxu0 0
  %1225 = vmatprep.subr.bf16.mxu0 0
  %1226 = vmatpush2.bf16.msra.mxu0 0
  %1227 = vmatprep.subr.bf16.mxu0 0
  %1228 = vmatpush2.bf16.msra.mxu0 0
  %1229 = vmatprep.subr.bf16.mxu0 0
  %1230 = vmatpush2.bf16.msra.mxu0 0
  %1231 = vmatprep.subr.bf16.mxu0 0
  %1232 = vmatpush2.bf16.msra.mxu0 0
  %1233 = vmatprep.subr.bf16.mxu0 0
  %1234 = vmatpush2.bf16.msra.mxu0 0
  %1235 = vmatprep.subr.bf16.mxu0 0
  %1236 = vmatpush2.bf16.msra.mxu0 0
  %1237 = vmatprep.subr.bf16.mxu0 0
  %1238 = vmatpush2.bf16.msra.mxu0 0
  %1239 = vmatprep.mubr.bf16.mxu0 0
  %1240 = vmatmul.mubr.bf16.gmra.mxu0 %v1165
  %v1241 = vpop.f32.mrf.mxu0
  %v1242 = vadd.f32 0.0, %v1241
  %v1243 = vpop.f32.mrf.mxu0
  %v1244 = vpop.f32.mrf.mxu0
  %v1245 = vpop.f32.mrf.mxu0
  %1246 = vdwg.mxu0
  %v1247 = vadd.f32 %v289, %v1201
  %v1248 = vxor.u32 %v1247, 2147483648
  %v1249 = vmul.f32 %v1248, 1.442695
  %v1250 = vpow.pop %v1249
  %v1251 = vadd.f32 %v1250, 1.0
  %v1252 = vrcp.pop %v1251
  %v1253 = vmul.f32 1.0, %v1252
  %v1254 = vadd.f32 %v291, %v1203
  %v1255 = vxor.u32 %v1254, 2147483648
  %v1256 = vmul.f32 %v1255, 1.442695
  %v1257 = vpow.pop %v1256
  %v1258 = vadd.f32 %v1257, 1.0
  %v1259 = vrcp.pop %v1258
  %v1260 = vmul.f32 1.0, %v1259
  %v1261 = vadd.f32 %v1242, %v399
  %v1262 = vmul.f32 %v1253, %v1261
  %v1263 = vadd.f32 %v356, %v1262
  %v1264 = vtanh.pop %v1263
  %v1265 = vsub.f32 1.0, %v1260
  %v1266 = vmul.f32 %v1265, %v1264
  %v1267 = vmul.f32 %v1260, %v1162
  %v1268 = vadd.f32 %v1266, %v1267
  %s1269 = scalar_lea.vmem %s7, 48
  %1270 = vst [vmem:[%s1269] sm:$0xff] %v1268
  %v1271 = vpack.c.bf16 %v1268, %v1268
  %1272 = vmatprep.subr.bf16.mxu0 %v505
  %1273 = vmatpush1.bf16.msra.mxu0 %v504
  %1274 = vmatprep.subr.bf16.mxu0 %v502
  %1275 = vmatpush1.bf16.msra.mxu0 %v501
  %1276 = vmatprep.subr.bf16.mxu0 %v499
  %1277 = vmatpush1.bf16.msra.mxu0 %v498
  %1278 = vmatprep.subr.bf16.mxu0 %v496
  %1279 = vmatpush1.bf16.msra.mxu0 %v495
  %1280 = vmatprep.subr.bf16.mxu0 %v493
  %1281 = vmatpush1.bf16.msra.mxu0 %v492
  %1282 = vmatprep.subr.bf16.mxu0 %v490
  %1283 = vmatpush1.bf16.msra.mxu0 %v489
  %1284 = vmatprep.subr.bf16.mxu0 %v487
  %1285 = vmatpush1.bf16.msra.mxu0 %v486
  %1286 = vmatprep.subr.bf16.mxu0 %v484
  %1287 = vmatpush1.bf16.msra.mxu0 %v483
  %1288 = vmatprep.subr.bf16.mxu0 0
  %1289 = vmatpush2.bf16.msra.mxu0 0
  %1290 = vmatprep.subr.bf16.mxu0 0
  %1291 = vmatpush2.bf16.msra.mxu0 0
  %1292 = vmatprep.subr.bf16.mxu0 0
  %1293 = vmatpush2.bf16.msra.mxu0 0
  %1294 = vmatprep.subr.bf16.mxu0 0
  %1295 = vmatpush2.bf16.msra.mxu0 0
  %1296 = vmatprep.subr.bf16.mxu0 0
  %1297 = vmatpush2.bf16.msra.mxu0 0
  %1298 = vmatprep.subr.bf16.mxu0 0
  %1299 = vmatpush2.bf16.msra.mxu0 0
  %1300 = vmatprep.subr.bf16.mxu0 0
  %1301 = vmatpush2.bf16.msra.mxu0 0
  %1302 = vmatprep.subr.bf16.mxu0 0
  %1303 = vmatpush2.bf16.msra.mxu0 0
  %1304 = vmatprep.mubr.bf16.mxu0 0
  %1305 = vmatmul.mubr.bf16.gmra.mxu0 %v1271
  %v1306 = vpop.f32.mrf.mxu0
  %v1307 = vadd.f32 0.0, %v1306
  %v1308 = vpop.f32.mrf.mxu0
  %v1309 = vadd.f32 0.0, %v1308
  %v1310 = vpop.f32.mrf.mxu0
  %v1311 = vpop.f32.mrf.mxu0
  %1312 = vdwg.mxu0
  %1313 = vmatprep.subr.bf16.mxu0 0
  %1314 = vmatpush1.bf16.msra.mxu0 %v506
  %1315 = vmatprep.subr.bf16.mxu0 0
  %1316 = vmatpush1.bf16.msra.mxu0 %v503
  %1317 = vmatprep.subr.bf16.mxu0 0
  %1318 = vmatpush1.bf16.msra.mxu0 %v500
  %1319 = vmatprep.subr.bf16.mxu0 0
  %1320 = vmatpush1.bf16.msra.mxu0 %v497
  %1321 = vmatprep.subr.bf16.mxu0 0
  %1322 = vmatpush1.bf16.msra.mxu0 %v494
  %1323 = vmatprep.subr.bf16.mxu0 0
  %1324 = vmatpush1.bf16.msra.mxu0 %v491
  %1325 = vmatprep.subr.bf16.mxu0 0
  %1326 = vmatpush1.bf16.msra.mxu0 %v488
  %1327 = vmatprep.subr.bf16.mxu0 0
  %1328 = vmatpush1.bf16.msra.mxu0 %v485
  %1329 = vmatprep.subr.bf16.mxu0 0
  %1330 = vmatpush2.bf16.msra.mxu0 0
  %1331 = vmatprep.subr.bf16.mxu0 0
  %1332 = vmatpush2.bf16.msra.mxu0 0
  %1333 = vmatprep.subr.bf16.mxu0 0
  %1334 = vmatpush2.bf16.msra.mxu0 0
  %1335 = vmatprep.subr.bf16.mxu0 0
  %1336 = vmatpush2.bf16.msra.mxu0 0
  %1337 = vmatprep.subr.bf16.mxu0 0
  %1338 = vmatpush2.bf16.msra.mxu0 0
  %1339 = vmatprep.subr.bf16.mxu0 0
  %1340 = vmatpush2.bf16.msra.mxu0 0
  %1341 = vmatprep.subr.bf16.mxu0 0
  %1342 = vmatpush2.bf16.msra.mxu0 0
  %1343 = vmatprep.subr.bf16.mxu0 0
  %1344 = vmatpush2.bf16.msra.mxu0 0
  %1345 = vmatprep.mubr.bf16.mxu0 0
  %1346 = vmatmul.mubr.bf16.gmra.mxu0 %v1271
  %v1347 = vpop.f32.mrf.mxu0
  %v1348 = vadd.f32 0.0, %v1347
  %v1349 = vpop.f32.mrf.mxu0
  %v1350 = vpop.f32.mrf.mxu0
  %v1351 = vpop.f32.mrf.mxu0
  %1352 = vdwg.mxu0
  %v1353 = vadd.f32 %v293, %v1307
  %v1354 = vxor.u32 %v1353, 2147483648
  %v1355 = vmul.f32 %v1354, 1.442695
  %v1356 = vpow.pop %v1355
  %v1357 = vadd.f32 %v1356, 1.0
  %v1358 = vrcp.pop %v1357
  %v1359 = vmul.f32 1.0, %v1358
  %v1360 = vadd.f32 %v295, %v1309
  %v1361 = vxor.u32 %v1360, 2147483648
  %v1362 = vmul.f32 %v1361, 1.442695
  %v1363 = vpow.pop %v1362
  %v1364 = vadd.f32 %v1363, 1.0
  %v1365 = vrcp.pop %v1364
  %v1366 = vmul.f32 1.0, %v1365
  %v1367 = vadd.f32 %v1348, %v399
  %v1368 = vmul.f32 %v1359, %v1367
  %v1369 = vadd.f32 %v359, %v1368
  %v1370 = vtanh.pop %v1369
  %v1371 = vsub.f32 1.0, %v1366
  %v1372 = vmul.f32 %v1371, %v1370
  %v1373 = vmul.f32 %v1366, %v1268
  %v1374 = vadd.f32 %v1372, %v1373
  %s1375 = scalar_lea.vmem %s7, 56
  %1376 = vst [vmem:[%s1375] sm:$0xff] %v1374
  %1377 = vst [vmem:[#allocation2] sm:$0xff] %v1374
  // Predicated region
  $region34: #{forward.3} parent=0 // pred_check
    %p1378 = pneg %p30
  $region35: #{forward.3} parent=0 // pred_check_branch
    %1380 = sbr.rel (%p1378) target = $region37
  $region36: #{forward.3} parent=0 // pred_region
    %v1381 = vld [vmem:[#allocation2] sm:$0xff]
    %1382 = vst [vmem:[%s9] sm:$0xff] %v1381
    %v1383 = vpack.c.bf16 %v1381, %v1381
    %v1384 = vld [vmem:[%s5] sm:$0xf]
    %v1385 = vld [vmem:[%s5 + $0x4] sm:$0xf]
    %v1386 = vld [vmem:[%s5 + $0x8] sm:$0xf]
    %v1387 = vld [vmem:[%s5 + $0xc] sm:$0xf]
    %v1388 = vld [vmem:[%s5 + $0x10] sm:$0xf]
    %v1389 = vld [vmem:[%s5 + $0x14] sm:$0xf]
    %v1390 = vld [vmem:[%s5 + $0x18] sm:$0xf]
    %v1391 = vld [vmem:[%s5 + $0x1c] sm:$0xf]
    %v1392 = vld [vmem:[%s5 + $0x20] sm:$0xf]
    %v1393 = vld [vmem:[%s5 + $0x24] sm:$0xf]
    %v1394 = vld [vmem:[%s5 + $0x28] sm:$0xf]
    %v1395 = vld [vmem:[%s5 + $0x2c] sm:$0xf]
    %v1396 = vld [vmem:[%s5 + $0x30] sm:$0xf]
    %v1397 = vld [vmem:[%s5 + $0x34] sm:$0xf]
    %v1398 = vld [vmem:[%s5 + $0x38] sm:$0xf]
    %v1399 = vld [vmem:[%s5 + $0x3c] sm:$0xf]
    %v1400 = vld [vmem:[%s6] sm:$0x1]
    %v1402 = vlaneseq
    %v1403 = vshrl.u32 %v1402, 7
    %v1404 = vsub.s32 0, %v1403
    %v1405 = vrot.slane %v1400, %v1404
    %v1423 = vunpack.c.l.b16 %v1384
    %v1424 = vunpack.c.l.b16 %v1385
    %v1425 = vunpack.c.l.b16 %v1386
    %v1426 = vunpack.c.l.b16 %v1387
    %v1427 = vunpack.c.l.b16 %v1388
    %v1428 = vunpack.c.l.b16 %v1389
    %v1429 = vunpack.c.l.b16 %v1390
    %v1430 = vunpack.c.l.b16 %v1391
    %v1431 = vunpack.c.l.b16 %v1392
    %v1432 = vunpack.c.l.b16 %v1393
    %v1433 = vunpack.c.l.b16 %v1394
    %v1434 = vunpack.c.l.b16 %v1395
    %v1435 = vunpack.c.l.b16 %v1396
    %v1436 = vunpack.c.l.b16 %v1397
    %v1437 = vunpack.c.l.b16 %v1398
    %v1438 = vunpack.c.l.b16 %v1399
    %v1439 = vpack.c.b16 %v1424, %v1423
    %v1440 = vpack.c.b16 %v1426, %v1425
    %v1441 = vpack.c.b16 %v1428, %v1427
    %v1442 = vpack.c.b16 %v1430, %v1429
    %v1443 = vpack.c.b16 %v1432, %v1431
    %v1444 = vpack.c.b16 %v1434, %v1433
    %v1445 = vpack.c.b16 %v1436, %v1435
    %v1446 = vpack.c.b16 %v1438, %v1437
    %1455 = vmatprep.subr.bf16.mxu0 0
    %1456 = vmatpush1.bf16.msra.mxu0 %v1446
    %1457 = vmatprep.subr.bf16.mxu0 0
    %1458 = vmatpush1.bf16.msra.mxu0 %v1445
    %1459 = vmatprep.subr.bf16.mxu0 0
    %1460 = vmatpush1.bf16.msra.mxu0 %v1444
    %1461 = vmatprep.subr.bf16.mxu0 0
    %1462 = vmatpush1.bf16.msra.mxu0 %v1443
    %1463 = vmatprep.subr.bf16.mxu0 0
    %1464 = vmatpush1.bf16.msra.mxu0 %v1442
    %1465 = vmatprep.subr.bf16.mxu0 0
    %1466 = vmatpush1.bf16.msra.mxu0 %v1441
    %1467 = vmatprep.subr.bf16.mxu0 0
    %1468 = vmatpush1.bf16.msra.mxu0 %v1440
    %1469 = vmatprep.subr.bf16.mxu0 0
    %1470 = vmatpush1.bf16.msra.mxu0 %v1439
    %1471 = vmatprep.subr.bf16.mxu0 0
    %1472 = vmatpush2.bf16.msra.mxu0 0
    %1473 = vmatprep.subr.bf16.mxu0 0
    %1474 = vmatpush2.bf16.msra.mxu0 0
    %1475 = vmatprep.subr.bf16.mxu0 0
    %1476 = vmatpush2.bf16.msra.mxu0 0
    %1477 = vmatprep.subr.bf16.mxu0 0
    %1478 = vmatpush2.bf16.msra.mxu0 0
    %1479 = vmatprep.subr.bf16.mxu0 0
    %1480 = vmatpush2.bf16.msra.mxu0 0
    %1481 = vmatprep.subr.bf16.mxu0 0
    %1482 = vmatpush2.bf16.msra.mxu0 0
    %1483 = vmatprep.subr.bf16.mxu0 0
    %1484 = vmatpush2.bf16.msra.mxu0 0
    %1485 = vmatprep.subr.bf16.mxu0 0
    %1486 = vmatpush2.bf16.msra.mxu0 0
    %1487 = vmatprep.mubr.bf16.mxu0 0
    %1488 = vmatmul.mubr.bf16.gmra.mxu0 %v1383
    %v1489 = vpop.f32.mrf.mxu0
    %v1490 = vadd.f32 %v1405, %v1489
    %v1491 = vpop.f32.mrf.mxu0
    %v1492 = vpop.f32.mrf.mxu0
    %v1493 = vpop.f32.mrf.mxu0
    %1494 = vdwg.mxu0
    %1495 = vst [vmem:[%s8] sm:$0xff] %v1490
  $region37: #{forward.3} parent=0 // pred_fallthru
    _
  // Predicated region
  $region38: #{forward.3} parent=0 // pred_check
    _
  $region39: #{forward.3} parent=0 // pred_check_branch
    %1497 = sbr.rel (0) target = $region41
  $region40: #{forward.3} parent=0 // pred_region
    _
  $region41: #{forward.3} parent=0 // pred_fallthru
    _
  // Predicated region
  $region42: #{forward.3} parent=0 // pred_check
    _
  $region43: #{forward.3} parent=0 // pred_check_branch
    %1499 = sbr.rel (0) target = $region45
  $region44: #{forward.3} parent=0 // pred_region
    _
  $region45: #{forward.3} parent=0 // pred_fallthru
    _
  // Predicated region
  $region46: #{forward.3} parent=0 // pred_check
    _
  $region47: #{forward.3} parent=0 // pred_check_branch
    %1501 = sbr.rel (0) target = $region49
  $region48: #{forward.3} parent=0 // pred_region
    _
  $region49: #{forward.3} parent=0 // pred_fallthru
    _
  // Predicated region
  $region50: #{forward.3} parent=0 // pred_check
    _
  $region51: #{forward.3} parent=0 // pred_check_branch
    %1503 = sbr.rel (0) target = $region53
  $region52: #{forward.3} parent=0 // pred_region
    _
  $region53: #{forward.3} parent=0 // pred_fallthru
    _
  // Predicated region
  $region54: #{forward.3} parent=0 // pred_check
    _
  $region55: #{forward.3} parent=0 // pred_check_branch
    %1505 = sbr.rel (0) target = $region57
  $region56: #{forward.3} parent=0 // pred_region
    _
  $region57: #{forward.3} parent=0 // pred_fallthru
    _
  // Predicated region
  $region58: #{forward.3} parent=0 // pred_check
    _
  $region59: #{forward.3} parent=0 // pred_check_branch
    %1507 = sbr.rel (0) target = $region61
  $region60: #{forward.3} parent=0 // pred_region
    _
  $region61: #{forward.3} parent=0 // pred_fallthru
    _

// kernel: forward.2
$region0: #{forward.2}
  #allocation0 [shape = 'u32[]', space=smem, size = 0x4, offset = 0x4, fixed_abs, tag = 'smem constant byte address 0x4 - core index']
  #allocation1 [shape = 'u32[144,128]{1,0:T(1,128)}', space=vmem, size = 0x12000, scoped, tag = 'internal scratch']
  #allocation2 [shape = 'f32[8,128]{1,0:T(8,128)}', space=vmem, size = 0x1000, scoped, tag = 'scratch operand']
  %s0 = inlined_call_operand.vmem [shape: f32[8,8,16], index: 0, kind: input, shape index: {}]
  %s1 = inlined_call_operand.hbm [shape: bf16[16,384], index: 1, kind: input, shape index: {}]
  %s2 = inlined_call_operand.hbm [shape: bf16[128,384], index: 2, kind: input, shape index: {}]
  %s3 = inlined_call_operand.vmem [shape: f32[1,384], index: 3, kind: input, shape index: {}]
  %s4 = inlined_call_operand.vmem [shape: f32[1,128], index: 4, kind: input, shape index: {}]
  %s5 = inlined_call_operand.vmem [shape: f32[8,8,128], index: 5, kind: output, shape index: {}]
  %s6 = sld [smem:[#allocation0]]
  $region42: #{forward.2} parent=0
    _
  %s8 = ssub.s32 1, %s6
  %s9 = scalar_select 0, %s8, %s6
  $region1: #{forward.2} parent=0
    #allocation3 [shape = 'u8[12288]{0}', space=vmem, size = 0x3000, scoped, tag = 'input window, operand 1, single buffered']
    #allocation4 [shape = 's32[1]{0}', space=sflag, size = 0x4, scoped, tag = 'scoped memory for forward.2']
    #allocation5 [shape = 'u8[98304]{0}', space=vmem, size = 0x18000, scoped, tag = 'input window, operand 2, single buffered']
    #allocation6 [shape = 's32[1]{0}', space=sflag, size = 0x4, scoped, tag = 'scoped memory for forward.2']
    %10 = vsyncpa [#allocation4], 0
    %11 = vsyncpa [#allocation6], 0
    // Predicated region
    $region2: #{forward.2} parent=1 // pred_check
      _
    $region3: #{forward.2} parent=1 // pred_check_branch
      %13 = sbr.rel (0) target = $region5
    $region4: #{forward.2} parent=1 // pred_region
      _
    $region5: #{forward.2} parent=1 // pred_fallthru
      _
    // Predicated region
    $region6: #{forward.2} parent=1 // pred_check
      _
    $region7: #{forward.2} parent=1 // pred_check_branch
      %15 = sbr.rel (0) target = $region9
    $region8: #{forward.2} parent=1 // pred_region
      %s17 = ssub.s32 384, 384
      %18 = vsyncadd [#allocation4], %s17
      %s19 = sshll.u32 [#allocation3], 4
      %s20 = int_to_ptr.vmem [resolvable:$true] %s19
      %25 = dma.hbm_to_vmem [thread:$0]  %s1, 384, %s20, [#allocation4], 192, 192, 12
    $region9: #{forward.2} parent=1 // pred_fallthru
      _
    // Predicated region
    $region10: #{forward.2} parent=1 // pred_check
      _
    $region11: #{forward.2} parent=1 // pred_check_branch
      %27 = sbr.rel (0) target = $region13
    $region12: #{forward.2} parent=1 // pred_region
      %s29 = ssub.s32 3072, 3072
      %30 = vsyncadd [#allocation6], %s29
      %s31 = sshll.u32 [#allocation5], 4
      %s32 = int_to_ptr.vmem [resolvable:$true] %s31
      %37 = dma.hbm_to_vmem [thread:$0]  %s2, 3072, %s32, [#allocation6], 192, 192, 12
    $region13: #{forward.2} parent=1 // pred_fallthru
      _
    // Predicated region
    $region14: #{forward.2} parent=1 // pred_check
      _
    $region15: #{forward.2} parent=1 // pred_check_branch
      %39 = sbr.rel (0) target = $region17
    $region16: #{forward.2} parent=1 // pred_region
      _
    $region17: #{forward.2} parent=1 // pred_fallthru
      _
    // Predicated region
    $region18: #{forward.2} parent=1 // pred_check
      _
    $region19: #{forward.2} parent=1 // pred_check_branch
      %41 = sbr.rel (0) target = $region21
    $region20: #{forward.2} parent=1 // pred_region
      _
    $region21: #{forward.2} parent=1 // pred_fallthru
      _
    // Predicated region
    $region22: #{forward.2} parent=1 // pred_check
      _
    $region23: #{forward.2} parent=1 // pred_check_branch
      %43 = sbr.rel (0) target = $region25
    $region24: #{forward.2} parent=1 // pred_region
      %44 = dma.done [#allocation4], 384
    $region25: #{forward.2} parent=1 // pred_fallthru
      _
    // Predicated region
    $region26: #{forward.2} parent=1 // pred_check
      _
    $region27: #{forward.2} parent=1 // pred_check_branch
      %46 = sbr.rel (0) target = $region29
    $region28: #{forward.2} parent=1 // pred_region
      %47 = dma.done [#allocation6], 3072
    $region29: #{forward.2} parent=1 // pred_fallthru
      _
    %p49 = scmp.eq.s32.totalorder 0, 0
    // Predicated region
    $region30: #{forward.2} parent=1 // pred_check
      %p50 = pneg %p49
    $region31: #{forward.2} parent=1 // pred_check_branch
      %52 = sbr.rel (%p50) target = $region33
    $region32: #{forward.2} parent=1 // pred_region
      %53 = vst [vmem:[#allocation2] sm:$0xff] 0.0
    $region33: #{forward.2} parent=1 // pred_fallthru
      _
    %v54 = vld [vmem:[%s0] sm:$0xff]
    %v55 = vld [vmem:[%s0 + $0x8] sm:$0xff]
    %v56 = vld [vmem:[%s0 + $0x10] sm:$0xff]
    %v57 = vld [vmem:[%s0 + $0x18] sm:$0xff]
    %v58 = vld [vmem:[%s0 + $0x20] sm:$0xff]
    %v59 = vld [vmem:[%s0 + $0x28] sm:$0xff]
    %v60 = vld [vmem:[%s0 + $0x30] sm:$0xff]
    %v61 = vld [vmem:[%s0 + $0x38] sm:$0xff]
    %v62 = vpack.c.bf16 %v55, %v54
    %v63 = vpack.c.bf16 %v57, %v56
    %v64 = vpack.c.bf16 %v59, %v58
    %v65 = vpack.c.bf16 %v61, %v60
    %v66 = vld [vmem:[#allocation3] sm:$0xff]
    %v67 = vld [vmem:[#allocation3 + $0x8] sm:$0xf]
    %v68 = vld [vmem:[#allocation3 + $0xc] sm:$0xff]
    %v69 = vld [vmem:[#allocation3 + $0x14] sm:$0xf]
    %v70 = vld [vmem:[%s3] sm:$0x7]
    %v72 = vlaneseq
    %v73 = vshrl.u32 %v72, 7
    %v74 = vsub.s32 0, %v73
    %v75 = vrot.slane %v70, %v74
    %v76 = vlaneseq
    %v77 = vshrl.u32 %v76, 7
    %v78 = vsub.s32 1, %v77
    %v79 = vrot.slane %v70, %v78
    %v80 = vlaneseq
    %v81 = vshrl.u32 %v80, 7
    %v82 = vsub.s32 2, %v81
    %v83 = vrot.slane %v70, %v82
    %v91 = vunpack.c.l.b16 %v66
    %v92 = vunpack.c.h.b16 %v66
    %v93 = vunpack.c.l.b16 %v67
    %v94 = vunpack.c.l.b16 %v68
    %v95 = vunpack.c.h.b16 %v68
    %v96 = vunpack.c.l.b16 %v69
    %v97 = vpack.c.b16 %v94, %v91
    %v98 = vpack.c.b16 %v95, %v92
    %v99 = vpack.c.b16 %v96, %v93
    %vm103 = vcmask 130048
    %v105 = vsel %vm103, %v62, 0
    %v108 = vsel %vm103, %v63, 0
    %v111 = vsel %vm103, %v64, 0
    %v114 = vsel %vm103, %v65, 0
    %116 = vmatprep.subr.bf16.mxu0 0
    %117 = vmatpush1.bf16.msra.mxu0 0
    %118 = vmatprep.subr.bf16.mxu0 0
    %119 = vmatpush1.bf16.msra.mxu0 0
    %120 = vmatprep.subr.bf16.mxu0 0
    %121 = vmatpush1.bf16.msra.mxu0 0
    %122 = vmatprep.subr.bf16.mxu0 0
    %123 = vmatpush1.bf16.msra.mxu0 0
    %124 = vmatprep.subr.bf16.mxu0 0
    %125 = vmatpush1.bf16.msra.mxu0 0
    %126 = vmatprep.subr.bf16.mxu0 0
    %127 = vmatpush1.bf16.msra.mxu0 0
    %128 = vmatprep.subr.bf16.mxu0 0
    %129 = vmatpush1.bf16.msra.mxu0 0
    %130 = vmatprep.subr.bf16.mxu0 %v98
    %131 = vmatpush1.bf16.msra.mxu0 %v97
    %132 = vmatprep.subr.bf16.mxu0 0
    %133 = vmatpush2.bf16.msra.mxu0 0
    %134 = vmatprep.subr.bf16.mxu0 0
    %135 = vmatpush2.bf16.msra.mxu0 0
    %136 = vmatprep.subr.bf16.mxu0 0
    %137 = vmatpush2.bf16.msra.mxu0 0
    %138 = vmatprep.subr.bf16.mxu0 0
    %139 = vmatpush2.bf16.msra.mxu0 0
    %140 = vmatprep.subr.bf16.mxu0 0
    %141 = vmatpush2.bf16.msra.mxu0 0
    %142 = vmatprep.subr.bf16.mxu0 0
    %143 = vmatpush2.bf16.msra.mxu0 0
    %144 = vmatprep.subr.bf16.mxu0 0
    %145 = vmatpush2.bf16.msra.mxu0 0
    %146 = vmatprep.subr.bf16.mxu0 0
    %147 = vmatpush2.bf16.msra.mxu0 0
    %148 = vmatprep.mubr.bf16.mxu0 0
    %149 = vmatmul.mubr.bf16.gmra.mxu0 %v105
    %v150 = vpop.f32.mrf.mxu0
    %v151 = vadd.f32 %v75, %v150
    %v152 = vpop.f32.mrf.mxu0
    %v153 = vadd.f32 %v79, %v152
    %v154 = vpop.f32.mrf.mxu0
    %v155 = vadd.f32 %v75, %v154
    %v156 = vpop.f32.mrf.mxu0
    %v157 = vadd.f32 %v79, %v156
    %158 = vmatprep.mubr.bf16.mxu0 0
    %159 = vmatmul.mubr.bf16.gmra.mxu0 %v108
    %v160 = vpop.f32.mrf.mxu0
    %v161 = vadd.f32 %v75, %v160
    %v162 = vpop.f32.mrf.mxu0
    %v163 = vadd.f32 %v79, %v162
    %v164 = vpop.f32.mrf.mxu0
    %v165 = vadd.f32 %v75, %v164
    %v166 = vpop.f32.mrf.mxu0
    %v167 = vadd.f32 %v79, %v166
    %168 = vmatprep.mubr.bf16.mxu0 0
    %169 = vmatmul.mubr.bf16.gmra.mxu0 %v111
    %v170 = vpop.f32.mrf.mxu0
    %v171 = vadd.f32 %v75, %v170
    %v172 = vpop.f32.mrf.mxu0
    %v173 = vadd.f32 %v79, %v172
    %v174 = vpop.f32.mrf.mxu0
    %v175 = vadd.f32 %v75, %v174
    %v176 = vpop.f32.mrf.mxu0
    %v177 = vadd.f32 %v79, %v176
    %178 = vmatprep.mubr.bf16.mxu0 0
    %179 = vmatmul.mubr.bf16.gmra.mxu0 %v114
    %v180 = vpop.f32.mrf.mxu0
    %v181 = vadd.f32 %v75, %v180
    %v182 = vpop.f32.mrf.mxu0
    %v183 = vadd.f32 %v79, %v182
    %v184 = vpop.f32.mrf.mxu0
    %v185 = vadd.f32 %v75, %v184
    %v186 = vpop.f32.mrf.mxu0
    %v187 = vadd.f32 %v79, %v186
    %188 = vdwg.mxu0
    %189 = vmatprep.subr.bf16.mxu0 0
    %190 = vmatpush1.bf16.msra.mxu0 0
    %191 = vmatprep.subr.bf16.mxu0 0
    %192 = vmatpush1.bf16.msra.mxu0 0
    %193 = vmatprep.subr.bf16.mxu0 0
    %194 = vmatpush1.bf16.msra.mxu0 0
    %195 = vmatprep.subr.bf16.mxu0 0
    %196 = vmatpush1.bf16.msra.mxu0 0
    %197 = vmatprep.subr.bf16.mxu0 0
    %198 = vmatpush1.bf16.msra.mxu0 0
    %199 = vmatprep.subr.bf16.mxu0 0
    %200 = vmatpush1.bf16.msra.mxu0 0
    %201 = vmatprep.subr.bf16.mxu0 0
    %202 = vmatpush1.bf16.msra.mxu0 0
    %203 = vmatprep.subr.bf16.mxu0 0
    %204 = vmatpush1.bf16.msra.mxu0 %v99
    %205 = vmatprep.subr.bf16.mxu0 0
    %206 = vmatpush2.bf16.msra.mxu0 0
    %207 = vmatprep.subr.bf16.mxu0 0
    %208 = vmatpush2.bf16.msra.mxu0 0
    %209 = vmatprep.subr.bf16.mxu0 0
    %210 = vmatpush2.bf16.msra.mxu0 0
    %211 = vmatprep.subr.bf16.mxu0 0
    %212 = vmatpush2.bf16.msra.mxu0 0
    %213 = vmatprep.subr.bf16.mxu0 0
    %214 = vmatpush2.bf16.msra.mxu0 0
    %215 = vmatprep.subr.bf16.mxu0 0
    %216 = vmatpush2.bf16.msra.mxu0 0
    %217 = vmatprep.subr.bf16.mxu0 0
    %218 = vmatpush2.bf16.msra.mxu0 0
    %219 = vmatprep.subr.bf16.mxu0 0
    %220 = vmatpush2.bf16.msra.mxu0 0
    %221 = vmatprep.mubr.bf16.mxu0 0
    %222 = vmatmul.mubr.bf16.gmra.mxu0 %v105
    %v223 = vpop.f32.mrf.mxu0
    %v224 = vadd.f32 %v83, %v223
    %v225 = vpop.f32.mrf.mxu0
    %v226 = vpop.f32.mrf.mxu0
    %v227 = vadd.f32 %v83, %v226
    %v228 = vpop.f32.mrf.mxu0
    %229 = vmatprep.mubr.bf16.mxu0 0
    %230 = vmatmul.mubr.bf16.gmra.mxu0 %v108
    %v231 = vpop.f32.mrf.mxu0
    %v232 = vadd.f32 %v83, %v231
    %v233 = vpop.f32.mrf.mxu0
    %v234 = vpop.f32.mrf.mxu0
    %v235 = vadd.f32 %v83, %v234
    %v236 = vpop.f32.mrf.mxu0
    %237 = vmatprep.mubr.bf16.mxu0 0
    %238 = vmatmul.mubr.bf16.gmra.mxu0 %v111
    %v239 = vpop.f32.mrf.mxu0
    %v240 = vadd.f32 %v83, %v239
    %v241 = vpop.f32.mrf.mxu0
    %v242 = vpop.f32.mrf.mxu0
    %v243 = vadd.f32 %v83, %v242
    %v244 = vpop.f32.mrf.mxu0
    %245 = vmatprep.mubr.bf16.mxu0 0
    %246 = vmatmul.mubr.bf16.gmra.mxu0 %v114
    %v247 = vpop.f32.mrf.mxu0
    %v248 = vadd.f32 %v83, %v247
    %v249 = vpop.f32.mrf.mxu0
    %v250 = vpop.f32.mrf.mxu0
    %v251 = vadd.f32 %v83, %v250
    %v252 = vpop.f32.mrf.mxu0
    %253 = vdwg.mxu0
    %v254 = vld [vmem:[#allocation5] sm:$0xff]
    %v255 = vld [vmem:[#allocation5 + $0x8] sm:$0xf]
    %v256 = vld [vmem:[#allocation5 + $0xc] sm:$0xff]
    %v257 = vld [vmem:[#allocation5 + $0x14] sm:$0xf]
    %v258 = vld [vmem:[#allocation5 + $0x18] sm:$0xff]
    %v259 = vld [vmem:[#allocation5 + $0x20] sm:$0xf]
    %v260 = vld [vmem:[#allocation5 + $0x24] sm:$0xff]
    %v261 = vld [vmem:[#allocation5 + $0x2c] sm:$0xf]
    %v262 = vld [vmem:[#allocation5 + $0x30] sm:$0xff]
    %v263 = vld [vmem:[#allocation5 + $0x38] sm:$0xf]
    %v264 = vld [vmem:[#allocation5 + $0x3c] sm:$0xff]
    %v265 = vld [vmem:[#allocation5 + $0x44] sm:$0xf]
    %v266 = vld [vmem:[#allocation5 + $0x48] sm:$0xff]
    %v267 = vld [vmem:[#allocation5 + $0x50] sm:$0xf]
    %v268 = vld [vmem:[#allocation5 + $0x54] sm:$0xff]
    %v269 = vld [vmem:[#allocation5 + $0x5c] sm:$0xf]
    %v270 = vld [vmem:[#allocation5 + $0x60] sm:$0xff]
    %v271 = vld [vmem:[#allocation5 + $0x68] sm:$0xf]
    %v272 = vld [vmem:[#allocation5 + $0x6c] sm:$0xff]
    %v273 = vld [vmem:[#allocation5 + $0x74] sm:$0xf]
    %v274 = vld [vmem:[#allocation5 + $0x78] sm:$0xff]
    %v275 = vld [vmem:[#allocation5 + $0x80] sm:$0xf]
    %v276 = vld [vmem:[#allocation5 + $0x84] sm:$0xff]
    %v277 = vld [vmem:[#allocation5 + $0x8c] sm:$0xf]
    %v278 = vld [vmem:[#allocation5 + $0x90] sm:$0xff]
    %v279 = vld [vmem:[#allocation5 + $0x98] sm:$0xf]
    %v280 = vld [vmem:[#allocation5 + $0x9c] sm:$0xff]
    %v281 = vld [vmem:[#allocation5 + $0xa4] sm:$0xf]
    %v282 = vld [vmem:[#allocation5 + $0xa8] sm:$0xff]
    %v283 = vld [vmem:[#allocation5 + $0xb0] sm:$0xf]
    %v284 = vld [vmem:[#allocation5 + $0xb4] sm:$0xff]
    %v285 = vld [vmem:[#allocation5 + $0xbc] sm:$0xf]
    %v286 = vld [vmem:[%s4] sm:$0x1]
    %v288 = vlaneseq
    %v289 = vshrl.u32 %v288, 7
    %v290 = vsub.s32 0, %v289
    %v291 = vrot.slane %v286, %v290
    %v293 = vld [vmem:[#allocation2] sm:$0xff]
    %v294 = vpack.c.bf16 %v293, %v293
    %v327 = vunpack.c.l.b16 %v254
    %v328 = vunpack.c.h.b16 %v254
    %v329 = vunpack.c.l.b16 %v255
    %v330 = vunpack.c.l.b16 %v256
    %v331 = vunpack.c.h.b16 %v256
    %v332 = vunpack.c.l.b16 %v257
    %v333 = vunpack.c.l.b16 %v258
    %v334 = vunpack.c.h.b16 %v258
    %v335 = vunpack.c.l.b16 %v259
    %v336 = vunpack.c.l.b16 %v260
    %v337 = vunpack.c.h.b16 %v260
    %v338 = vunpack.c.l.b16 %v261
    %v339 = vunpack.c.l.b16 %v262
    %v340 = vunpack.c.h.b16 %v262
    %v341 = vunpack.c.l.b16 %v263
    %v342 = vunpack.c.l.b16 %v264
    %v343 = vunpack.c.h.b16 %v264
    %v344 = vunpack.c.l.b16 %v265
    %v345 = vunpack.c.l.b16 %v266
    %v346 = vunpack.c.h.b16 %v266
    %v347 = vunpack.c.l.b16 %v267
    %v348 = vunpack.c.l.b16 %v268
    %v349 = vunpack.c.h.b16 %v268
    %v350 = vunpack.c.l.b16 %v269
    %v351 = vunpack.c.l.b16 %v270
    %v352 = vunpack.c.h.b16 %v270
    %v353 = vunpack.c.l.b16 %v271
    %v354 = vunpack.c.l.b16 %v272
    %v355 = vunpack.c.h.b16 %v272
    %v356 = vunpack.c.l.b16 %v273
    %v357 = vunpack.c.l.b16 %v274
    %v358 = vunpack.c.h.b16 %v274
    %v359 = vunpack.c.l.b16 %v275
    %v360 = vunpack.c.l.b16 %v276
    %v361 = vunpack.c.h.b16 %v276
    %v362 = vunpack.c.l.b16 %v277
    %v363 = vunpack.c.l.b16 %v278
    %v364 = vunpack.c.h.b16 %v278
    %v365 = vunpack.c.l.b16 %v279
    %v366 = vunpack.c.l.b16 %v280
    %v367 = vunpack.c.h.b16 %v280
    %v368 = vunpack.c.l.b16 %v281
    %v369 = vunpack.c.l.b16 %v282
    %v370 = vunpack.c.h.b16 %v282
    %v371 = vunpack.c.l.b16 %v283
    %v372 = vunpack.c.l.b16 %v284
    %v373 = vunpack.c.h.b16 %v284
    %v374 = vunpack.c.l.b16 %v285
    %v375 = vpack.c.b16 %v330, %v327
    %v376 = vpack.c.b16 %v331, %v328
    %v377 = vpack.c.b16 %v332, %v329
    %v378 = vpack.c.b16 %v336, %v333
    %v379 = vpack.c.b16 %v337, %v334
    %v380 = vpack.c.b16 %v338, %v335
    %v381 = vpack.c.b16 %v342, %v339
    %v382 = vpack.c.b16 %v343, %v340
    %v383 = vpack.c.b16 %v344, %v341
    %v384 = vpack.c.b16 %v348, %v345
    %v385 = vpack.c.b16 %v349, %v346
    %v386 = vpack.c.b16 %v350, %v347
    %v387 = vpack.c.b16 %v354, %v351
    %v388 = vpack.c.b16 %v355, %v352
    %v389 = vpack.c.b16 %v356, %v353
    %v390 = vpack.c.b16 %v360, %v357
    %v391 = vpack.c.b16 %v361, %v358
    %v392 = vpack.c.b16 %v362, %v359
    %v393 = vpack.c.b16 %v366, %v363
    %v394 = vpack.c.b16 %v367, %v364
    %v395 = vpack.c.b16 %v368, %v365
    %v396 = vpack.c.b16 %v372, %v369
    %v397 = vpack.c.b16 %v373, %v370
    %v398 = vpack.c.b16 %v374, %v371
    %423 = vmatprep.subr.bf16.mxu0 %v397
    %424 = vmatpush1.bf16.msra.mxu0 %v396
    %425 = vmatprep.subr.bf16.mxu0 %v394
    %426 = vmatpush1.bf16.msra.mxu0 %v393
    %427 = vmatprep.subr.bf16.mxu0 %v391
    %428 = vmatpush1.bf16.msra.mxu0 %v390
    %429 = vmatprep.subr.bf16.mxu0 %v388
    %430 = vmatpush1.bf16.msra.mxu0 %v387
    %431 = vmatprep.subr.bf16.mxu0 %v385
    %432 = vmatpush1.bf16.msra.mxu0 %v384
    %433 = vmatprep.subr.bf16.mxu0 %v382
    %434 = vmatpush1.bf16.msra.mxu0 %v381
    %435 = vmatprep.subr.bf16.mxu0 %v379
    %436 = vmatpush1.bf16.msra.mxu0 %v378
    %437 = vmatprep.subr.bf16.mxu0 %v376
    %438 = vmatpush1.bf16.msra.mxu0 %v375
    %439 = vmatprep.subr.bf16.mxu0 0
    %440 = vmatpush2.bf16.msra.mxu0 0
    %441 = vmatprep.subr.bf16.mxu0 0
    %442 = vmatpush2.bf16.msra.mxu0 0
    %443 = vmatprep.subr.bf16.mxu0 0
    %444 = vmatpush2.bf16.msra.mxu0 0
    %445 = vmatprep.subr.bf16.mxu0 0
    %446 = vmatpush2.bf16.msra.mxu0 0
    %447 = vmatprep.subr.bf16.mxu0 0
    %448 = vmatpush2.bf16.msra.mxu0 0
    %449 = vmatprep.subr.bf16.mxu0 0
    %450 = vmatpush2.bf16.msra.mxu0 0
    %451 = vmatprep.subr.bf16.mxu0 0
    %452 = vmatpush2.bf16.msra.mxu0 0
    %453 = vmatprep.subr.bf16.mxu0 0
    %454 = vmatpush2.bf16.msra.mxu0 0
    %455 = vmatprep.mubr.bf16.mxu0 0
    %456 = vmatmul.mubr.bf16.gmra.mxu0 %v294
    %v457 = vpop.f32.mrf.mxu0
    %v458 = vadd.f32 0.0, %v457
    %v459 = vpop.f32.mrf.mxu0
    %v460 = vadd.f32 0.0, %v459
    %v461 = vpop.f32.mrf.mxu0
    %v462 = vpop.f32.mrf.mxu0
    %463 = vdwg.mxu0
    %464 = vmatprep.subr.bf16.mxu0 0
    %465 = vmatpush1.bf16.msra.mxu0 %v398
    %466 = vmatprep.subr.bf16.mxu0 0
    %467 = vmatpush1.bf16.msra.mxu0 %v395
    %468 = vmatprep.subr.bf16.mxu0 0
    %469 = vmatpush1.bf16.msra.mxu0 %v392
    %470 = vmatprep.subr.bf16.mxu0 0
    %471 = vmatpush1.bf16.msra.mxu0 %v389
    %472 = vmatprep.subr.bf16.mxu0 0
    %473 = vmatpush1.bf16.msra.mxu0 %v386
    %474 = vmatprep.subr.bf16.mxu0 0
    %475 = vmatpush1.bf16.msra.mxu0 %v383
    %476 = vmatprep.subr.bf16.mxu0 0
    %477 = vmatpush1.bf16.msra.mxu0 %v380
    %478 = vmatprep.subr.bf16.mxu0 0
    %479 = vmatpush1.bf16.msra.mxu0 %v377
    %480 = vmatprep.subr.bf16.mxu0 0
    %481 = vmatpush2.bf16.msra.mxu0 0
    %482 = vmatprep.subr.bf16.mxu0 0
    %483 = vmatpush2.bf16.msra.mxu0 0
    %484 = vmatprep.subr.bf16.mxu0 0
    %485 = vmatpush2.bf16.msra.mxu0 0
    %486 = vmatprep.subr.bf16.mxu0 0
    %487 = vmatpush2.bf16.msra.mxu0 0
    %488 = vmatprep.subr.bf16.mxu0 0
    %489 = vmatpush2.bf16.msra.mxu0 0
    %490 = vmatprep.subr.bf16.mxu0 0
    %491 = vmatpush2.bf16.msra.mxu0 0
    %492 = vmatprep.subr.bf16.mxu0 0
    %493 = vmatpush2.bf16.msra.mxu0 0
    %494 = vmatprep.subr.bf16.mxu0 0
    %495 = vmatpush2.bf16.msra.mxu0 0
    %496 = vmatprep.mubr.bf16.mxu0 0
    %497 = vmatmul.mubr.bf16.gmra.mxu0 %v294
    %v498 = vpop.f32.mrf.mxu0
    %v499 = vadd.f32 0.0, %v498
    %v500 = vpop.f32.mrf.mxu0
    %v501 = vpop.f32.mrf.mxu0
    %v502 = vpop.f32.mrf.mxu0
    %503 = vdwg.mxu0
    %v504 = vadd.f32 %v151, %v458
    %v505 = vxor.u32 %v504, 2147483648
    %v506 = vmul.f32 %v505, 1.442695
    %v507 = vpow.pop %v506
    %v508 = vadd.f32 %v507, 1.0
    %v509 = vrcp.pop %v508
    %v510 = vmul.f32 1.0, %v509
    %v511 = vadd.f32 %v153, %v460
    %v512 = vxor.u32 %v511, 2147483648
    %v513 = vmul.f32 %v512, 1.442695
    %v514 = vpow.pop %v513
    %v515 = vadd.f32 %v514, 1.0
    %v516 = vrcp.pop %v515
    %v517 = vmul.f32 1.0, %v516
    %v518 = vadd.f32 %v499, %v291
    %v519 = vmul.f32 %v510, %v518
    %v520 = vadd.f32 %v224, %v519
    %v521 = vtanh.pop %v520
    %v522 = vsub.f32 1.0, %v517
    %v523 = vmul.f32 %v522, %v521
    %v524 = vmul.f32 %v517, %v293
    %v525 = vadd.f32 %v523, %v524
    %526 = vst [vmem:[%s5] sm:$0xff] %v525
    %v527 = vpack.c.bf16 %v525, %v525
    %528 = vmatprep.subr.bf16.mxu0 %v397
    %529 = vmatpush1.bf16.msra.mxu0 %v396
    %530 = vmatprep.subr.bf16.mxu0 %v394
    %531 = vmatpush1.bf16.msra.mxu0 %v393
    %532 = vmatprep.subr.bf16.mxu0 %v391
    %533 = vmatpush1.bf16.msra.mxu0 %v390
    %534 = vmatprep.subr.bf16.mxu0 %v388
    %535 = vmatpush1.bf16.msra.mxu0 %v387
    %536 = vmatprep.subr.bf16.mxu0 %v385
    %537 = vmatpush1.bf16.msra.mxu0 %v384
    %538 = vmatprep.subr.bf16.mxu0 %v382
    %539 = vmatpush1.bf16.msra.mxu0 %v381
    %540 = vmatprep.subr.bf16.mxu0 %v379
    %541 = vmatpush1.bf16.msra.mxu0 %v378
    %542 = vmatprep.subr.bf16.mxu0 %v376
    %543 = vmatpush1.bf16.msra.mxu0 %v375
    %544 = vmatprep.subr.bf16.mxu0 0
    %545 = vmatpush2.bf16.msra.mxu0 0
    %546 = vmatprep.subr.bf16.mxu0 0
    %547 = vmatpush2.bf16.msra.mxu0 0
    %548 = vmatprep.subr.bf16.mxu0 0
    %549 = vmatpush2.bf16.msra.mxu0 0
    %550 = vmatprep.subr.bf16.mxu0 0
    %551 = vmatpush2.bf16.msra.mxu0 0
    %552 = vmatprep.subr.bf16.mxu0 0
    %553 = vmatpush2.bf16.msra.mxu0 0
    %554 = vmatprep.subr.bf16.mxu0 0
    %555 = vmatpush2.bf16.msra.mxu0 0
    %556 = vmatprep.subr.bf16.mxu0 0
    %557 = vmatpush2.bf16.msra.mxu0 0
    %558 = vmatprep.subr.bf16.mxu0 0
    %559 = vmatpush2.bf16.msra.mxu0 0
    %560 = vmatprep.mubr.bf16.mxu0 0
    %561 = vmatmul.mubr.bf16.gmra.mxu0 %v527
    %v562 = vpop.f32.mrf.mxu0
    %v563 = vadd.f32 0.0, %v562
    %v564 = vpop.f32.mrf.mxu0
    %v565 = vadd.f32 0.0, %v564
    %v566 = vpop.f32.mrf.mxu0
    %v567 = vpop.f32.mrf.mxu0
    %568 = vdwg.mxu0
    %569 = vmatprep.subr.bf16.mxu0 0
    %570 = vmatpush1.bf16.msra.mxu0 %v398
    %571 = vmatprep.subr.bf16.mxu0 0
    %572 = vmatpush1.bf16.msra.mxu0 %v395
    %573 = vmatprep.subr.bf16.mxu0 0
    %574 = vmatpush1.bf16.msra.mxu0 %v392
    %575 = vmatprep.subr.bf16.mxu0 0
    %576 = vmatpush1.bf16.msra.mxu0 %v389
    %577 = vmatprep.subr.bf16.mxu0 0
    %578 = vmatpush1.bf16.msra.mxu0 %v386
    %579 = vmatprep.subr.bf16.mxu0 0
    %580 = vmatpush1.bf16.msra.mxu0 %v383
    %581 = vmatprep.subr.bf16.mxu0 0
    %582 = vmatpush1.bf16.msra.mxu0 %v380
    %583 = vmatprep.subr.bf16.mxu0 0
    %584 = vmatpush1.bf16.msra.mxu0 %v377
    %585 = vmatprep.subr.bf16.mxu0 0
    %586 = vmatpush2.bf16.msra.mxu0 0
    %587 = vmatprep.subr.bf16.mxu0 0
    %588 = vmatpush2.bf16.msra.mxu0 0
    %589 = vmatprep.subr.bf16.mxu0 0
    %590 = vmatpush2.bf16.msra.mxu0 0
    %591 = vmatprep.subr.bf16.mxu0 0
    %592 = vmatpush2.bf16.msra.mxu0 0
    %593 = vmatprep.subr.bf16.mxu0 0
    %594 = vmatpush2.bf16.msra.mxu0 0
    %595 = vmatprep.subr.bf16.mxu0 0
    %596 = vmatpush2.bf16.msra.mxu0 0
    %597 = vmatprep.subr.bf16.mxu0 0
    %598 = vmatpush2.bf16.msra.mxu0 0
    %599 = vmatprep.subr.bf16.mxu0 0
    %600 = vmatpush2.bf16.msra.mxu0 0
    %601 = vmatprep.mubr.bf16.mxu0 0
    %602 = vmatmul.mubr.bf16.gmra.mxu0 %v527
    %v603 = vpop.f32.mrf.mxu0
    %v604 = vadd.f32 0.0, %v603
    %v605 = vpop.f32.mrf.mxu0
    %v606 = vpop.f32.mrf.mxu0
    %v607 = vpop.f32.mrf.mxu0
    %608 = vdwg.mxu0
    %v609 = vadd.f32 %v155, %v563
    %v610 = vxor.u32 %v609, 2147483648
    %v611 = vmul.f32 %v610, 1.442695
    %v612 = vpow.pop %v611
    %v613 = vadd.f32 %v612, 1.0
    %v614 = vrcp.pop %v613
    %v615 = vmul.f32 1.0, %v614
    %v616 = vadd.f32 %v157, %v565
    %v617 = vxor.u32 %v616, 2147483648
    %v618 = vmul.f32 %v617, 1.442695
    %v619 = vpow.pop %v618
    %v620 = vadd.f32 %v619, 1.0
    %v621 = vrcp.pop %v620
    %v622 = vmul.f32 1.0, %v621
    %v623 = vadd.f32 %v604, %v291
    %v624 = vmul.f32 %v615, %v623
    %v625 = vadd.f32 %v227, %v624
    %v626 = vtanh.pop %v625
    %v627 = vsub.f32 1.0, %v622
    %v628 = vmul.f32 %v627, %v626
    %v629 = vmul.f32 %v622, %v525
    %v630 = vadd.f32 %v628, %v629
    %s631 = scalar_lea.vmem %s5, 8
    %632 = vst [vmem:[%s631] sm:$0xff] %v630
    %v633 = vpack.c.bf16 %v630, %v630
    %634 = vmatprep.subr.bf16.mxu0 %v397
    %635 = vmatpush1.bf16.msra.mxu0 %v396
    %636 = vmatprep.subr.bf16.mxu0 %v394
    %637 = vmatpush1.bf16.msra.mxu0 %v393
    %638 = vmatprep.subr.bf16.mxu0 %v391
    %639 = vmatpush1.bf16.msra.mxu0 %v390
    %640 = vmatprep.subr.bf16.mxu0 %v388
    %641 = vmatpush1.bf16.msra.mxu0 %v387
    %642 = vmatprep.subr.bf16.mxu0 %v385
    %643 = vmatpush1.bf16.msra.mxu0 %v384
    %644 = vmatprep.subr.bf16.mxu0 %v382
    %645 = vmatpush1.bf16.msra.mxu0 %v381
    %646 = vmatprep.subr.bf16.mxu0 %v379
    %647 = vmatpush1.bf16.msra.mxu0 %v378
    %648 = vmatprep.subr.bf16.mxu0 %v376
    %649 = vmatpush1.bf16.msra.mxu0 %v375
    %650 = vmatprep.subr.bf16.mxu0 0
    %651 = vmatpush2.bf16.msra.mxu0 0
    %652 = vmatprep.subr.bf16.mxu0 0
    %653 = vmatpush2.bf16.msra.mxu0 0
    %654 = vmatprep.subr.bf16.mxu0 0
    %655 = vmatpush2.bf16.msra.mxu0 0
    %656 = vmatprep.subr.bf16.mxu0 0
    %657 = vmatpush2.bf16.msra.mxu0 0
    %658 = vmatprep.subr.bf16.mxu0 0
    %659 = vmatpush2.bf16.msra.mxu0 0
    %660 = vmatprep.subr.bf16.mxu0 0
    %661 = vmatpush2.bf16.msra.mxu0 0
    %662 = vmatprep.subr.bf16.mxu0 0
    %663 = vmatpush2.bf16.msra.mxu0 0
    %664 = vmatprep.subr.bf16.mxu0 0
    %665 = vmatpush2.bf16.msra.mxu0 0
    %666 = vmatprep.mubr.bf16.mxu0 0
    %667 = vmatmul.mubr.bf16.gmra.mxu0 %v633
    %v668 = vpop.f32.mrf.mxu0
    %v669 = vadd.f32 0.0, %v668
    %v670 = vpop.f32.mrf.mxu0
    %v671 = vadd.f32 0.0, %v670
    %v672 = vpop.f32.mrf.mxu0
    %v673 = vpop.f32.mrf.mxu0
    %674 = vdwg.mxu0
    %675 = vmatprep.subr.bf16.mxu0 0
    %676 = vmatpush1.bf16.msra.mxu0 %v398
    %677 = vmatprep.subr.bf16.mxu0 0
    %678 = vmatpush1.bf16.msra.mxu0 %v395
    %679 = vmatprep.subr.bf16.mxu0 0
    %680 = vmatpush1.bf16.msra.mxu0 %v392
    %681 = vmatprep.subr.bf16.mxu0 0
    %682 = vmatpush1.bf16.msra.mxu0 %v389
    %683 = vmatprep.subr.bf16.mxu0 0
    %684 = vmatpush1.bf16.msra.mxu0 %v386
    %685 = vmatprep.subr.bf16.mxu0 0
    %686 = vmatpush1.bf16.msra.mxu0 %v383
    %687 = vmatprep.subr.bf16.mxu0 0
    %688 = vmatpush1.bf16.msra.mxu0 %v380
    %689 = vmatprep.subr.bf16.mxu0 0
    %690 = vmatpush1.bf16.msra.mxu0 %v377
    %691 = vmatprep.subr.bf16.mxu0 0
    %692 = vmatpush2.bf16.msra.mxu0 0
    %693 = vmatprep.subr.bf16.mxu0 0
    %694 = vmatpush2.bf16.msra.mxu0 0
    %695 = vmatprep.subr.bf16.mxu0 0
    %696 = vmatpush2.bf16.msra.mxu0 0
    %697 = vmatprep.subr.bf16.mxu0 0
    %698 = vmatpush2.bf16.msra.mxu0 0
    %699 = vmatprep.subr.bf16.mxu0 0
    %700 = vmatpush2.bf16.msra.mxu0 0
    %701 = vmatprep.subr.bf16.mxu0 0
    %702 = vmatpush2.bf16.msra.mxu0 0
    %703 = vmatprep.subr.bf16.mxu0 0
    %704 = vmatpush2.bf16.msra.mxu0 0
    %705 = vmatprep.subr.bf16.mxu0 0
    %706 = vmatpush2.bf16.msra.mxu0 0
    %707 = vmatprep.mubr.bf16.mxu0 0
    %708 = vmatmul.mubr.bf16.gmra.mxu0 %v633
    %v709 = vpop.f32.mrf.mxu0
    %v710 = vadd.f32 0.0, %v709
    %v711 = vpop.f32.mrf.mxu0
    %v712 = vpop.f32.mrf.mxu0
    %v713 = vpop.f32.mrf.mxu0
    %714 = vdwg.mxu0
    %v715 = vadd.f32 %v161, %v669
    %v716 = vxor.u32 %v715, 2147483648
    %v717 = vmul.f32 %v716, 1.442695
    %v718 = vpow.pop %v717
    %v719 = vadd.f32 %v718, 1.0
    %v720 = vrcp.pop %v719
    %v721 = vmul.f32 1.0, %v720
    %v722 = vadd.f32 %v163, %v671
    %v723 = vxor.u32 %v722, 2147483648
    %v724 = vmul.f32 %v723, 1.442695
    %v725 = vpow.pop %v724
    %v726 = vadd.f32 %v725, 1.0
    %v727 = vrcp.pop %v726
    %v728 = vmul.f32 1.0, %v727
    %v729 = vadd.f32 %v710, %v291
    %v730 = vmul.f32 %v721, %v729
    %v731 = vadd.f32 %v232, %v730
    %v732 = vtanh.pop %v731
    %v733 = vsub.f32 1.0, %v728
    %v734 = vmul.f32 %v733, %v732
    %v735 = vmul.f32 %v728, %v630
    %v736 = vadd.f32 %v734, %v735
    %s737 = scalar_lea.vmem %s5, 16
    %738 = vst [vmem:[%s737] sm:$0xff] %v736
    %v739 = vpack.c.bf16 %v736, %v736
    %740 = vmatprep.subr.bf16.mxu0 %v397
    %741 = vmatpush1.bf16.msra.mxu0 %v396
    %742 = vmatprep.subr.bf16.mxu0 %v394
    %743 = vmatpush1.bf16.msra.mxu0 %v393
    %744 = vmatprep.subr.bf16.mxu0 %v391
    %745 = vmatpush1.bf16.msra.mxu0 %v390
    %746 = vmatprep.subr.bf16.mxu0 %v388
    %747 = vmatpush1.bf16.msra.mxu0 %v387
    %748 = vmatprep.subr.bf16.mxu0 %v385
    %749 = vmatpush1.bf16.msra.mxu0 %v384
    %750 = vmatprep.subr.bf16.mxu0 %v382
    %751 = vmatpush1.bf16.msra.mxu0 %v381
    %752 = vmatprep.subr.bf16.mxu0 %v379
    %753 = vmatpush1.bf16.msra.mxu0 %v378
    %754 = vmatprep.subr.bf16.mxu0 %v376
    %755 = vmatpush1.bf16.msra.mxu0 %v375
    %756 = vmatprep.subr.bf16.mxu0 0
    %757 = vmatpush2.bf16.msra.mxu0 0
    %758 = vmatprep.subr.bf16.mxu0 0
    %759 = vmatpush2.bf16.msra.mxu0 0
    %760 = vmatprep.subr.bf16.mxu0 0
    %761 = vmatpush2.bf16.msra.mxu0 0
    %762 = vmatprep.subr.bf16.mxu0 0
    %763 = vmatpush2.bf16.msra.mxu0 0
    %764 = vmatprep.subr.bf16.mxu0 0
    %765 = vmatpush2.bf16.msra.mxu0 0
    %766 = vmatprep.subr.bf16.mxu0 0
    %767 = vmatpush2.bf16.msra.mxu0 0
    %768 = vmatprep.subr.bf16.mxu0 0
    %769 = vmatpush2.bf16.msra.mxu0 0
    %770 = vmatprep.subr.bf16.mxu0 0
    %771 = vmatpush2.bf16.msra.mxu0 0
    %772 = vmatprep.mubr.bf16.mxu0 0
    %773 = vmatmul.mubr.bf16.gmra.mxu0 %v739
    %v774 = vpop.f32.mrf.mxu0
    %v775 = vadd.f32 0.0, %v774
    %v776 = vpop.f32.mrf.mxu0
    %v777 = vadd.f32 0.0, %v776
    %v778 = vpop.f32.mrf.mxu0
    %v779 = vpop.f32.mrf.mxu0
    %780 = vdwg.mxu0
    %781 = vmatprep.subr.bf16.mxu0 0
    %782 = vmatpush1.bf16.msra.mxu0 %v398
    %783 = vmatprep.subr.bf16.mxu0 0
    %784 = vmatpush1.bf16.msra.mxu0 %v395
    %785 = vmatprep.subr.bf16.mxu0 0
    %786 = vmatpush1.bf16.msra.mxu0 %v392
    %787 = vmatprep.subr.bf16.mxu0 0
    %788 = vmatpush1.bf16.msra.mxu0 %v389
    %789 = vmatprep.subr.bf16.mxu0 0
    %790 = vmatpush1.bf16.msra.mxu0 %v386
    %791 = vmatprep.subr.bf16.mxu0 0
    %792 = vmatpush1.bf16.msra.mxu0 %v383
    %793 = vmatprep.subr.bf16.mxu0 0
    %794 = vmatpush1.bf16.msra.mxu0 %v380
    %795 = vmatprep.subr.bf16.mxu0 0
    %796 = vmatpush1.bf16.msra.mxu0 %v377
    %797 = vmatprep.subr.bf16.mxu0 0
    %798 = vmatpush2.bf16.msra.mxu0 0
    %799 = vmatprep.subr.bf16.mxu0 0
    %800 = vmatpush2.bf16.msra.mxu0 0
    %801 = vmatprep.subr.bf16.mxu0 0
    %802 = vmatpush2.bf16.msra.mxu0 0
    %803 = vmatprep.subr.bf16.mxu0 0
    %804 = vmatpush2.bf16.msra.mxu0 0
    %805 = vmatprep.subr.bf16.mxu0 0
    %806 = vmatpush2.bf16.msra.mxu0 0
    %807 = vmatprep.subr.bf16.mxu0 0
    %808 = vmatpush2.bf16.msra.mxu0 0
    %809 = vmatprep.subr.bf16.mxu0 0
    %810 = vmatpush2.bf16.msra.mxu0 0
    %811 = vmatprep.subr.bf16.mxu0 0
    %812 = vmatpush2.bf16.msra.mxu0 0
    %813 = vmatprep.mubr.bf16.mxu0 0
    %814 = vmatmul.mubr.bf16.gmra.mxu0 %v739
    %v815 = vpop.f32.mrf.mxu0
    %v816 = vadd.f32 0.0, %v815
    %v817 = vpop.f32.mrf.mxu0
    %v818 = vpop.f32.mrf.mxu0
    %v819 = vpop.f32.mrf.mxu0
    %820 = vdwg.mxu0
    %v821 = vadd.f32 %v165, %v775
    %v822 = vxor.u32 %v821, 2147483648
    %v823 = vmul.f32 %v822, 1.442695
    %v824 = vpow.pop %v823
    %v825 = vadd.f32 %v824, 1.0
    %v826 = vrcp.pop %v825
    %v827 = vmul.f32 1.0, %v826
    %v828 = vadd.f32 %v167, %v777
    %v829 = vxor.u32 %v828, 2147483648
    %v830 = vmul.f32 %v829, 1.442695
    %v831 = vpow.pop %v830
    %v832 = vadd.f32 %v831, 1.0
    %v833 = vrcp.pop %v832
    %v834 = vmul.f32 1.0, %v833
    %v835 = vadd.f32 %v816, %v291
    %v836 = vmul.f32 %v827, %v835
    %v837 = vadd.f32 %v235, %v836
    %v838 = vtanh.pop %v837
    %v839 = vsub.f32 1.0, %v834
    %v840 = vmul.f32 %v839, %v838
    %v841 = vmul.f32 %v834, %v736
    %v842 = vadd.f32 %v840, %v841
    %s843 = scalar_lea.vmem %s5, 24
    %844 = vst [vmem:[%s843] sm:$0xff] %v842
    %v845 = vpack.c.bf16 %v842, %v842
    %846 = vmatprep.subr.bf16.mxu0 %v397
    %847 = vmatpush1.bf16.msra.mxu0 %v396
    %848 = vmatprep.subr.bf16.mxu0 %v394
    %849 = vmatpush1.bf16.msra.mxu0 %v393
    %850 = vmatprep.subr.bf16.mxu0 %v391
    %851 = vmatpush1.bf16.msra.mxu0 %v390
    %852 = vmatprep.subr.bf16.mxu0 %v388
    %853 = vmatpush1.bf16.msra.mxu0 %v387
    %854 = vmatprep.subr.bf16.mxu0 %v385
    %855 = vmatpush1.bf16.msra.mxu0 %v384
    %856 = vmatprep.subr.bf16.mxu0 %v382
    %857 = vmatpush1.bf16.msra.mxu0 %v381
    %858 = vmatprep.subr.bf16.mxu0 %v379
    %859 = vmatpush1.bf16.msra.mxu0 %v378
    %860 = vmatprep.subr.bf16.mxu0 %v376
    %861 = vmatpush1.bf16.msra.mxu0 %v375
    %862 = vmatprep.subr.bf16.mxu0 0
    %863 = vmatpush2.bf16.msra.mxu0 0
    %864 = vmatprep.subr.bf16.mxu0 0
    %865 = vmatpush2.bf16.msra.mxu0 0
    %866 = vmatprep.subr.bf16.mxu0 0
    %867 = vmatpush2.bf16.msra.mxu0 0
    %868 = vmatprep.subr.bf16.mxu0 0
    %869 = vmatpush2.bf16.msra.mxu0 0
    %870 = vmatprep.subr.bf16.mxu0 0
    %871 = vmatpush2.bf16.msra.mxu0 0
    %872 = vmatprep.subr.bf16.mxu0 0
    %873 = vmatpush2.bf16.msra.mxu0 0
    %874 = vmatprep.subr.bf16.mxu0 0
    %875 = vmatpush2.bf16.msra.mxu0 0
    %876 = vmatprep.subr.bf16.mxu0 0
    %877 = vmatpush2.bf16.msra.mxu0 0
    %878 = vmatprep.mubr.bf16.mxu0 0
    %879 = vmatmul.mubr.bf16.gmra.mxu0 %v845
    %v880 = vpop.f32.mrf.mxu0
    %v881 = vadd.f32 0.0, %v880
    %v882 = vpop.f32.mrf.mxu0
    %v883 = vadd.f32 0.0, %v882
    %v884 = vpop.f32.mrf.mxu0
    %v885 = vpop.f32.mrf.mxu0
    %886 = vdwg.mxu0
    %887 = vmatprep.subr.bf16.mxu0 0
    %888 = vmatpush1.bf16.msra.mxu0 %v398
    %889 = vmatprep.subr.bf16.mxu0 0
    %890 = vmatpush1.bf16.msra.mxu0 %v395
    %891 = vmatprep.subr.bf16.mxu0 0
    %892 = vmatpush1.bf16.msra.mxu0 %v392
    %893 = vmatprep.subr.bf16.mxu0 0
    %894 = vmatpush1.bf16.msra.mxu0 %v389
    %895 = vmatprep.subr.bf16.mxu0 0
    %896 = vmatpush1.bf16.msra.mxu0 %v386
    %897 = vmatprep.subr.bf16.mxu0 0
    %898 = vmatpush1.bf16.msra.mxu0 %v383
    %899 = vmatprep.subr.bf16.mxu0 0
    %900 = vmatpush1.bf16.msra.mxu0 %v380
    %901 = vmatprep.subr.bf16.mxu0 0
    %902 = vmatpush1.bf16.msra.mxu0 %v377
    %903 = vmatprep.subr.bf16.mxu0 0
    %904 = vmatpush2.bf16.msra.mxu0 0
    %905 = vmatprep.subr.bf16.mxu0 0
    %906 = vmatpush2.bf16.msra.mxu0 0
    %907 = vmatprep.subr.bf16.mxu0 0
    %908 = vmatpush2.bf16.msra.mxu0 0
    %909 = vmatprep.subr.bf16.mxu0 0
    %910 = vmatpush2.bf16.msra.mxu0 0
    %911 = vmatprep.subr.bf16.mxu0 0
    %912 = vmatpush2.bf16.msra.mxu0 0
    %913 = vmatprep.subr.bf16.mxu0 0
    %914 = vmatpush2.bf16.msra.mxu0 0
    %915 = vmatprep.subr.bf16.mxu0 0
    %916 = vmatpush2.bf16.msra.mxu0 0
    %917 = vmatprep.subr.bf16.mxu0 0
    %918 = vmatpush2.bf16.msra.mxu0 0
    %919 = vmatprep.mubr.bf16.mxu0 0
    %920 = vmatmul.mubr.bf16.gmra.mxu0 %v845
    %v921 = vpop.f32.mrf.mxu0
    %v922 = vadd.f32 0.0, %v921
    %v923 = vpop.f32.mrf.mxu0
    %v924 = vpop.f32.mrf.mxu0
    %v925 = vpop.f32.mrf.mxu0
    %926 = vdwg.mxu0
    %v927 = vadd.f32 %v171, %v881
    %v928 = vxor.u32 %v927, 2147483648
    %v929 = vmul.f32 %v928, 1.442695
    %v930 = vpow.pop %v929
    %v931 = vadd.f32 %v930, 1.0
    %v932 = vrcp.pop %v931
    %v933 = vmul.f32 1.0, %v932
    %v934 = vadd.f32 %v173, %v883
    %v935 = vxor.u32 %v934, 2147483648
    %v936 = vmul.f32 %v935, 1.442695
    %v937 = vpow.pop %v936
    %v938 = vadd.f32 %v937, 1.0
    %v939 = vrcp.pop %v938
    %v940 = vmul.f32 1.0, %v939
    %v941 = vadd.f32 %v922, %v291
    %v942 = vmul.f32 %v933, %v941
    %v943 = vadd.f32 %v240, %v942
    %v944 = vtanh.pop %v943
    %v945 = vsub.f32 1.0, %v940
    %v946 = vmul.f32 %v945, %v944
    %v947 = vmul.f32 %v940, %v842
    %v948 = vadd.f32 %v946, %v947
    %s949 = scalar_lea.vmem %s5, 32
    %950 = vst [vmem:[%s949] sm:$0xff] %v948
    %v951 = vpack.c.bf16 %v948, %v948
    %952 = vmatprep.subr.bf16.mxu0 %v397
    %953 = vmatpush1.bf16.msra.mxu0 %v396
    %954 = vmatprep.subr.bf16.mxu0 %v394
    %955 = vmatpush1.bf16.msra.mxu0 %v393
    %956 = vmatprep.subr.bf16.mxu0 %v391
    %957 = vmatpush1.bf16.msra.mxu0 %v390
    %958 = vmatprep.subr.bf16.mxu0 %v388
    %959 = vmatpush1.bf16.msra.mxu0 %v387
    %960 = vmatprep.subr.bf16.mxu0 %v385
    %961 = vmatpush1.bf16.msra.mxu0 %v384
    %962 = vmatprep.subr.bf16.mxu0 %v382
    %963 = vmatpush1.bf16.msra.mxu0 %v381
    %964 = vmatprep.subr.bf16.mxu0 %v379
    %965 = vmatpush1.bf16.msra.mxu0 %v378
    %966 = vmatprep.subr.bf16.mxu0 %v376
    %967 = vmatpush1.bf16.msra.mxu0 %v375
    %968 = vmatprep.subr.bf16.mxu0 0
    %969 = vmatpush2.bf16.msra.mxu0 0
    %970 = vmatprep.subr.bf16.mxu0 0
    %971 = vmatpush2.bf16.msra.mxu0 0
    %972 = vmatprep.subr.bf16.mxu0 0
    %973 = vmatpush2.bf16.msra.mxu0 0
    %974 = vmatprep.subr.bf16.mxu0 0
    %975 = vmatpush2.bf16.msra.mxu0 0
    %976 = vmatprep.subr.bf16.mxu0 0
    %977 = vmatpush2.bf16.msra.mxu0 0
    %978 = vmatprep.subr.bf16.mxu0 0
    %979 = vmatpush2.bf16.msra.mxu0 0
    %980 = vmatprep.subr.bf16.mxu0 0
    %981 = vmatpush2.bf16.msra.mxu0 0
    %982 = vmatprep.subr.bf16.mxu0 0
    %983 = vmatpush2.bf16.msra.mxu0 0
    %984 = vmatprep.mubr.bf16.mxu0 0
    %985 = vmatmul.mubr.bf16.gmra.mxu0 %v951
    %v986 = vpop.f32.mrf.mxu0
    %v987 = vadd.f32 0.0, %v986
    %v988 = vpop.f32.mrf.mxu0
    %v989 = vadd.f32 0.0, %v988
    %v990 = vpop.f32.mrf.mxu0
    %v991 = vpop.f32.mrf.mxu0
    %992 = vdwg.mxu0
    %993 = vmatprep.subr.bf16.mxu0 0
    %994 = vmatpush1.bf16.msra.mxu0 %v398
    %995 = vmatprep.subr.bf16.mxu0 0
    %996 = vmatpush1.bf16.msra.mxu0 %v395
    %997 = vmatprep.subr.bf16.mxu0 0
    %998 = vmatpush1.bf16.msra.mxu0 %v392
    %999 = vmatprep.subr.bf16.mxu0 0
    %1000 = vmatpush1.bf16.msra.mxu0 %v389
    %1001 = vmatprep.subr.bf16.mxu0 0
    %1002 = vmatpush1.bf16.msra.mxu0 %v386
    %1003 = vmatprep.subr.bf16.mxu0 0
    %1004 = vmatpush1.bf16.msra.mxu0 %v383
    %1005 = vmatprep.subr.bf16.mxu0 0
    %1006 = vmatpush1.bf16.msra.mxu0 %v380
    %1007 = vmatprep.subr.bf16.mxu0 0
    %1008 = vmatpush1.bf16.msra.mxu0 %v377
    %1009 = vmatprep.subr.bf16.mxu0 0
    %1010 = vmatpush2.bf16.msra.mxu0 0
    %1011 = vmatprep.subr.bf16.mxu0 0
    %1012 = vmatpush2.bf16.msra.mxu0 0
    %1013 = vmatprep.subr.bf16.mxu0 0
    %1014 = vmatpush2.bf16.msra.mxu0 0
    %1015 = vmatprep.subr.bf16.mxu0 0
    %1016 = vmatpush2.bf16.msra.mxu0 0
    %1017 = vmatprep.subr.bf16.mxu0 0
    %1018 = vmatpush2.bf16.msra.mxu0 0
    %1019 = vmatprep.subr.bf16.mxu0 0
    %1020 = vmatpush2.bf16.msra.mxu0 0
    %1021 = vmatprep.subr.bf16.mxu0 0
    %1022 = vmatpush2.bf16.msra.mxu0 0
    %1023 = vmatprep.subr.bf16.mxu0 0
    %1024 = vmatpush2.bf16.msra.mxu0 0
    %1025 = vmatprep.mubr.bf16.mxu0 0
    %1026 = vmatmul.mubr.bf16.gmra.mxu0 %v951
    %v1027 = vpop.f32.mrf.mxu0
    %v1028 = vadd.f32 0.0, %v1027
    %v1029 = vpop.f32.mrf.mxu0
    %v1030 = vpop.f32.mrf.mxu0
    %v1031 = vpop.f32.mrf.mxu0
    %1032 = vdwg.mxu0
    %v1033 = vadd.f32 %v175, %v987
    %v1034 = vxor.u32 %v1033, 2147483648
    %v1035 = vmul.f32 %v1034, 1.442695
    %v1036 = vpow.pop %v1035
    %v1037 = vadd.f32 %v1036, 1.0
    %v1038 = vrcp.pop %v1037
    %v1039 = vmul.f32 1.0, %v1038
    %v1040 = vadd.f32 %v177, %v989
    %v1041 = vxor.u32 %v1040, 2147483648
    %v1042 = vmul.f32 %v1041, 1.442695
    %v1043 = vpow.pop %v1042
    %v1044 = vadd.f32 %v1043, 1.0
    %v1045 = vrcp.pop %v1044
    %v1046 = vmul.f32 1.0, %v1045
    %v1047 = vadd.f32 %v1028, %v291
    %v1048 = vmul.f32 %v1039, %v1047
    %v1049 = vadd.f32 %v243, %v1048
    %v1050 = vtanh.pop %v1049
    %v1051 = vsub.f32 1.0, %v1046
    %v1052 = vmul.f32 %v1051, %v1050
    %v1053 = vmul.f32 %v1046, %v948
    %v1054 = vadd.f32 %v1052, %v1053
    %s1055 = scalar_lea.vmem %s5, 40
    %1056 = vst [vmem:[%s1055] sm:$0xff] %v1054
    %v1057 = vpack.c.bf16 %v1054, %v1054
    %1058 = vmatprep.subr.bf16.mxu0 %v397
    %1059 = vmatpush1.bf16.msra.mxu0 %v396
    %1060 = vmatprep.subr.bf16.mxu0 %v394
    %1061 = vmatpush1.bf16.msra.mxu0 %v393
    %1062 = vmatprep.subr.bf16.mxu0 %v391
    %1063 = vmatpush1.bf16.msra.mxu0 %v390
    %1064 = vmatprep.subr.bf16.mxu0 %v388
    %1065 = vmatpush1.bf16.msra.mxu0 %v387
    %1066 = vmatprep.subr.bf16.mxu0 %v385
    %1067 = vmatpush1.bf16.msra.mxu0 %v384
    %1068 = vmatprep.subr.bf16.mxu0 %v382
    %1069 = vmatpush1.bf16.msra.mxu0 %v381
    %1070 = vmatprep.subr.bf16.mxu0 %v379
    %1071 = vmatpush1.bf16.msra.mxu0 %v378
    %1072 = vmatprep.subr.bf16.mxu0 %v376
    %1073 = vmatpush1.bf16.msra.mxu0 %v375
    %1074 = vmatprep.subr.bf16.mxu0 0
    %1075 = vmatpush2.bf16.msra.mxu0 0
    %1076 = vmatprep.subr.bf16.mxu0 0
    %1077 = vmatpush2.bf16.msra.mxu0 0
    %1078 = vmatprep.subr.bf16.mxu0 0
    %1079 = vmatpush2.bf16.msra.mxu0 0
    %1080 = vmatprep.subr.bf16.mxu0 0
    %1081 = vmatpush2.bf16.msra.mxu0 0
    %1082 = vmatprep.subr.bf16.mxu0 0
    %1083 = vmatpush2.bf16.msra.mxu0 0
    %1084 = vmatprep.subr.bf16.mxu0 0
    %1085 = vmatpush2.bf16.msra.mxu0 0
    %1086 = vmatprep.subr.bf16.mxu0 0
    %1087 = vmatpush2.bf16.msra.mxu0 0
    %1088 = vmatprep.subr.bf16.mxu0 0
    %1089 = vmatpush2.bf16.msra.mxu0 0
    %1090 = vmatprep.mubr.bf16.mxu0 0
    %1091 = vmatmul.mubr.bf16.gmra.mxu0 %v1057
    %v1092 = vpop.f32.mrf.mxu0
    %v1093 = vadd.f32 0.0, %v1092
    %v1094 = vpop.f32.mrf.mxu0
    %v1095 = vadd.f32 0.0, %v1094
    %v1096 = vpop.f32.mrf.mxu0
    %v1097 = vpop.f32.mrf.mxu0
    %1098 = vdwg.mxu0
    %1099 = vmatprep.subr.bf16.mxu0 0
    %1100 = vmatpush1.bf16.msra.mxu0 %v398
    %1101 = vmatprep.subr.bf16.mxu0 0
    %1102 = vmatpush1.bf16.msra.mxu0 %v395
    %1103 = vmatprep.subr.bf16.mxu0 0
    %1104 = vmatpush1.bf16.msra.mxu0 %v392
    %1105 = vmatprep.subr.bf16.mxu0 0
    %1106 = vmatpush1.bf16.msra.mxu0 %v389
    %1107 = vmatprep.subr.bf16.mxu0 0
    %1108 = vmatpush1.bf16.msra.mxu0 %v386
    %1109 = vmatprep.subr.bf16.mxu0 0
    %1110 = vmatpush1.bf16.msra.mxu0 %v383
    %1111 = vmatprep.subr.bf16.mxu0 0
    %1112 = vmatpush1.bf16.msra.mxu0 %v380
    %1113 = vmatprep.subr.bf16.mxu0 0
    %1114 = vmatpush1.bf16.msra.mxu0 %v377
    %1115 = vmatprep.subr.bf16.mxu0 0
    %1116 = vmatpush2.bf16.msra.mxu0 0
    %1117 = vmatprep.subr.bf16.mxu0 0
    %1118 = vmatpush2.bf16.msra.mxu0 0
    %1119 = vmatprep.subr.bf16.mxu0 0
    %1120 = vmatpush2.bf16.msra.mxu0 0
    %1121 = vmatprep.subr.bf16.mxu0 0
    %1122 = vmatpush2.bf16.msra.mxu0 0
    %1123 = vmatprep.subr.bf16.mxu0 0
    %1124 = vmatpush2.bf16.msra.mxu0 0
    %1125 = vmatprep.subr.bf16.mxu0 0
    %1126 = vmatpush2.bf16.msra.mxu0 0
    %1127 = vmatprep.subr.bf16.mxu0 0
    %1128 = vmatpush2.bf16.msra.mxu0 0
    %1129 = vmatprep.subr.bf16.mxu0 0
    %1130 = vmatpush2.bf16.msra.mxu0 0
    %1131 = vmatprep.mubr.bf16.mxu0 0
    %1132 = vmatmul.mubr.bf16.gmra.mxu0 %v1057
    %v1133 = vpop.f32.mrf.mxu0
    %v1134 = vadd.f32 0.0, %v1133
    %v1135 = vpop.f32.mrf.mxu0
    %v1136 = vpop.f32.mrf.mxu0
    %v1137 = vpop.f32.mrf.mxu0
    %1138 = vdwg.mxu0
    %v1139 = vadd.f32 %v181, %v1093
    %v1140 = vxor.u32 %v1139, 2147483648
    %v1141 = vmul.f32 %v1140, 1.442695
    %v1142 = vpow.pop %v1141
    %v1143 = vadd.f32 %v1142, 1.0
    %v1144 = vrcp.pop %v1143
    %v1145 = vmul.f32 1.0, %v1144
    %v1146 = vadd.f32 %v183, %v1095
    %v1147 = vxor.u32 %v1146, 2147483648
    %v1148 = vmul.f32 %v1147, 1.442695
    %v1149 = vpow.pop %v1148
    %v1150 = vadd.f32 %v1149, 1.0
    %v1151 = vrcp.pop %v1150
    %v1152 = vmul.f32 1.0, %v1151
    %v1153 = vadd.f32 %v1134, %v291
    %v1154 = vmul.f32 %v1145, %v1153
    %v1155 = vadd.f32 %v248, %v1154
    %v1156 = vtanh.pop %v1155
    %v1157 = vsub.f32 1.0, %v1152
    %v1158 = vmul.f32 %v1157, %v1156
    %v1159 = vmul.f32 %v1152, %v1054
    %v1160 = vadd.f32 %v1158, %v1159
    %s1161 = scalar_lea.vmem %s5, 48
    %1162 = vst [vmem:[%s1161] sm:$0xff] %v1160
    %v1163 = vpack.c.bf16 %v1160, %v1160
    %1164 = vmatprep.subr.bf16.mxu0 %v397
    %1165 = vmatpush1.bf16.msra.mxu0 %v396
    %1166 = vmatprep.subr.bf16.mxu0 %v394
    %1167 = vmatpush1.bf16.msra.mxu0 %v393
    %1168 = vmatprep.subr.bf16.mxu0 %v391
    %1169 = vmatpush1.bf16.msra.mxu0 %v390
    %1170 = vmatprep.subr.bf16.mxu0 %v388
    %1171 = vmatpush1.bf16.msra.mxu0 %v387
    %1172 = vmatprep.subr.bf16.mxu0 %v385
    %1173 = vmatpush1.bf16.msra.mxu0 %v384
    %1174 = vmatprep.subr.bf16.mxu0 %v382
    %1175 = vmatpush1.bf16.msra.mxu0 %v381
    %1176 = vmatprep.subr.bf16.mxu0 %v379
    %1177 = vmatpush1.bf16.msra.mxu0 %v378
    %1178 = vmatprep.subr.bf16.mxu0 %v376
    %1179 = vmatpush1.bf16.msra.mxu0 %v375
    %1180 = vmatprep.subr.bf16.mxu0 0
    %1181 = vmatpush2.bf16.msra.mxu0 0
    %1182 = vmatprep.subr.bf16.mxu0 0
    %1183 = vmatpush2.bf16.msra.mxu0 0
    %1184 = vmatprep.subr.bf16.mxu0 0
    %1185 = vmatpush2.bf16.msra.mxu0 0
    %1186 = vmatprep.subr.bf16.mxu0 0
    %1187 = vmatpush2.bf16.msra.mxu0 0
    %1188 = vmatprep.subr.bf16.mxu0 0
    %1189 = vmatpush2.bf16.msra.mxu0 0
    %1190 = vmatprep.subr.bf16.mxu0 0
    %1191 = vmatpush2.bf16.msra.mxu0 0
    %1192 = vmatprep.subr.bf16.mxu0 0
    %1193 = vmatpush2.bf16.msra.mxu0 0
    %1194 = vmatprep.subr.bf16.mxu0 0
    %1195 = vmatpush2.bf16.msra.mxu0 0
    %1196 = vmatprep.mubr.bf16.mxu0 0
    %1197 = vmatmul.mubr.bf16.gmra.mxu0 %v1163
    %v1198 = vpop.f32.mrf.mxu0
    %v1199 = vadd.f32 0.0, %v1198
    %v1200 = vpop.f32.mrf.mxu0
    %v1201 = vadd.f32 0.0, %v1200
    %v1202 = vpop.f32.mrf.mxu0
    %v1203 = vpop.f32.mrf.mxu0
    %1204 = vdwg.mxu0
    %1205 = vmatprep.subr.bf16.mxu0 0
    %1206 = vmatpush1.bf16.msra.mxu0 %v398
    %1207 = vmatprep.subr.bf16.mxu0 0
    %1208 = vmatpush1.bf16.msra.mxu0 %v395
    %1209 = vmatprep.subr.bf16.mxu0 0
    %1210 = vmatpush1.bf16.msra.mxu0 %v392
    %1211 = vmatprep.subr.bf16.mxu0 0
    %1212 = vmatpush1.bf16.msra.mxu0 %v389
    %1213 = vmatprep.subr.bf16.mxu0 0
    %1214 = vmatpush1.bf16.msra.mxu0 %v386
    %1215 = vmatprep.subr.bf16.mxu0 0
    %1216 = vmatpush1.bf16.msra.mxu0 %v383
    %1217 = vmatprep.subr.bf16.mxu0 0
    %1218 = vmatpush1.bf16.msra.mxu0 %v380
    %1219 = vmatprep.subr.bf16.mxu0 0
    %1220 = vmatpush1.bf16.msra.mxu0 %v377
    %1221 = vmatprep.subr.bf16.mxu0 0
    %1222 = vmatpush2.bf16.msra.mxu0 0
    %1223 = vmatprep.subr.bf16.mxu0 0
    %1224 = vmatpush2.bf16.msra.mxu0 0
    %1225 = vmatprep.subr.bf16.mxu0 0
    %1226 = vmatpush2.bf16.msra.mxu0 0
    %1227 = vmatprep.subr.bf16.mxu0 0
    %1228 = vmatpush2.bf16.msra.mxu0 0
    %1229 = vmatprep.subr.bf16.mxu0 0
    %1230 = vmatpush2.bf16.msra.mxu0 0
    %1231 = vmatprep.subr.bf16.mxu0 0
    %1232 = vmatpush2.bf16.msra.mxu0 0
    %1233 = vmatprep.subr.bf16.mxu0 0
    %1234 = vmatpush2.bf16.msra.mxu0 0
    %1235 = vmatprep.subr.bf16.mxu0 0
    %1236 = vmatpush2.bf16.msra.mxu0 0
    %1237 = vmatprep.mubr.bf16.mxu0 0
    %1238 = vmatmul.mubr.bf16.gmra.mxu0 %v1163
    %v1239 = vpop.f32.mrf.mxu0
    %v1240 = vadd.f32 0.0, %v1239
    %v1241 = vpop.f32.mrf.mxu0
    %v1242 = vpop.f32.mrf.mxu0
    %v1243 = vpop.f32.mrf.mxu0
    %1244 = vdwg.mxu0
    %v1245 = vadd.f32 %v185, %v1199
    %v1246 = vxor.u32 %v1245, 2147483648
    %v1247 = vmul.f32 %v1246, 1.442695
    %v1248 = vpow.pop %v1247
    %v1249 = vadd.f32 %v1248, 1.0
    %v1250 = vrcp.pop %v1249
    %v1251 = vmul.f32 1.0, %v1250
    %v1252 = vadd.f32 %v187, %v1201
    %v1253 = vxor.u32 %v1252, 2147483648
    %v1254 = vmul.f32 %v1253, 1.442695
    %v1255 = vpow.pop %v1254
    %v1256 = vadd.f32 %v1255, 1.0
    %v1257 = vrcp.pop %v1256
    %v1258 = vmul.f32 1.0, %v1257
    %v1259 = vadd.f32 %v1240, %v291
    %v1260 = vmul.f32 %v1251, %v1259
    %v1261 = vadd.f32 %v251, %v1260
    %v1262 = vtanh.pop %v1261
    %v1263 = vsub.f32 1.0, %v1258
    %v1264 = vmul.f32 %v1263, %v1262
    %v1265 = vmul.f32 %v1258, %v1160
    %v1266 = vadd.f32 %v1264, %v1265
    %s1267 = scalar_lea.vmem %s5, 56
    %1268 = vst [vmem:[%s1267] sm:$0xff] %v1266
    %1269 = vst [vmem:[#allocation2] sm:$0xff] %v1266
    // Predicated region
    $region34: #{forward.2} parent=1 // pred_check
      _
    $region35: #{forward.2} parent=1 // pred_check_branch
      %1271 = sbr.rel (0) target = $region37
    $region36: #{forward.2} parent=1 // pred_region
      _
    $region37: #{forward.2} parent=1 // pred_fallthru
      _
    // Predicated region
    $region38: #{forward.2} parent=1 // pred_check
      _
    $region39: #{forward.2} parent=1 // pred_check_branch
      %1273 = sbr.rel (0) target = $region41
    $region40: #{forward.2} parent=1 // pred_region
      _
    $region41: #{forward.2} parent=1 // pred_fallthru
      _
    %1274 = vsyncpa [#allocation4], 1
    %1275 = vsyncpa [#allocation6], 1

</llo_original>
